<compile_context>
chip_gen: v7x
topology: tpu7x:2x2x1
jax: 0.10.0
libtpu: 0.0.40
codegen_flags: <defaults>
</compile_context>

<pallas_src>
import math
import functools

import jax
import jax.numpy as jnp
from jax.experimental import pallas as pl
from jax.experimental.pallas import tpu as pltpu

LN_EPS = 1e-6  # timm ViT LayerNorm eps
_CPARAMS = pltpu.CompilerParams(dimension_semantics=("parallel",))
# NOTE: at real ViT-S scale (B*197 tokens, hidden=1536) the M axis would be tiled to
# keep the MLP intermediate inside VMEM (smaller tile on v7x's 64 MiB than on v6e) and
# vmem_limit_bytes raised accordingly; at these toy shapes the defaults are ample.


# ----------------------------- helpers --------------------------------------------- #

def _round_up(n, m):
    return ((n + m - 1) // m) * m


def _resident_spec(shape):
    """Full-array block with a constant index_map -> fetched once, resident in VMEM."""
    zeros = (0,) * len(shape)
    return pl.BlockSpec(shape, lambda b: zeros)


def _token_spec(n_pad, d):
    """(B, N_pad, D) activations: one batch row per grid step, batch dim squeezed."""
    return pl.BlockSpec((None, n_pad, d), lambda b: (b, 0, 0))


def _layernorm(x, g, b, eps):
    mu = jnp.mean(x, axis=-1, keepdims=True)
    var = jnp.mean(jnp.square(x - mu), axis=-1, keepdims=True)  # biased var (PyTorch LN)
    return (x - mu) * jax.lax.rsqrt(var + eps) * g + b


# ----------------------------- Pallas kernels -------------------------------------- #

def _embed_kernel(p_ref, w_ref, base_ref, o_ref):
    # Patch-embed matmul with the cls-token / pos-embed / conv-bias slab folded in.
    # p_ref rows 0 and N..Npad-1 are zero, so they only pick up `base`.
    o_ref[...] = (jnp.dot(p_ref[...], w_ref[...], preferred_element_type=jnp.float32)
                  + base_ref[...])


def _attn_block_kernel(x_ref, g_ref, b_ref, qkvw_ref, qkvb_ref, pw_ref, pb_ref, o_ref,
                       *, nh, dh, n_valid, scale, eps):
    x = x_ref[...]                                                   # (Npad, D) f32
    h = _layernorm(x, g_ref[...], b_ref[...], eps)
    qkv = (jnp.dot(h.astype(jnp.bfloat16), qkvw_ref[...],
                   preferred_element_type=jnp.float32) + qkvb_ref[...])   # (Npad, 3D)

    npad, d = x.shape
    key_mask = jax.lax.broadcasted_iota(jnp.int32, (npad, npad), 1) < n_valid

    acc = x + pb_ref[...]                     # residual + proj bias accumulator
    for hh in range(nh):                      # static unroll over heads (nh is small)
        q = qkv[:, hh * dh:(hh + 1) * dh].astype(jnp.bfloat16)
        k = qkv[:, d + hh * dh: d + (hh + 1) * dh].astype(jnp.bfloat16)
        v = qkv[:, 2 * d + hh * dh: 2 * d + (hh + 1) * dh].astype(jnp.bfloat16)
        s = jax.lax.dot_general(q, k, (((1,), (1,)), ((), ())),
                                preferred_element_type=jnp.float32) * scale  # (Npad,Npad)
        s = jnp.where(key_mask, s, -1e30)                  # mask padded keys
        s = s - jnp.max(s, axis=-1, keepdims=True)
        p = jnp.exp(s)
        p = p * pl.reciprocal(jnp.sum(p, axis=-1, keepdims=True), approx=True)
        ctx = jnp.dot(p.astype(jnp.bfloat16), v, preferred_element_type=jnp.float32)
        # proj is linear -> accumulate per-head contribution against the matching
        # 16-row slab of proj_w (avoids reassembling a (Npad, D) context tensor).
        acc = acc + jnp.dot(ctx.astype(jnp.bfloat16),
                            pw_ref[hh * dh:(hh + 1) * dh, :],
                            preferred_element_type=jnp.float32)
    o_ref[...] = acc


def _mlp_block_kernel(x_ref, g_ref, b_ref, w1_ref, b1_ref, w2_ref, b2_ref, o_ref, *, eps):
    x = x_ref[...]
    h = _layernorm(x, g_ref[...], b_ref[...], eps)
    h1 = (jnp.dot(h.astype(jnp.bfloat16), w1_ref[...],
                  preferred_element_type=jnp.float32) + b1_ref[...])
    # exact GELU (nn.GELU default): 0.5*x*(1+erf(x/sqrt(2)))
    h1 = 0.5 * h1 * (1.0 + jax.lax.erf(h1 * (1.0 / math.sqrt(2.0))))
    o_ref[...] = x + (jnp.dot(h1.astype(jnp.bfloat16), w2_ref[...],
                              preferred_element_type=jnp.float32) + b2_ref[...])


def _head_kernel(x_ref, g_ref, b_ref, hw_ref, hb_ref, o_ref, *, eps):
    cls = x_ref[0:1, :]                                   # token pooling: x[:, 0]
    h = _layernorm(cls, g_ref[...], b_ref[...], eps)
    o_ref[...] = (jnp.dot(h.astype(jnp.bfloat16), hw_ref[...],
                          preferred_element_type=jnp.float32) + hb_ref[...])


# ----------------------------- pallas_call wrappers -------------------------------- #

def _embed_call(patches_pad, patch_w, base):
    B, Npad, Cpp = patches_pad.shape
    D = patch_w.shape[1]
    return pl.pallas_call(
        _embed_kernel,
        grid=(B,),
        in_specs=[pl.BlockSpec((None, Npad, Cpp), lambda b: (b, 0, 0)),
                  _resident_spec((Cpp, D)),
                  _resident_spec((Npad, D))],
        out_specs=_token_spec(Npad, D),
        out_shape=jax.ShapeDtypeStruct((B, Npad, D), jnp.float32),
        compiler_params=_CPARAMS,
    )(patches_pad, patch_w, base)


def _attn_block_call(tok, blk, *, nh, dh, n_valid):
    B, Npad, D = tok.shape
    kern = functools.partial(_attn_block_kernel, nh=nh, dh=dh, n_valid=n_valid,
                             scale=dh ** -0.5, eps=LN_EPS)
    return pl.pallas_call(
        kern,
        grid=(B,),
        in_specs=[_token_spec(Npad, D),
                  _resident_spec((1, D)), _resident_spec((1, D)),
                  _resident_spec((D, 3 * D)), _resident_spec((1, 3 * D)),
                  _resident_spec((D, D)), _resident_spec((1, D))],
        out_specs=_token_spec(Npad, D),
        out_shape=jax.ShapeDtypeStruct((B, Npad, D), jnp.float32),
        compiler_params=_CPARAMS,
        input_output_aliases={0: 0},
    )(tok, blk['ln1_g'], blk['ln1_b'], blk['qkv_w'], blk['qkv_b'],
      blk['proj_w'], blk['proj_b'])


def _mlp_block_call(tok, blk):
    B, Npad, D = tok.shape
    hidden = blk['fc1_w'].shape[1]
    return pl.pallas_call(
        functools.partial(_mlp_block_kernel, eps=LN_EPS),
        grid=(B,),
        in_specs=[_token_spec(Npad, D),
                  _resident_spec((1, D)), _resident_spec((1, D)),
                  _resident_spec((D, hidden)), _resident_spec((1, hidden)),
                  _resident_spec((hidden, D)), _resident_spec((1, D))],
        out_specs=_token_spec(Npad, D),
        out_shape=jax.ShapeDtypeStruct((B, Npad, D), jnp.float32),
        compiler_params=_CPARAMS,
        input_output_aliases={0: 0},
    )(tok, blk['ln2_g'], blk['ln2_b'], blk['fc1_w'], blk['fc1_b'],
      blk['fc2_w'], blk['fc2_b'])


def _head_call(tok, norm_g, norm_b, head_w, head_b):
    B, Npad, D = tok.shape
    ncls = head_w.shape[1]
    out = pl.pallas_call(
        functools.partial(_head_kernel, eps=LN_EPS),
        grid=(B,),
        in_specs=[_token_spec(Npad, D),
                  _resident_spec((1, D)), _resident_spec((1, D)),
                  _resident_spec((D, ncls)), _resident_spec((1, ncls))],
        out_specs=pl.BlockSpec((None, 1, ncls), lambda b: (b, 0, 0)),
        out_shape=jax.ShapeDtypeStruct((B, 1, ncls), jnp.float32),
        compiler_params=_CPARAMS,
    )(tok, norm_g, norm_b, head_w, head_b)
    return out.reshape(B, ncls)


# ----------------------------- ViT forward ----------------------------------------- #

def vit_forward(params, x, cfg):
    B, C, H, W = x.shape
    p, D, nh = cfg['patch'], cfg['dim'], cfg['heads']
    dh = D // nh
    gh, gw = H // p, W // p
    Np = gh * gw
    N = Np + 1
    Npad = _round_up(N, 8)                  # pad token axis up to the sublane tile

    # Host glue (pure layout): NCHW -> (B, Np, C*p*p) patch rows; feature order
    # (c, kh, kw) matches PyTorch Conv2d weight flattening.  Zero-pad so row 0 is the
    # cls slot and rows N..Npad-1 are padding (masked in attention).
    patches = (x.reshape(B, C, gh, p, gw, p)
                 .transpose(0, 2, 4, 1, 3, 5)
                 .reshape(B, Np, C * p * p)).astype(jnp.bfloat16)
    patches = jnp.pad(patches, ((0, 0), (1, Npad - N), (0, 0)))

    # Parameter prep: fold cls token, learned pos-embed and the conv bias into one
    # additive (Npad, D) slab so the embed kernel fuses patch-matmul + bias + pos-add.
    pos = params['pos_embed'][0]                                    # (N, D)
    row0 = params['cls_token'].reshape(1, D) + pos[0:1]
    rows = params['patch_b'] + pos[1:]
    base = jnp.pad(jnp.concatenate([row0, rows], axis=0), ((0, Npad - N), (0, 0)))

    tok = _embed_call(patches, params['patch_w'], base)             # (B, Npad, D) f32

    for blk in params['blocks']:
        tok = _attn_block_call(tok, blk, nh=nh, dh=dh, n_valid=N)
        tok = _mlp_block_call(tok, blk)

    return _head_call(tok, params['norm_g'], params['norm_b'],
                      params['head_w'], params['head_b'])


# ----------------------------- parameter init -------------------------------------- #

def _kaiming_uniform(key, fan_in, shape):
    # torch.nn.init.kaiming_uniform_ with default args: bound = sqrt(6 / fan_in)
    bound = math.sqrt(6.0 / fan_in)
    return jax.random.uniform(key, shape, jnp.float32, -bound, bound)


def init_params(key, cfg):
    p, D, nh, depth = cfg['patch'], cfg['dim'], cfg['heads'], cfg['depth']
    C, hidden, ncls, N = cfg['chans'], cfg['mlp_hidden'], cfg['num_classes'], cfg['tokens']
    keys = jax.random.split(key, 4 + depth)
    bias01 = lambda n: jnp.full((1, n), 0.01, jnp.float32)          # m.bias.data.fill_(0.01)
    wdt = jnp.bfloat16                                              # MXU operand dtype

    params = {
        'patch_w': _kaiming_uniform(keys[0], C * p * p, (C * p * p, D)).astype(wdt),
        'patch_b': bias01(D),
        'cls_token': 0.02 * jax.random.normal(keys[1], (1, 1, D), jnp.float32),
        'pos_embed': 0.02 * jax.random.normal(keys[2], (1, N, D), jnp.float32),
        'norm_g': jnp.ones((1, D), jnp.float32),
        'norm_b': jnp.zeros((1, D), jnp.float32),
        'head_w': _kaiming_uniform(keys[3], D, (D, ncls)).astype(wdt),
        'head_b': bias01(ncls),
        'blocks': [],
    }
    for i in range(depth):
        bk = jax.random.split(keys[4 + i], 4)
        params['blocks'].append({
            'ln1_g': jnp.ones((1, D), jnp.float32), 'ln1_b': jnp.zeros((1, D), jnp.float32),
            'qkv_w': _kaiming_uniform(bk[0], D, (D, 3 * D)).astype(wdt), 'qkv_b': bias01(3 * D),
            'proj_w': _kaiming_uniform(bk[1], D, (D, D)).astype(wdt), 'proj_b': bias01(D),
            'ln2_g': jnp.ones((1, D), jnp.float32), 'ln2_b': jnp.zeros((1, D), jnp.float32),
            'fc1_w': _kaiming_uniform(bk[2], D, (D, hidden)).astype(wdt), 'fc1_b': bias01(hidden),
            'fc2_w': _kaiming_uniform(bk[3], hidden, (hidden, D)).astype(wdt), 'fc2_b': bias01(D),
        })
    return params


# ----------------------------- main ------------------------------------------------- #

if __name__ == "__main__":
    # Small shapes consistent with the module: patch 16 kept, everything else shrunk.
    cfg = dict(patch=16, chans=3, img=32, dim=64, heads=4, depth=2,
               mlp_hidden=256, num_classes=16)
    cfg['tokens'] = (cfg['img'] // cfg['patch']) ** 2 + 1

    root = jax.random.PRNGKey(0)
    kx, kp = jax.random.split(root)
    x = jax.random.normal(kx, (2, cfg['chans'], cfg['img'], cfg['img']), jnp.float32)
    params = init_params(kp, cfg)

    fwd = jax.jit(lambda pr, xx: vit_forward(pr, xx, cfg))
    logits = jax.block_until_ready(fwd(params, x))
    assert logits.shape == (2, cfg['num_classes'])
    assert bool(jnp.all(jnp.isfinite(logits)))
    print("KERNEL_OK")
</pallas_src>

<mosaic_0001>
module attributes {stable_mosaic.version = 11 : i64} {
  func.func @_embed_kernel(%arg0: i32, %arg1: memref<1x8x768xbf16, #tpu.memory_space<vmem>>, %arg2: memref<768x64xbf16, #tpu.memory_space<vmem>>, %arg3: memref<8x64xf32, #tpu.memory_space<vmem>>, %arg4: memref<1x8x64xf32, #tpu.memory_space<vmem>>) attributes {dimension_semantics = [#tpu.dimension_semantics<parallel>], iteration_bounds = array<i64: 2>, scalar_prefetch = 0 : i64, scratch_operands = 0 : i64, tpu.core_type = #tpu.core_type<tc>, window_params = [{transform_indices = @transform_0, window_bounds = array<i64: 1, 8, 768>}, {pipeline_mode = #tpu.pipeline_mode<synchronous>, transform_indices = @transform_1, window_bounds = array<i64: 768, 64>}, {pipeline_mode = #tpu.pipeline_mode<synchronous>, transform_indices = @transform_2, window_bounds = array<i64: 8, 64>}, {transform_indices = @transform_3, window_bounds = array<i64: 1, 8, 64>}]} {
    %c0 = arith.constant 0 : index
    %c0_0 = arith.constant 0 : index
    %c0_1 = arith.constant 0 : index
    %0 = vector.load %arg1[%c0, %c0_0, %c0_1] : memref<1x8x768xbf16, #tpu.memory_space<vmem>>, vector<1x8x768xbf16>
    %1 = vector.shape_cast %0 : vector<1x8x768xbf16> to vector<8x768xbf16>
    %c0_2 = arith.constant 0 : index
    %c0_3 = arith.constant 0 : index
    %2 = vector.load %arg2[%c0_2, %c0_3] : memref<768x64xbf16, #tpu.memory_space<vmem>>, vector<768x64xbf16>
    %cst = arith.constant dense<0.000000e+00> : vector<8x64xf32>
    %3 = tpu.matmul %1, %2, %cst {dimension_numbers = #tpu.dot_dimension_numbers<[1], [0], [0], [1], [0, 0, 1, 1], [], []>} : vector<8x768xbf16>, vector<768x64xbf16>, vector<8x64xf32> -> vector<8x64xf32>
    %c0_4 = arith.constant 0 : index
    %c0_5 = arith.constant 0 : index
    %4 = vector.load %arg3[%c0_4, %c0_5] : memref<8x64xf32, #tpu.memory_space<vmem>>, vector<8x64xf32>
    %5 = arith.addf %3, %4 : vector<8x64xf32>
    %c0_6 = arith.constant 0 : index
    %c0_7 = arith.constant 0 : index
    %c0_8 = arith.constant 0 : index
    %6 = vector.load %arg4[%c0_6, %c0_7, %c0_8] : memref<1x8x64xf32, #tpu.memory_space<vmem>>, vector<1x8x64xf32>
    %7 = vector.shape_cast %6 : vector<1x8x64xf32> to vector<8x64xf32>
    %8 = vector.shape_cast %5 : vector<8x64xf32> to vector<1x8x64xf32>
    tpu.vector_store %arg4[%c0_6, %c0_7, %c0_8], %8 {strides = array<i32>} : memref<1x8x64xf32, #tpu.memory_space<vmem>>, vector<1x8x64xf32>,
    return
  }
  func.func @transform_0(%arg0: i32) -> (i32, i32, i32) {
    %c0_i32 = arith.constant 0 : i32
    %c0_i32_0 = arith.constant 0 : i32
    %c0_i32_1 = arith.constant 0 : i32
    return %arg0, %c0_i32, %c0_i32_0 : i32, i32, i32
  }
  func.func @transform_1(%arg0: i32) -> (i32, i32) {
    %c0_i32 = arith.constant 0 : i32
    %c0_i32_0 = arith.constant 0 : i32
    %c0_i32_1 = arith.constant 0 : i32
    return %c0_i32, %c0_i32_0 : i32, i32
  }
  func.func @transform_2(%arg0: i32) -> (i32, i32) {
    %c0_i32 = arith.constant 0 : i32
    %c0_i32_0 = arith.constant 0 : i32
    %c0_i32_1 = arith.constant 0 : i32
    return %c0_i32, %c0_i32_0 : i32, i32
  }
  func.func @transform_3(%arg0: i32) -> (i32, i32, i32) {
    %c0_i32 = arith.constant 0 : i32
    %c0_i32_0 = arith.constant 0 : i32
    %c0_i32_1 = arith.constant 0 : i32
    return %arg0, %c0_i32, %c0_i32_0 : i32, i32, i32
  }
}

module attributes {stable_mosaic.version = 11 : i64} {
  func.func @_attn_block_kernel(%arg0: i32, %arg1: memref<1x8x64xf32, #tpu.memory_space<vmem>>, %arg2: memref<1x64xf32, #tpu.memory_space<vmem>>, %arg3: memref<1x64xf32, #tpu.memory_space<vmem>>, %arg4: memref<64x192xbf16, #tpu.memory_space<vmem>>, %arg5: memref<1x192xf32, #tpu.memory_space<vmem>>, %arg6: memref<64x64xbf16, #tpu.memory_space<vmem>>, %arg7: memref<1x64xf32, #tpu.memory_space<vmem>>, %arg8: memref<1x8x64xf32, #tpu.memory_space<vmem>>) attributes {dimension_semantics = [#tpu.dimension_semantics<parallel>], iteration_bounds = array<i64: 2>, scalar_prefetch = 0 : i64, scratch_operands = 0 : i64, tpu.core_type = #tpu.core_type<tc>, window_params = [{transform_indices = @transform_0, window_bounds = array<i64: 1, 8, 64>}, {pipeline_mode = #tpu.pipeline_mode<synchronous>, transform_indices = @transform_1, window_bounds = array<i64: 1, 64>}, {pipeline_mode = #tpu.pipeline_mode<synchronous>, transform_indices = @transform_2, window_bounds = array<i64: 1, 64>}, {pipeline_mode = #tpu.pipeline_mode<synchronous>, transform_indices = @transform_3, window_bounds = array<i64: 64, 192>}, {pipeline_mode = #tpu.pipeline_mode<synchronous>, transform_indices = @transform_4, window_bounds = array<i64: 1, 192>}, {pipeline_mode = #tpu.pipeline_mode<synchronous>, transform_indices = @transform_5, window_bounds = array<i64: 64, 64>}, {pipeline_mode = #tpu.pipeline_mode<synchronous>, transform_indices = @transform_6, window_bounds = array<i64: 1, 64>}, {transform_indices = @transform_7, window_bounds = array<i64: 1, 8, 64>}]} {
    %c0 = arith.constant 0 : index
    %c0_0 = arith.constant 0 : index
    %c0_1 = arith.constant 0 : index
    %0 = vector.load %arg1[%c0, %c0_0, %c0_1] : memref<1x8x64xf32, #tpu.memory_space<vmem>>, vector<1x8x64xf32>
    %1 = vector.shape_cast %0 : vector<1x8x64xf32> to vector<8x64xf32>
    %c0_2 = arith.constant 0 : index
    %c0_3 = arith.constant 0 : index
    %2 = vector.load %arg2[%c0_2, %c0_3] : memref<1x64xf32, #tpu.memory_space<vmem>>, vector<1x64xf32>
    %c0_4 = arith.constant 0 : index
    %c0_5 = arith.constant 0 : index
    %3 = vector.load %arg3[%c0_4, %c0_5] : memref<1x64xf32, #tpu.memory_space<vmem>>, vector<1x64xf32>
    %cst = arith.constant dense<0.000000e+00> : vector<8xf32>
    %4 = vector.multi_reduction <add>, %1, %cst [1] : vector<8x64xf32> to vector<8xf32>
    %5 = vector.shape_cast %4 : vector<8xf32> to vector<8x1xf32>
    %cst_6 = arith.constant 6.400000e+01 : f32
    %6 = vector.broadcast %cst_6 : f32 to vector<8x1xf32>
    %7 = arith.divf %5, %6 : vector<8x1xf32>
    %8 = vector.broadcast %7 : vector<8x1xf32> to vector<8x64xf32>
    %9 = arith.subf %1, %8 : vector<8x64xf32>
    %10 = arith.mulf %9, %9 : vector<8x64xf32>
    %cst_7 = arith.constant dense<0.000000e+00> : vector<8xf32>
    %11 = vector.multi_reduction <add>, %10, %cst_7 [1] : vector<8x64xf32> to vector<8xf32>
    %12 = vector.shape_cast %11 : vector<8xf32> to vector<8x1xf32>
    %cst_8 = arith.constant 6.400000e+01 : f32
    %13 = vector.broadcast %cst_8 : f32 to vector<8x1xf32>
    %14 = arith.divf %12, %13 : vector<8x1xf32>
    %15 = vector.broadcast %7 : vector<8x1xf32> to vector<8x64xf32>
    %16 = arith.subf %1, %15 : vector<8x64xf32>
    %cst_9 = arith.constant 9.99999997E-7 : f32
    %17 = vector.broadcast %cst_9 : f32 to vector<8x1xf32>
    %18 = arith.addf %14, %17 : vector<8x1xf32>
    %19 = math.rsqrt %18 : vector<8x1xf32>
    %20 = vector.broadcast %19 : vector<8x1xf32> to vector<8x64xf32>
    %21 = arith.mulf %16, %20 : vector<8x64xf32>
    %22 = vector.broadcast %2 : vector<1x64xf32> to vector<8x64xf32>
    %23 = arith.mulf %21, %22 : vector<8x64xf32>
    %24 = vector.broadcast %3 : vector<1x64xf32> to vector<8x64xf32>
    %25 = arith.addf %23, %24 : vector<8x64xf32>
    %26 = arith.truncf %25 : vector<8x64xf32> to vector<8x64xbf16>
    %c0_10 = arith.constant 0 : index
    %c0_11 = arith.constant 0 : index
    %27 = vector.load %arg4[%c0_10, %c0_11] : memref<64x192xbf16, #tpu.memory_space<vmem>>, vector<64x192xbf16>
    %cst_12 = arith.constant dense<0.000000e+00> : vector<8x192xf32>
    %28 = tpu.matmul %26, %27, %cst_12 {dimension_numbers = #tpu.dot_dimension_numbers<[1], [0], [0], [1], [0, 0, 1, 1], [], []>} : vector<8x64xbf16>, vector<64x192xbf16>, vector<8x192xf32> -> vector<8x192xf32>
    %c0_13 = arith.constant 0 : index
    %c0_14 = arith.constant 0 : index
    %29 = vector.load %arg5[%c0_13, %c0_14] : memref<1x192xf32, #tpu.memory_space<vmem>>, vector<1x192xf32>
    %30 = vector.broadcast %29 : vector<1x192xf32> to vector<8x192xf32>
    %31 = arith.addf %28, %30 : vector<8x192xf32>
    %32 = tpu.iota {dimensions = array<i32: 1>} : vector<8x8xi32>
    %c5_i32 = arith.constant 5 : i32
    %33 = vector.broadcast %c5_i32 : i32 to vector<8x8xi32>
    %34 = arith.cmpi slt, %32, %33 : vector<8x8xi32>
    %c0_15 = arith.constant 0 : index
    %c0_16 = arith.constant 0 : index
    %35 = vector.load %arg7[%c0_15, %c0_16] : memref<1x64xf32, #tpu.memory_space<vmem>>, vector<1x64xf32>
    %36 = vector.broadcast %35 : vector<1x64xf32> to vector<8x64xf32>
    %37 = arith.addf %1, %36 : vector<8x64xf32>
    %38 = vector.extract_strided_slice %31 {offsets = [0, 0], sizes = [8, 16], strides = [1, 1]} : vector<8x192xf32> to vector<8x16xf32>
    %39 = arith.truncf %38 : vector<8x16xf32> to vector<8x16xbf16>
    %40 = vector.extract_strided_slice %31 {offsets = [0, 64], sizes = [8, 16], strides = [1, 1]} : vector<8x192xf32> to vector<8x16xf32>
    %41 = arith.truncf %40 : vector<8x16xf32> to vector<8x16xbf16>
    %42 = vector.extract_strided_slice %31 {offsets = [0, 128], sizes = [8, 16], strides = [1, 1]} : vector<8x192xf32> to vector<8x16xf32>
    %43 = arith.truncf %42 : vector<8x16xf32> to vector<8x16xbf16>
    %cst_17 = arith.constant dense<0.000000e+00> : vector<8x8xf32>
    %44 = tpu.matmul %39, %41, %cst_17 {dimension_numbers = #tpu.dot_dimension_numbers<[1], [1], [0], [0], [0, 0, 1, 0], [], []>} : vector<8x16xbf16>, vector<8x16xbf16>, vector<8x8xf32> -> vector<8x8xf32>
    %cst_18 = arith.constant 2.500000e-01 : f32
    %45 = vector.broadcast %cst_18 : f32 to vector<8x8xf32>
    %46 = arith.mulf %44, %45 : vector<8x8xf32>
    %cst_19 = arith.constant -1.000000e+30 : f32
    %47 = vector.broadcast %cst_19 : f32 to vector<8x8xf32>
    %48 = arith.select %34, %46, %47 : vector<8x8xi1>, vector<8x8xf32>
    %cst_20 = arith.constant dense<0xFF800000> : vector<8xf32>
    %49 = vector.multi_reduction <maximumf>, %48, %cst_20 [1] : vector<8x8xf32> to vector<8xf32>
    %50 = vector.shape_cast %49 : vector<8xf32> to vector<8x1xf32>
    %51 = vector.broadcast %50 : vector<8x1xf32> to vector<8x8xf32>
    %52 = arith.subf %48, %51 : vector<8x8xf32>
    %53 = math.exp %52 : vector<8x8xf32>
    %cst_21 = arith.constant dense<0.000000e+00> : vector<8xf32>
    %54 = vector.multi_reduction <add>, %53, %cst_21 [1] : vector<8x8xf32> to vector<8xf32>
    %55 = vector.shape_cast %54 : vector<8xf32> to vector<8x1xf32>
    %56 = tpu.reciprocal %55 {approx = true} : vector<8x1xf32> -> vector<8x1xf32>
    %57 = vector.broadcast %56 : vector<8x1xf32> to vector<8x8xf32>
    %58 = arith.mulf %53, %57 : vector<8x8xf32>
    %59 = arith.truncf %58 : vector<8x8xf32> to vector<8x8xbf16>
    %cst_22 = arith.constant dense<0.000000e+00> : vector<8x16xf32>
    %60 = tpu.matmul %59, %43, %cst_22 {dimension_numbers = #tpu.dot_dimension_numbers<[1], [0], [0], [1], [0, 0, 1, 1], [], []>} : vector<8x8xbf16>, vector<8x16xbf16>, vector<8x16xf32> -> vector<8x16xf32>
    %61 = arith.truncf %60 : vector<8x16xf32> to vector<8x16xbf16>
    %c0_23 = arith.constant 0 : index
    %c0_24 = arith.constant 0 : index
    %62 = vector.load %arg6[%c0_23, %c0_24] : memref<64x64xbf16, #tpu.memory_space<vmem>>, vector<16x64xbf16>
    %cst_25 = arith.constant dense<0.000000e+00> : vector<8x64xf32>
    %63 = tpu.matmul %61, %62, %cst_25 {dimension_numbers = #tpu.dot_dimension_numbers<[1], [0], [0], [1], [0, 0, 1, 1], [], []>} : vector<8x16xbf16>, vector<16x64xbf16>, vector<8x64xf32> -> vector<8x64xf32>
    %64 = arith.addf %37, %63 : vector<8x64xf32>
    %65 = vector.extract_strided_slice %31 {offsets = [0, 16], sizes = [8, 16], strides = [1, 1]} : vector<8x192xf32> to vector<8x16xf32>
    %66 = arith.truncf %65 : vector<8x16xf32> to vector<8x16xbf16>
    %67 = vector.extract_strided_slice %31 {offsets = [0, 80], sizes = [8, 16], strides = [1, 1]} : vector<8x192xf32> to vector<8x16xf32>
    %68 = arith.truncf %67 : vector<8x16xf32> to vector<8x16xbf16>
    %69 = vector.extract_strided_slice %31 {offsets = [0, 144], sizes = [8, 16], strides = [1, 1]} : vector<8x192xf32> to vector<8x16xf32>
    %70 = arith.truncf %69 : vector<8x16xf32> to vector<8x16xbf16>
    %cst_26 = arith.constant dense<0.000000e+00> : vector<8x8xf32>
    %71 = tpu.matmul %66, %68, %cst_26 {dimension_numbers = #tpu.dot_dimension_numbers<[1], [1], [0], [0], [0, 0, 1, 0], [], []>} : vector<8x16xbf16>, vector<8x16xbf16>, vector<8x8xf32> -> vector<8x8xf32>
    %cst_27 = arith.constant 2.500000e-01 : f32
    %72 = vector.broadcast %cst_27 : f32 to vector<8x8xf32>
    %73 = arith.mulf %71, %72 : vector<8x8xf32>
    %cst_28 = arith.constant -1.000000e+30 : f32
    %74 = vector.broadcast %cst_28 : f32 to vector<8x8xf32>
    %75 = arith.select %34, %73, %74 : vector<8x8xi1>, vector<8x8xf32>
    %cst_29 = arith.constant dense<0xFF800000> : vector<8xf32>
    %76 = vector.multi_reduction <maximumf>, %75, %cst_29 [1] : vector<8x8xf32> to vector<8xf32>
    %77 = vector.shape_cast %76 : vector<8xf32> to vector<8x1xf32>
    %78 = vector.broadcast %77 : vector<8x1xf32> to vector<8x8xf32>
    %79 = arith.subf %75, %78 : vector<8x8xf32>
    %80 = math.exp %79 : vector<8x8xf32>
    %cst_30 = arith.constant dense<0.000000e+00> : vector<8xf32>
    %81 = vector.multi_reduction <add>, %80, %cst_30 [1] : vector<8x8xf32> to vector<8xf32>
    %82 = vector.shape_cast %81 : vector<8xf32> to vector<8x1xf32>
    %83 = tpu.reciprocal %82 {approx = true} : vector<8x1xf32> -> vector<8x1xf32>
    %84 = vector.broadcast %83 : vector<8x1xf32> to vector<8x8xf32>
    %85 = arith.mulf %80, %84 : vector<8x8xf32>
    %86 = arith.truncf %85 : vector<8x8xf32> to vector<8x8xbf16>
    %cst_31 = arith.constant dense<0.000000e+00> : vector<8x16xf32>
    %87 = tpu.matmul %86, %70, %cst_31 {dimension_numbers = #tpu.dot_dimension_numbers<[1], [0], [0], [1], [0, 0, 1, 1], [], []>} : vector<8x8xbf16>, vector<8x16xbf16>, vector<8x16xf32> -> vector<8x16xf32>
    %88 = arith.truncf %87 : vector<8x16xf32> to vector<8x16xbf16>
    %c16 = arith.constant 16 : index
    %c0_32 = arith.constant 0 : index
    %89 = vector.load %arg6[%c16, %c0_32] : memref<64x64xbf16, #tpu.memory_space<vmem>>, vector<16x64xbf16>
    %cst_33 = arith.constant dense<0.000000e+00> : vector<8x64xf32>
    %90 = tpu.matmul %88, %89, %cst_33 {dimension_numbers = #tpu.dot_dimension_numbers<[1], [0], [0], [1], [0, 0, 1, 1], [], []>} : vector<8x16xbf16>, vector<16x64xbf16>, vector<8x64xf32> -> vector<8x64xf32>
    %91 = arith.addf %64, %90 : vector<8x64xf32>
    %92 = vector.extract_strided_slice %31 {offsets = [0, 32], sizes = [8, 16], strides = [1, 1]} : vector<8x192xf32> to vector<8x16xf32>
    %93 = arith.truncf %92 : vector<8x16xf32> to vector<8x16xbf16>
    %94 = vector.extract_strided_slice %31 {offsets = [0, 96], sizes = [8, 16], strides = [1, 1]} : vector<8x192xf32> to vector<8x16xf32>
    %95 = arith.truncf %94 : vector<8x16xf32> to vector<8x16xbf16>
    %96 = vector.extract_strided_slice %31 {offsets = [0, 160], sizes = [8, 16], strides = [1, 1]} : vector<8x192xf32> to vector<8x16xf32>
    %97 = arith.truncf %96 : vector<8x16xf32> to vector<8x16xbf16>
    %cst_34 = arith.constant dense<0.000000e+00> : vector<8x8xf32>
    %98 = tpu.matmul %93, %95, %cst_34 {dimension_numbers = #tpu.dot_dimension_numbers<[1], [1], [0], [0], [0, 0, 1, 0], [], []>} : vector<8x16xbf16>, vector<8x16xbf16>, vector<8x8xf32> -> vector<8x8xf32>
    %cst_35 = arith.constant 2.500000e-01 : f32
    %99 = vector.broadcast %cst_35 : f32 to vector<8x8xf32>
    %100 = arith.mulf %98, %99 : vector<8x8xf32>
    %cst_36 = arith.constant -1.000000e+30 : f32
    %101 = vector.broadcast %cst_36 : f32 to vector<8x8xf32>
    %102 = arith.select %34, %100, %101 : vector<8x8xi1>, vector<8x8xf32>
    %cst_37 = arith.constant dense<0xFF800000> : vector<8xf32>
    %103 = vector.multi_reduction <maximumf>, %102, %cst_37 [1] : vector<8x8xf32> to vector<8xf32>
    %104 = vector.shape_cast %103 : vector<8xf32> to vector<8x1xf32>
    %105 = vector.broadcast %104 : vector<8x1xf32> to vector<8x8xf32>
    %106 = arith.subf %102, %105 : vector<8x8xf32>
    %107 = math.exp %106 : vector<8x8xf32>
    %cst_38 = arith.constant dense<0.000000e+00> : vector<8xf32>
    %108 = vector.multi_reduction <add>, %107, %cst_38 [1] : vector<8x8xf32> to vector<8xf32>
    %109 = vector.shape_cast %108 : vector<8xf32> to vector<8x1xf32>
    %110 = tpu.reciprocal %109 {approx = true} : vector<8x1xf32> -> vector<8x1xf32>
    %111 = vector.broadcast %110 : vector<8x1xf32> to vector<8x8xf32>
    %112 = arith.mulf %107, %111 : vector<8x8xf32>
    %113 = arith.truncf %112 : vector<8x8xf32> to vector<8x8xbf16>
    %cst_39 = arith.constant dense<0.000000e+00> : vector<8x16xf32>
    %114 = tpu.matmul %113, %97, %cst_39 {dimension_numbers = #tpu.dot_dimension_numbers<[1], [0], [0], [1], [0, 0, 1, 1], [], []>} : vector<8x8xbf16>, vector<8x16xbf16>, vector<8x16xf32> -> vector<8x16xf32>
    %115 = arith.truncf %114 : vector<8x16xf32> to vector<8x16xbf16>
    %c32 = arith.constant 32 : index
    %c0_40 = arith.constant 0 : index
    %116 = vector.load %arg6[%c32, %c0_40] : memref<64x64xbf16, #tpu.memory_space<vmem>>, vector<16x64xbf16>
    %cst_41 = arith.constant dense<0.000000e+00> : vector<8x64xf32>
    %117 = tpu.matmul %115, %116, %cst_41 {dimension_numbers = #tpu.dot_dimension_numbers<[1], [0], [0], [1], [0, 0, 1, 1], [], []>} : vector<8x16xbf16>, vector<16x64xbf16>, vector<8x64xf32> -> vector<8x64xf32>
    %118 = arith.addf %91, %117 : vector<8x64xf32>
    %119 = vector.extract_strided_slice %31 {offsets = [0, 48], sizes = [8, 16], strides = [1, 1]} : vector<8x192xf32> to vector<8x16xf32>
    %120 = arith.truncf %119 : vector<8x16xf32> to vector<8x16xbf16>
    %121 = vector.extract_strided_slice %31 {offsets = [0, 112], sizes = [8, 16], strides = [1, 1]} : vector<8x192xf32> to vector<8x16xf32>
    %122 = arith.truncf %121 : vector<8x16xf32> to vector<8x16xbf16>
    %123 = vector.extract_strided_slice %31 {offsets = [0, 176], sizes = [8, 16], strides = [1, 1]} : vector<8x192xf32> to vector<8x16xf32>
    %124 = arith.truncf %123 : vector<8x16xf32> to vector<8x16xbf16>
    %cst_42 = arith.constant dense<0.000000e+00> : vector<8x8xf32>
    %125 = tpu.matmul %120, %122, %cst_42 {dimension_numbers = #tpu.dot_dimension_numbers<[1], [1], [0], [0], [0, 0, 1, 0], [], []>} : vector<8x16xbf16>, vector<8x16xbf16>, vector<8x8xf32> -> vector<8x8xf32>
    %cst_43 = arith.constant 2.500000e-01 : f32
    %126 = vector.broadcast %cst_43 : f32 to vector<8x8xf32>
    %127 = arith.mulf %125, %126 : vector<8x8xf32>
    %cst_44 = arith.constant -1.000000e+30 : f32
    %128 = vector.broadcast %cst_44 : f32 to vector<8x8xf32>
    %129 = arith.select %34, %127, %128 : vector<8x8xi1>, vector<8x8xf32>
    %cst_45 = arith.constant dense<0xFF800000> : vector<8xf32>
    %130 = vector.multi_reduction <maximumf>, %129, %cst_45 [1] : vector<8x8xf32> to vector<8xf32>
    %131 = vector.shape_cast %130 : vector<8xf32> to vector<8x1xf32>
    %132 = vector.broadcast %131 : vector<8x1xf32> to vector<8x8xf32>
    %133 = arith.subf %129, %132 : vector<8x8xf32>
    %134 = math.exp %133 : vector<8x8xf32>
    %cst_46 = arith.constant dense<0.000000e+00> : vector<8xf32>
    %135 = vector.multi_reduction <add>, %134, %cst_46 [1] : vector<8x8xf32> to vector<8xf32>
    %136 = vector.shape_cast %135 : vector<8xf32> to vector<8x1xf32>
    %137 = tpu.reciprocal %136 {approx = true} : vector<8x1xf32> -> vector<8x1xf32>
    %138 = vector.broadcast %137 : vector<8x1xf32> to vector<8x8xf32>
    %139 = arith.mulf %134, %138 : vector<8x8xf32>
    %140 = arith.truncf %139 : vector<8x8xf32> to vector<8x8xbf16>
    %cst_47 = arith.constant dense<0.000000e+00> : vector<8x16xf32>
    %141 = tpu.matmul %140, %124, %cst_47 {dimension_numbers = #tpu.dot_dimension_numbers<[1], [0], [0], [1], [0, 0, 1, 1], [], []>} : vector<8x8xbf16>, vector<8x16xbf16>, vector<8x16xf32> -> vector<8x16xf32>
    %142 = arith.truncf %141 : vector<8x16xf32> to vector<8x16xbf16>
    %c48 = arith.constant 48 : index
    %c0_48 = arith.constant 0 : index
    %143 = vector.load %arg6[%c48, %c0_48] : memref<64x64xbf16, #tpu.memory_space<vmem>>, vector<16x64xbf16>
    %cst_49 = arith.constant dense<0.000000e+00> : vector<8x64xf32>
    %144 = tpu.matmul %142, %143, %cst_49 {dimension_numbers = #tpu.dot_dimension_numbers<[1], [0], [0], [1], [0, 0, 1, 1], [], []>} : vector<8x16xbf16>, vector<16x64xbf16>, vector<8x64xf32> -> vector<8x64xf32>
    %145 = arith.addf %118, %144 : vector<8x64xf32>
    %c0_50 = arith.constant 0 : index
    %c0_51 = arith.constant 0 : index
    %c0_52 = arith.constant 0 : index
    %146 = vector.load %arg8[%c0_50, %c0_51, %c0_52] : memref<1x8x64xf32, #tpu.memory_space<vmem>>, vector<1x8x64xf32>
    %147 = vector.shape_cast %146 : vector<1x8x64xf32> to vector<8x64xf32>
    %148 = vector.shape_cast %145 : vector<8x64xf32> to vector<1x8x64xf32>
    tpu.vector_store %arg8[%c0_50, %c0_51, %c0_52], %148 {strides = array<i32>} : memref<1x8x64xf32, #tpu.memory_space<vmem>>, vector<1x8x64xf32>,
    return
  }
  func.func @transform_0(%arg0: i32) -> (i32, i32, i32) {
    %c0_i32 = arith.constant 0 : i32
    %c0_i32_0 = arith.constant 0 : i32
    %c0_i32_1 = arith.constant 0 : i32
    return %arg0, %c0_i32, %c0_i32_0 : i32, i32, i32
  }
  func.func @transform_1(%arg0: i32) -> (i32, i32) {
    %c0_i32 = arith.constant 0 : i32
    %c0_i32_0 = arith.constant 0 : i32
    %c0_i32_1 = arith.constant 0 : i32
    return %c0_i32, %c0_i32_0 : i32, i32
  }
  func.func @transform_2(%arg0: i32) -> (i32, i32) {
    %c0_i32 = arith.constant 0 : i32
    %c0_i32_0 = arith.constant 0 : i32
    %c0_i32_1 = arith.constant 0 : i32
    return %c0_i32, %c0_i32_0 : i32, i32
  }
  func.func @transform_3(%arg0: i32) -> (i32, i32) {
    %c0_i32 = arith.constant 0 : i32
    %c0_i32_0 = arith.constant 0 : i32
    %c0_i32_1 = arith.constant 0 : i32
    return %c0_i32, %c0_i32_0 : i32, i32
  }
  func.func @transform_4(%arg0: i32) -> (i32, i32) {
    %c0_i32 = arith.constant 0 : i32
    %c0_i32_0 = arith.constant 0 : i32
    %c0_i32_1 = arith.constant 0 : i32
    return %c0_i32, %c0_i32_0 : i32, i32
  }
  func.func @transform_5(%arg0: i32) -> (i32, i32) {
    %c0_i32 = arith.constant 0 : i32
    %c0_i32_0 = arith.constant 0 : i32
    %c0_i32_1 = arith.constant 0 : i32
    return %c0_i32, %c0_i32_0 : i32, i32
  }
  func.func @transform_6(%arg0: i32) -> (i32, i32) {
    %c0_i32 = arith.constant 0 : i32
    %c0_i32_0 = arith.constant 0 : i32
    %c0_i32_1 = arith.constant 0 : i32
    return %c0_i32, %c0_i32_0 : i32, i32
  }
  func.func @transform_7(%arg0: i32) -> (i32, i32, i32) {
    %c0_i32 = arith.constant 0 : i32
    %c0_i32_0 = arith.constant 0 : i32
    %c0_i32_1 = arith.constant 0 : i32
    return %arg0, %c0_i32, %c0_i32_0 : i32, i32, i32
  }
}

module attributes {stable_mosaic.version = 11 : i64} {
  func.func @_mlp_block_kernel(%arg0: i32, %arg1: memref<1x8x64xf32, #tpu.memory_space<vmem>>, %arg2: memref<1x64xf32, #tpu.memory_space<vmem>>, %arg3: memref<1x64xf32, #tpu.memory_space<vmem>>, %arg4: memref<64x256xbf16, #tpu.memory_space<vmem>>, %arg5: memref<1x256xf32, #tpu.memory_space<vmem>>, %arg6: memref<256x64xbf16, #tpu.memory_space<vmem>>, %arg7: memref<1x64xf32, #tpu.memory_space<vmem>>, %arg8: memref<1x8x64xf32, #tpu.memory_space<vmem>>) attributes {dimension_semantics = [#tpu.dimension_semantics<parallel>], iteration_bounds = array<i64: 2>, scalar_prefetch = 0 : i64, scratch_operands = 0 : i64, tpu.core_type = #tpu.core_type<tc>, window_params = [{transform_indices = @transform_0, window_bounds = array<i64: 1, 8, 64>}, {pipeline_mode = #tpu.pipeline_mode<synchronous>, transform_indices = @transform_1, window_bounds = array<i64: 1, 64>}, {pipeline_mode = #tpu.pipeline_mode<synchronous>, transform_indices = @transform_2, window_bounds = array<i64: 1, 64>}, {pipeline_mode = #tpu.pipeline_mode<synchronous>, transform_indices = @transform_3, window_bounds = array<i64: 64, 256>}, {pipeline_mode = #tpu.pipeline_mode<synchronous>, transform_indices = @transform_4, window_bounds = array<i64: 1, 256>}, {pipeline_mode = #tpu.pipeline_mode<synchronous>, transform_indices = @transform_5, window_bounds = array<i64: 256, 64>}, {pipeline_mode = #tpu.pipeline_mode<synchronous>, transform_indices = @transform_6, window_bounds = array<i64: 1, 64>}, {transform_indices = @transform_7, window_bounds = array<i64: 1, 8, 64>}]} {
    %c0 = arith.constant 0 : index
    %c0_0 = arith.constant 0 : index
    %c0_1 = arith.constant 0 : index
    %0 = vector.load %arg1[%c0, %c0_0, %c0_1] : memref<1x8x64xf32, #tpu.memory_space<vmem>>, vector<1x8x64xf32>
    %1 = vector.shape_cast %0 : vector<1x8x64xf32> to vector<8x64xf32>
    %c0_2 = arith.constant 0 : index
    %c0_3 = arith.constant 0 : index
    %2 = vector.load %arg2[%c0_2, %c0_3] : memref<1x64xf32, #tpu.memory_space<vmem>>, vector<1x64xf32>
    %c0_4 = arith.constant 0 : index
    %c0_5 = arith.constant 0 : index
    %3 = vector.load %arg3[%c0_4, %c0_5] : memref<1x64xf32, #tpu.memory_space<vmem>>, vector<1x64xf32>
    %cst = arith.constant dense<0.000000e+00> : vector<8xf32>
    %4 = vector.multi_reduction <add>, %1, %cst [1] : vector<8x64xf32> to vector<8xf32>
    %5 = vector.shape_cast %4 : vector<8xf32> to vector<8x1xf32>
    %cst_6 = arith.constant 6.400000e+01 : f32
    %6 = vector.broadcast %cst_6 : f32 to vector<8x1xf32>
    %7 = arith.divf %5, %6 : vector<8x1xf32>
    %8 = vector.broadcast %7 : vector<8x1xf32> to vector<8x64xf32>
    %9 = arith.subf %1, %8 : vector<8x64xf32>
    %10 = arith.mulf %9, %9 : vector<8x64xf32>
    %cst_7 = arith.constant dense<0.000000e+00> : vector<8xf32>
    %11 = vector.multi_reduction <add>, %10, %cst_7 [1] : vector<8x64xf32> to vector<8xf32>
    %12 = vector.shape_cast %11 : vector<8xf32> to vector<8x1xf32>
    %cst_8 = arith.constant 6.400000e+01 : f32
    %13 = vector.broadcast %cst_8 : f32 to vector<8x1xf32>
    %14 = arith.divf %12, %13 : vector<8x1xf32>
    %15 = vector.broadcast %7 : vector<8x1xf32> to vector<8x64xf32>
    %16 = arith.subf %1, %15 : vector<8x64xf32>
    %cst_9 = arith.constant 9.99999997E-7 : f32
    %17 = vector.broadcast %cst_9 : f32 to vector<8x1xf32>
    %18 = arith.addf %14, %17 : vector<8x1xf32>
    %19 = math.rsqrt %18 : vector<8x1xf32>
    %20 = vector.broadcast %19 : vector<8x1xf32> to vector<8x64xf32>
    %21 = arith.mulf %16, %20 : vector<8x64xf32>
    %22 = vector.broadcast %2 : vector<1x64xf32> to vector<8x64xf32>
    %23 = arith.mulf %21, %22 : vector<8x64xf32>
    %24 = vector.broadcast %3 : vector<1x64xf32> to vector<8x64xf32>
    %25 = arith.addf %23, %24 : vector<8x64xf32>
    %26 = arith.truncf %25 : vector<8x64xf32> to vector<8x64xbf16>
    %c0_10 = arith.constant 0 : index
    %c0_11 = arith.constant 0 : index
    %27 = vector.load %arg4[%c0_10, %c0_11] : memref<64x256xbf16, #tpu.memory_space<vmem>>, vector<64x256xbf16>
    %cst_12 = arith.constant dense<0.000000e+00> : vector<8x256xf32>
    %28 = tpu.matmul %26, %27, %cst_12 {dimension_numbers = #tpu.dot_dimension_numbers<[1], [0], [0], [1], [0, 0, 1, 1], [], []>} : vector<8x64xbf16>, vector<64x256xbf16>, vector<8x256xf32> -> vector<8x256xf32>
    %c0_13 = arith.constant 0 : index
    %c0_14 = arith.constant 0 : index
    %29 = vector.load %arg5[%c0_13, %c0_14] : memref<1x256xf32, #tpu.memory_space<vmem>>, vector<1x256xf32>
    %30 = vector.broadcast %29 : vector<1x256xf32> to vector<8x256xf32>
    %31 = arith.addf %28, %30 : vector<8x256xf32>
    %cst_15 = arith.constant 5.000000e-01 : f32
    %32 = vector.broadcast %cst_15 : f32 to vector<8x256xf32>
    %33 = arith.mulf %32, %31 : vector<8x256xf32>
    %cst_16 = arith.constant 0.707106769 : f32
    %34 = vector.broadcast %cst_16 : f32 to vector<8x256xf32>
    %35 = arith.mulf %31, %34 : vector<8x256xf32>
    %36 = math.erf %35 : vector<8x256xf32>
    %cst_17 = arith.constant 1.000000e+00 : f32
    %37 = vector.broadcast %cst_17 : f32 to vector<8x256xf32>
    %38 = arith.addf %37, %36 : vector<8x256xf32>
    %39 = arith.mulf %33, %38 : vector<8x256xf32>
    %40 = arith.truncf %39 : vector<8x256xf32> to vector<8x256xbf16>
    %c0_18 = arith.constant 0 : index
    %c0_19 = arith.constant 0 : index
    %41 = vector.load %arg6[%c0_18, %c0_19] : memref<256x64xbf16, #tpu.memory_space<vmem>>, vector<256x64xbf16>
    %cst_20 = arith.constant dense<0.000000e+00> : vector<8x64xf32>
    %42 = tpu.matmul %40, %41, %cst_20 {dimension_numbers = #tpu.dot_dimension_numbers<[1], [0], [0], [1], [0, 0, 1, 1], [], []>} : vector<8x256xbf16>, vector<256x64xbf16>, vector<8x64xf32> -> vector<8x64xf32>
    %c0_21 = arith.constant 0 : index
    %c0_22 = arith.constant 0 : index
    %43 = vector.load %arg7[%c0_21, %c0_22] : memref<1x64xf32, #tpu.memory_space<vmem>>, vector<1x64xf32>
    %44 = vector.broadcast %43 : vector<1x64xf32> to vector<8x64xf32>
    %45 = arith.addf %42, %44 : vector<8x64xf32>
    %46 = arith.addf %1, %45 : vector<8x64xf32>
    %c0_23 = arith.constant 0 : index
    %c0_24 = arith.constant 0 : index
    %c0_25 = arith.constant 0 : index
    %47 = vector.load %arg8[%c0_23, %c0_24, %c0_25] : memref<1x8x64xf32, #tpu.memory_space<vmem>>, vector<1x8x64xf32>
    %48 = vector.shape_cast %47 : vector<1x8x64xf32> to vector<8x64xf32>
    %49 = vector.shape_cast %46 : vector<8x64xf32> to vector<1x8x64xf32>
    tpu.vector_store %arg8[%c0_23, %c0_24, %c0_25], %49 {strides = array<i32>} : memref<1x8x64xf32, #tpu.memory_space<vmem>>, vector<1x8x64xf32>,
    return
  }
  func.func @transform_0(%arg0: i32) -> (i32, i32, i32) {
    %c0_i32 = arith.constant 0 : i32
    %c0_i32_0 = arith.constant 0 : i32
    %c0_i32_1 = arith.constant 0 : i32
    return %arg0, %c0_i32, %c0_i32_0 : i32, i32, i32
  }
  func.func @transform_1(%arg0: i32) -> (i32, i32) {
    %c0_i32 = arith.constant 0 : i32
    %c0_i32_0 = arith.constant 0 : i32
    %c0_i32_1 = arith.constant 0 : i32
    return %c0_i32, %c0_i32_0 : i32, i32
  }
  func.func @transform_2(%arg0: i32) -> (i32, i32) {
    %c0_i32 = arith.constant 0 : i32
    %c0_i32_0 = arith.constant 0 : i32
    %c0_i32_1 = arith.constant 0 : i32
    return %c0_i32, %c0_i32_0 : i32, i32
  }
  func.func @transform_3(%arg0: i32) -> (i32, i32) {
    %c0_i32 = arith.constant 0 : i32
    %c0_i32_0 = arith.constant 0 : i32
    %c0_i32_1 = arith.constant 0 : i32
    return %c0_i32, %c0_i32_0 : i32, i32
  }
  func.func @transform_4(%arg0: i32) -> (i32, i32) {
    %c0_i32 = arith.constant 0 : i32
    %c0_i32_0 = arith.constant 0 : i32
    %c0_i32_1 = arith.constant 0 : i32
    return %c0_i32, %c0_i32_0 : i32, i32
  }
  func.func @transform_5(%arg0: i32) -> (i32, i32) {
    %c0_i32 = arith.constant 0 : i32
    %c0_i32_0 = arith.constant 0 : i32
    %c0_i32_1 = arith.constant 0 : i32
    return %c0_i32, %c0_i32_0 : i32, i32
  }
  func.func @transform_6(%arg0: i32) -> (i32, i32) {
    %c0_i32 = arith.constant 0 : i32
    %c0_i32_0 = arith.constant 0 : i32
    %c0_i32_1 = arith.constant 0 : i32
    return %c0_i32, %c0_i32_0 : i32, i32
  }
  func.func @transform_7(%arg0: i32) -> (i32, i32, i32) {
    %c0_i32 = arith.constant 0 : i32
    %c0_i32_0 = arith.constant 0 : i32
    %c0_i32_1 = arith.constant 0 : i32
    return %arg0, %c0_i32, %c0_i32_0 : i32, i32, i32
  }
}

module attributes {stable_mosaic.version = 11 : i64} {
  func.func @_head_kernel(%arg0: i32, %arg1: memref<1x8x64xf32, #tpu.memory_space<vmem>>, %arg2: memref<1x64xf32, #tpu.memory_space<vmem>>, %arg3: memref<1x64xf32, #tpu.memory_space<vmem>>, %arg4: memref<64x16xbf16, #tpu.memory_space<vmem>>, %arg5: memref<1x16xf32, #tpu.memory_space<vmem>>, %arg6: memref<1x1x16xf32, #tpu.memory_space<vmem>>) attributes {dimension_semantics = [#tpu.dimension_semantics<parallel>], iteration_bounds = array<i64: 2>, scalar_prefetch = 0 : i64, scratch_operands = 0 : i64, tpu.core_type = #tpu.core_type<tc>, window_params = [{transform_indices = @transform_0, window_bounds = array<i64: 1, 8, 64>}, {pipeline_mode = #tpu.pipeline_mode<synchronous>, transform_indices = @transform_1, window_bounds = array<i64: 1, 64>}, {pipeline_mode = #tpu.pipeline_mode<synchronous>, transform_indices = @transform_2, window_bounds = array<i64: 1, 64>}, {pipeline_mode = #tpu.pipeline_mode<synchronous>, transform_indices = @transform_3, window_bounds = array<i64: 64, 16>}, {pipeline_mode = #tpu.pipeline_mode<synchronous>, transform_indices = @transform_4, window_bounds = array<i64: 1, 16>}, {transform_indices = @transform_5, window_bounds = array<i64: 1, 1, 16>}]} {
    %c0 = arith.constant 0 : index
    %c0_0 = arith.constant 0 : index
    %c0_1 = arith.constant 0 : index
    %0 = vector.load %arg1[%c0, %c0_0, %c0_1] : memref<1x8x64xf32, #tpu.memory_space<vmem>>, vector<1x1x64xf32>
    %1 = vector.shape_cast %0 : vector<1x1x64xf32> to vector<1x64xf32>
    %c0_2 = arith.constant 0 : index
    %c0_3 = arith.constant 0 : index
    %2 = vector.load %arg2[%c0_2, %c0_3] : memref<1x64xf32, #tpu.memory_space<vmem>>, vector<1x64xf32>
    %c0_4 = arith.constant 0 : index
    %c0_5 = arith.constant 0 : index
    %3 = vector.load %arg3[%c0_4, %c0_5] : memref<1x64xf32, #tpu.memory_space<vmem>>, vector<1x64xf32>
    %cst = arith.constant dense<0.000000e+00> : vector<1xf32>
    %4 = vector.multi_reduction <add>, %1, %cst [1] : vector<1x64xf32> to vector<1xf32>
    %5 = vector.shape_cast %4 : vector<1xf32> to vector<1x1xf32>
    %cst_6 = arith.constant 6.400000e+01 : f32
    %6 = vector.broadcast %cst_6 : f32 to vector<1x1xf32>
    %7 = arith.divf %5, %6 : vector<1x1xf32>
    %8 = vector.broadcast %7 : vector<1x1xf32> to vector<1x64xf32>
    %9 = arith.subf %1, %8 : vector<1x64xf32>
    %10 = arith.mulf %9, %9 : vector<1x64xf32>
    %cst_7 = arith.constant dense<0.000000e+00> : vector<1xf32>
    %11 = vector.multi_reduction <add>, %10, %cst_7 [1] : vector<1x64xf32> to vector<1xf32>
    %12 = vector.shape_cast %11 : vector<1xf32> to vector<1x1xf32>
    %cst_8 = arith.constant 6.400000e+01 : f32
    %13 = vector.broadcast %cst_8 : f32 to vector<1x1xf32>
    %14 = arith.divf %12, %13 : vector<1x1xf32>
    %15 = vector.broadcast %7 : vector<1x1xf32> to vector<1x64xf32>
    %16 = arith.subf %1, %15 : vector<1x64xf32>
    %cst_9 = arith.constant 9.99999997E-7 : f32
    %17 = vector.broadcast %cst_9 : f32 to vector<1x1xf32>
    %18 = arith.addf %14, %17 : vector<1x1xf32>
    %19 = math.rsqrt %18 : vector<1x1xf32>
    %20 = vector.broadcast %19 : vector<1x1xf32> to vector<1x64xf32>
    %21 = arith.mulf %16, %20 : vector<1x64xf32>
    %22 = arith.mulf %21, %2 : vector<1x64xf32>
    %23 = arith.addf %22, %3 : vector<1x64xf32>
    %24 = arith.truncf %23 : vector<1x64xf32> to vector<1x64xbf16>
    %c0_10 = arith.constant 0 : index
    %c0_11 = arith.constant 0 : index
    %25 = vector.load %arg4[%c0_10, %c0_11] : memref<64x16xbf16, #tpu.memory_space<vmem>>, vector<64x16xbf16>
    %cst_12 = arith.constant dense<0.000000e+00> : vector<1x16xf32>
    %26 = tpu.matmul %24, %25, %cst_12 {dimension_numbers = #tpu.dot_dimension_numbers<[1], [0], [0], [1], [0, 0, 1, 1], [], []>} : vector<1x64xbf16>, vector<64x16xbf16>, vector<1x16xf32> -> vector<1x16xf32>
    %c0_13 = arith.constant 0 : index
    %c0_14 = arith.constant 0 : index
    %27 = vector.load %arg5[%c0_13, %c0_14] : memref<1x16xf32, #tpu.memory_space<vmem>>, vector<1x16xf32>
    %28 = arith.addf %26, %27 : vector<1x16xf32>
    %c0_15 = arith.constant 0 : index
    %c0_16 = arith.constant 0 : index
    %c0_17 = arith.constant 0 : index
    %29 = vector.load %arg6[%c0_15, %c0_16, %c0_17] : memref<1x1x16xf32, #tpu.memory_space<vmem>>, vector<1x1x16xf32>
    %30 = vector.shape_cast %29 : vector<1x1x16xf32> to vector<1x16xf32>
    %31 = vector.shape_cast %28 : vector<1x16xf32> to vector<1x1x16xf32>
    tpu.vector_store %arg6[%c0_15, %c0_16, %c0_17], %31 {strides = array<i32>} : memref<1x1x16xf32, #tpu.memory_space<vmem>>, vector<1x1x16xf32>,
    return
  }
  func.func @transform_0(%arg0: i32) -> (i32, i32, i32) {
    %c0_i32 = arith.constant 0 : i32
    %c0_i32_0 = arith.constant 0 : i32
    %c0_i32_1 = arith.constant 0 : i32
    return %arg0, %c0_i32, %c0_i32_0 : i32, i32, i32
  }
  func.func @transform_1(%arg0: i32) -> (i32, i32) {
    %c0_i32 = arith.constant 0 : i32
    %c0_i32_0 = arith.constant 0 : i32
    %c0_i32_1 = arith.constant 0 : i32
    return %c0_i32, %c0_i32_0 : i32, i32
  }
  func.func @transform_2(%arg0: i32) -> (i32, i32) {
    %c0_i32 = arith.constant 0 : i32
    %c0_i32_0 = arith.constant 0 : i32
    %c0_i32_1 = arith.constant 0 : i32
    return %c0_i32, %c0_i32_0 : i32, i32
  }
  func.func @transform_3(%arg0: i32) -> (i32, i32) {
    %c0_i32 = arith.constant 0 : i32
    %c0_i32_0 = arith.constant 0 : i32
    %c0_i32_1 = arith.constant 0 : i32
    return %c0_i32, %c0_i32_0 : i32, i32
  }
  func.func @transform_4(%arg0: i32) -> (i32, i32) {
    %c0_i32 = arith.constant 0 : i32
    %c0_i32_0 = arith.constant 0 : i32
    %c0_i32_1 = arith.constant 0 : i32
    return %c0_i32, %c0_i32_0 : i32, i32
  }
  func.func @transform_5(%arg0: i32) -> (i32, i32, i32) {
    %c0_i32 = arith.constant 0 : i32
    %c0_i32_0 = arith.constant 0 : i32
    %c0_i32_1 = arith.constant 0 : i32
    return %arg0, %c0_i32, %c0_i32_0 : i32, i32, i32
  }
}

</mosaic_0001>

<llo_original>
// kernel: _lambda_.7
$region0: #{_lambda_.7}
  #allocation0 [shape = 'u32[]', space=smem, size = 0x4, offset = 0x4, fixed_abs, tag = 'smem constant byte address 0x4 - core index']
  #allocation1 [shape = 'u32[144,128]{1,0:T(1,128)}', space=vmem, size = 0x12000, scoped, tag = 'internal scratch']
  %s0 = inlined_call_operand.vmem [shape: f32[2,8,64], index: 0, kind: input, shape index: {}, may-alias: {0,7}]
  %s1 = inlined_call_operand.vmem [shape: f32[1,64], index: 1, kind: input, shape index: {}]
  %s2 = inlined_call_operand.vmem [shape: f32[1,64], index: 2, kind: input, shape index: {}]
  %s3 = inlined_call_operand.vmem [shape: bf16[64,192], index: 3, kind: input, shape index: {}]
  %s4 = inlined_call_operand.vmem [shape: f32[1,192], index: 4, kind: input, shape index: {}]
  %s5 = inlined_call_operand.vmem [shape: bf16[64,64], index: 5, kind: input, shape index: {}]
  %s6 = inlined_call_operand.vmem [shape: f32[1,64], index: 6, kind: input, shape index: {}]
  %s7 = inlined_call_operand.vmem [shape: f32[2,8,64], index: 7, kind: output, shape index: {}, may-alias: {0,7}]
  %s8 = sld [smem:[#allocation0]]
  $region61: #{_lambda_.7} parent=0
    _
  %s10 = ssub.s32 1, %s8
  %s11 = scalar_select 0, %s10, %s8
  loop: start=0, step=1, limit=4
  $region2: #{_lambda_.7} parent=0 // loop_pre_header
    _
  $region3: #{_lambda_.7} parent=0 // loop_header
    %s13 = sphi 0, %s17
    %p14 = scmp.ge.s32.totalorder %s13, 4
    %s23 = sphi 0, %s25
    %s26 = sphi 0, %s23
    %s27 = sphi 0, %s26
    %s43 = sphi 0, %s27
    %s47 = sphi 0, %s47
    %s49 = sphi 0, %s47
    %s50 = sphi 0, %s49
    %s64 = sphi 0, %s50
    %s68 = sphi 0, %s68
    %s70 = sphi 0, %s68
    %s71 = sphi 0, %s70
    %s85 = sphi 0, %s71
    %s89 = sphi 0, %s89
    %s91 = sphi 0, %s89
    %s92 = sphi 0, %s91
    %s106 = sphi 0, %s92
    %s110 = sphi 0, %s110
    %s112 = sphi 0, %s110
    %s113 = sphi 0, %s112
    %s127 = sphi 0, %s113
    %s131 = sphi 0, %s131
    %s133 = sphi 0, %s131
    %s134 = sphi 0, %s133
    %s148 = sphi 0, %s134
    %s152 = sphi 0, %s152
    %s154 = sphi 0, %s152
    %s155 = sphi 0, %s154
    %s169 = sphi 0, %s155
    %s175 = sphi 0, %s177
    %s178 = sphi 0, %s175
    %s179 = sphi 0, %s178
    %s195 = sphi 0, %s179
  $region4: #{_lambda_.7} parent=0 // loop_header_branch
    %16 = sbr.rel (%p14) target = $region8
  $region5: #{_lambda_.7} parent=0 // loop_body
    %s18 = ssub.s32 %s13, 1
    %s19 = ssub.s32 %s13, 2
    %s20 = sadd.s32 %s13, 1
    %s21 = ssub.s32 %s13, %s20
    %p22 = scmp.eq.s32.totalorder %s21, 0
    %s24 = sadd.s32 %s23, 1
    %s25 = scalar_select %p22, %s23, %s24
    %p28 = pneg %p22
    %p29 = scmp.eq.s32.totalorder %s13, 1
    %p30 = por %p28, %p29
    %p31 = scmp.ne.s32.totalorder %s23, %s26
    %p32 = scmp.eq.s32.totalorder %s13, 0
    %p33 = por %p31, %p32
    %p34 = scmp.ne.s32.totalorder %s23, %s26
    %p35 = scmp.eq.s32.totalorder %s18, 1
    %p36 = por %p34, %p35
    %p37 = scmp.ne.s32.totalorder %s26, %s27
    %p38 = scmp.eq.s32.totalorder %s18, 0
    %p39 = por %p37, %p38
    %p40 = scmp.ne.s32.totalorder %s26, %s27
    %p41 = scmp.eq.s32.totalorder %s19, 1
    %p42 = por %p40, %p41
    %p44 = scmp.ne.s32.totalorder %s27, %s43
    %p45 = scmp.eq.s32.totalorder %s19, 0
    %p46 = por %p44, %p45
    %s48 = sadd.s32 %s47, 1
    %p51 = scmp.eq.s32.totalorder %s13, 1
    %p52 = scmp.ne.s32.totalorder %s47, %s49
    %p53 = scmp.eq.s32.totalorder %s13, 0
    %p54 = por %p52, %p53
    %p55 = scmp.ne.s32.totalorder %s47, %s49
    %p56 = scmp.eq.s32.totalorder %s18, 1
    %p57 = por %p55, %p56
    %p58 = scmp.ne.s32.totalorder %s49, %s50
    %p59 = scmp.eq.s32.totalorder %s18, 0
    %p60 = por %p58, %p59
    %p61 = scmp.ne.s32.totalorder %s49, %s50
    %p62 = scmp.eq.s32.totalorder %s19, 1
    %p63 = por %p61, %p62
    %p65 = scmp.ne.s32.totalorder %s50, %s64
    %p66 = scmp.eq.s32.totalorder %s19, 0
    %p67 = por %p65, %p66
    %s69 = sadd.s32 %s68, 1
    %p72 = scmp.eq.s32.totalorder %s13, 1
    %p73 = scmp.ne.s32.totalorder %s68, %s70
    %p74 = scmp.eq.s32.totalorder %s13, 0
    %p75 = por %p73, %p74
    %p76 = scmp.ne.s32.totalorder %s68, %s70
    %p77 = scmp.eq.s32.totalorder %s18, 1
    %p78 = por %p76, %p77
    %p79 = scmp.ne.s32.totalorder %s70, %s71
    %p80 = scmp.eq.s32.totalorder %s18, 0
    %p81 = por %p79, %p80
    %p82 = scmp.ne.s32.totalorder %s70, %s71
    %p83 = scmp.eq.s32.totalorder %s19, 1
    %p84 = por %p82, %p83
    %p86 = scmp.ne.s32.totalorder %s71, %s85
    %p87 = scmp.eq.s32.totalorder %s19, 0
    %p88 = por %p86, %p87
    %s90 = sadd.s32 %s89, 1
    %p93 = scmp.eq.s32.totalorder %s13, 1
    %p94 = scmp.ne.s32.totalorder %s89, %s91
    %p95 = scmp.eq.s32.totalorder %s13, 0
    %p96 = por %p94, %p95
    %p97 = scmp.ne.s32.totalorder %s89, %s91
    %p98 = scmp.eq.s32.totalorder %s18, 1
    %p99 = por %p97, %p98
    %p100 = scmp.ne.s32.totalorder %s91, %s92
    %p101 = scmp.eq.s32.totalorder %s18, 0
    %p102 = por %p100, %p101
    %p103 = scmp.ne.s32.totalorder %s91, %s92
    %p104 = scmp.eq.s32.totalorder %s19, 1
    %p105 = por %p103, %p104
    %p107 = scmp.ne.s32.totalorder %s92, %s106
    %p108 = scmp.eq.s32.totalorder %s19, 0
    %p109 = por %p107, %p108
    %s111 = sadd.s32 %s110, 1
    %p114 = scmp.eq.s32.totalorder %s13, 1
    %p115 = scmp.ne.s32.totalorder %s110, %s112
    %p116 = scmp.eq.s32.totalorder %s13, 0
    %p117 = por %p115, %p116
    %p118 = scmp.ne.s32.totalorder %s110, %s112
    %p119 = scmp.eq.s32.totalorder %s18, 1
    %p120 = por %p118, %p119
    %p121 = scmp.ne.s32.totalorder %s112, %s113
    %p122 = scmp.eq.s32.totalorder %s18, 0
    %p123 = por %p121, %p122
    %p124 = scmp.ne.s32.totalorder %s112, %s113
    %p125 = scmp.eq.s32.totalorder %s19, 1
    %p126 = por %p124, %p125
    %p128 = scmp.ne.s32.totalorder %s113, %s127
    %p129 = scmp.eq.s32.totalorder %s19, 0
    %p130 = por %p128, %p129
    %s132 = sadd.s32 %s131, 1
    %p135 = scmp.eq.s32.totalorder %s13, 1
    %p136 = scmp.ne.s32.totalorder %s131, %s133
    %p137 = scmp.eq.s32.totalorder %s13, 0
    %p138 = por %p136, %p137
    %p139 = scmp.ne.s32.totalorder %s131, %s133
    %p140 = scmp.eq.s32.totalorder %s18, 1
    %p141 = por %p139, %p140
    %p142 = scmp.ne.s32.totalorder %s133, %s134
    %p143 = scmp.eq.s32.totalorder %s18, 0
    %p144 = por %p142, %p143
    %p145 = scmp.ne.s32.totalorder %s133, %s134
    %p146 = scmp.eq.s32.totalorder %s19, 1
    %p147 = por %p145, %p146
    %p149 = scmp.ne.s32.totalorder %s134, %s148
    %p150 = scmp.eq.s32.totalorder %s19, 0
    %p151 = por %p149, %p150
    %s153 = sadd.s32 %s152, 1
    %p156 = scmp.eq.s32.totalorder %s13, 1
    %p157 = scmp.ne.s32.totalorder %s152, %s154
    %p158 = scmp.eq.s32.totalorder %s13, 0
    %p159 = por %p157, %p158
    %p160 = scmp.ne.s32.totalorder %s152, %s154
    %p161 = scmp.eq.s32.totalorder %s18, 1
    %p162 = por %p160, %p161
    %p163 = scmp.ne.s32.totalorder %s154, %s155
    %p164 = scmp.eq.s32.totalorder %s18, 0
    %p165 = por %p163, %p164
    %p166 = scmp.ne.s32.totalorder %s154, %s155
    %p167 = scmp.eq.s32.totalorder %s19, 1
    %p168 = por %p166, %p167
    %p170 = scmp.ne.s32.totalorder %s155, %s169
    %p171 = scmp.eq.s32.totalorder %s19, 0
    %p172 = por %p170, %p171
    %s173 = ssub.s32 %s13, %s20
    %p174 = scmp.eq.s32.totalorder %s173, 0
    %s176 = sadd.s32 %s175, 1
    %s177 = scalar_select %p174, %s175, %s176
    %p180 = pneg %p174
    %p181 = scmp.eq.s32.totalorder %s13, 1
    %p182 = por %p180, %p181
    %p183 = scmp.ne.s32.totalorder %s175, %s178
    %p184 = scmp.eq.s32.totalorder %s13, 0
    %p185 = por %p183, %p184
    %p186 = scmp.ne.s32.totalorder %s175, %s178
    %p187 = scmp.eq.s32.totalorder %s18, 1
    %p188 = por %p186, %p187
    %p189 = scmp.ne.s32.totalorder %s178, %s179
    %p190 = scmp.eq.s32.totalorder %s18, 0
    %p191 = por %p189, %p190
    %p192 = scmp.ne.s32.totalorder %s178, %s179
    %p193 = scmp.eq.s32.totalorder %s19, 1
    %p194 = por %p192, %p193
    %p196 = scmp.ne.s32.totalorder %s179, %s195
    %p197 = scmp.eq.s32.totalorder %s19, 0
    %p198 = por %p196, %p197
    %p199 = scmp.le.s32.totalorder 1, %s13
    %p200 = scmp.lt.s32.totalorder %s13, 3
    %p201 = pnand %p199, %p200
    %p202 = pneg %p201
    // Predicated region
    $region9: #{_lambda_.7} parent=5 // pred_check
      _
    $region10: #{_lambda_.7} parent=5 // pred_check_branch
      %204 = sbr.rel (%p201) target = $region12
    $region11: #{_lambda_.7} parent=5 // pred_region
      %s205 = ssub.s32 %s13, 1
      // Predicated region
      $region13: #{_lambda_.7} parent=11 // pred_check
        %p206 = pneg %p60
      $region14: #{_lambda_.7} parent=11 // pred_check_branch
        %208 = sbr.rel (%p206) target = $region16
      $region15: #{_lambda_.7} parent=11 // pred_region
        _
      $region16: #{_lambda_.7} parent=11 // pred_fallthru
        _
      // Predicated region
      $region17: #{_lambda_.7} parent=11 // pred_check
        %p209 = pneg %p81
      $region18: #{_lambda_.7} parent=11 // pred_check_branch
        %211 = sbr.rel (%p209) target = $region20
      $region19: #{_lambda_.7} parent=11 // pred_region
        _
      $region20: #{_lambda_.7} parent=11 // pred_fallthru
        _
      // Predicated region
      $region21: #{_lambda_.7} parent=11 // pred_check
        %p212 = pneg %p102
      $region22: #{_lambda_.7} parent=11 // pred_check_branch
        %214 = sbr.rel (%p212) target = $region24
      $region23: #{_lambda_.7} parent=11 // pred_region
        _
      $region24: #{_lambda_.7} parent=11 // pred_fallthru
        _
      // Predicated region
      $region25: #{_lambda_.7} parent=11 // pred_check
        %p215 = pneg %p123
      $region26: #{_lambda_.7} parent=11 // pred_check_branch
        %217 = sbr.rel (%p215) target = $region28
      $region27: #{_lambda_.7} parent=11 // pred_region
        _
      $region28: #{_lambda_.7} parent=11 // pred_fallthru
        _
      // Predicated region
      $region29: #{_lambda_.7} parent=11 // pred_check
        %p218 = pneg %p144
      $region30: #{_lambda_.7} parent=11 // pred_check_branch
        %220 = sbr.rel (%p218) target = $region32
      $region31: #{_lambda_.7} parent=11 // pred_region
        _
      $region32: #{_lambda_.7} parent=11 // pred_fallthru
        _
      // Predicated region
      $region33: #{_lambda_.7} parent=11 // pred_check
        %p221 = pneg %p165
      $region34: #{_lambda_.7} parent=11 // pred_check_branch
        %223 = sbr.rel (%p221) target = $region36
      $region35: #{_lambda_.7} parent=11 // pred_region
        _
      $region36: #{_lambda_.7} parent=11 // pred_fallthru
        _
    $region12: #{_lambda_.7} parent=5 // pred_fallthru
      _
    %p224 = scmp.lt.s32.totalorder %s13, 2
    // Predicated region
    $region37: #{_lambda_.7} parent=5 // pred_check
      %p225 = pneg %p224
    $region38: #{_lambda_.7} parent=5 // pred_check_branch
      %227 = sbr.rel (%p225) target = $region40
    $region39: #{_lambda_.7} parent=5 // pred_region
      // Predicated region
      $region41: #{_lambda_.7} parent=39 // pred_check
        %p228 = pneg %p33
      $region42: #{_lambda_.7} parent=39 // pred_check_branch
        %230 = sbr.rel (%p228) target = $region44
      $region43: #{_lambda_.7} parent=39 // pred_region
        %p231 = scmp.lt.s32.totalorder %s13, 1
        %s232 = scalar_select %p231, %s13, 1
        %s233 = smul.addr %s232, 8
        %s234 = scalar_lea.vmem %s0, %s233
      $region44: #{_lambda_.7} parent=39 // pred_fallthru
        _
    $region40: #{_lambda_.7} parent=5 // pred_fallthru
      _
    %p235 = scmp.le.s32.totalorder 1, %s13
    %p236 = scmp.lt.s32.totalorder %s13, 3
    %p237 = pnand %p235, %p236
    %p238 = pneg %p237
    // Predicated region
    $region45: #{_lambda_.7} parent=5 // pred_check
      _
    $region46: #{_lambda_.7} parent=5 // pred_check_branch
      %240 = sbr.rel (%p237) target = $region48
    $region47: #{_lambda_.7} parent=5 // pred_region
      %s241 = ssub.s32 %s13, 1
      %p242 = scmp.lt.s32.totalorder %s18, 1
      %s243 = scalar_select %p242, %s18, 1
      %s244 = smul.addr %s243, 8
      %s245 = scalar_lea.vmem %s0, %s244
      %p246 = pneg %p39
      %p247 = pneg %p36
      %p248 = pneg %p60
      %p249 = pneg %p57
      %p250 = pneg %p81
      %p251 = pneg %p78
      %p252 = pneg %p102
      %p253 = pneg %p99
      %p254 = pneg %p123
      %p255 = pneg %p120
      %p256 = pneg %p144
      %p257 = pneg %p141
      %p258 = pneg %p165
      %p259 = pneg %p162
      %p260 = pneg %p191
      %p261 = pneg %p188
      %p262 = scmp.lt.s32.totalorder %s18, 1
      %s263 = scalar_select %p262, %s18, 1
      %s264 = smul.addr %s263, 8
      %s265 = scalar_lea.vmem %s7, %s264
      %p266 = scmp.lt.s32.totalorder %s18, 1
      %s267 = scalar_select %p266, %s18, 1
      %s268 = smul.addr %s267, 8
      %s269 = scalar_lea.vmem %s0, %s268
      %p270 = scmp.lt.s32.totalorder %s18, 1
      %s271 = scalar_select %p270, %s18, 1
      %s272 = smul.addr %s271, 8
      %s273 = scalar_lea.vmem %s7, %s272
      %v275 = vld [vmem:[%s269] sm:$0xff]
      %v276 = vld [vmem:[%s1] sm:$0x1]
      %v277 = vld [vmem:[%s2] sm:$0x1]
      %vm278 = vcmask 523264
      %v279 = vsel %vm278, %v275, 0.0
      %280 = vadd.xlane.f32.xlu0 %v279
      %v281 = vpop.xlane.xlu0 %280
      %v282 = vrcp.pop 64.0
      %v283 = vmul.f32 %v281, %v282
      %v284 = vsub.f32 %v275, %v283
      %v285 = vmul.f32 %v284, %v284
      %v286 = vsel %vm278, %v285, 0.0
      %287 = vadd.xlane.f32.xlu0 %v286
      %v288 = vpop.xlane.xlu0 %287
      %v289 = vmul.f32 %v288, %v282
      %v290 = vadd.f32 %v289, 1e-06
      %v291 = vrsqrt.pop %v290
      %v292 = vmul.f32 %v284, %v291
      %v294 = vlaneseq
      %v295 = vshrl.u32 %v294, 7
      %v296 = vsub.s32 0, %v295
      %v297 = vrot.slane %v276, %v296
      %v299 = vmul.f32 %v292, %v297
      %v301 = vlaneseq
      %v302 = vshrl.u32 %v301, 7
      %v303 = vsub.s32 0, %v302
      %v304 = vrot.slane %v277, %v303
      %v306 = vadd.f32 %v299, %v304
      %v307 = vpack.c.bf16 %v306, %v306
      %v308 = vld [vmem:[%s3] sm:$0xff]
      %v309 = vld [vmem:[%s3 + $0x8] sm:$0xff]
      %v310 = vld [vmem:[%s3 + $0x10] sm:$0xff]
      %v311 = vld [vmem:[%s3 + $0x18] sm:$0xff]
      %v312 = vld [vmem:[%s3 + $0x20] sm:$0xff]
      %v313 = vld [vmem:[%s3 + $0x28] sm:$0xff]
      %v314 = vld [vmem:[%s3 + $0x30] sm:$0xff]
      %v315 = vld [vmem:[%s3 + $0x38] sm:$0xff]
      %v316 = vld [vmem:[%s4] sm:$0x3]
      %v318 = vlaneseq
      %v319 = vshrl.u32 %v318, 7
      %v320 = vsub.s32 0, %v319
      %v321 = vrot.slane %v316, %v320
      %v322 = vlaneseq
      %v323 = vshrl.u32 %v322, 7
      %v324 = vsub.s32 1, %v323
      %v325 = vrot.slane %v316, %v324
      %v336 = vunpack.c.l.b16 %v308
      %v337 = vunpack.c.h.b16 %v308
      %v338 = vunpack.c.l.b16 %v309
      %v339 = vunpack.c.h.b16 %v309
      %v340 = vunpack.c.l.b16 %v310
      %v341 = vunpack.c.h.b16 %v310
      %v342 = vunpack.c.l.b16 %v311
      %v343 = vunpack.c.h.b16 %v311
      %v344 = vunpack.c.l.b16 %v312
      %v345 = vunpack.c.h.b16 %v312
      %v346 = vunpack.c.l.b16 %v313
      %v347 = vunpack.c.h.b16 %v313
      %v348 = vunpack.c.l.b16 %v314
      %v349 = vunpack.c.h.b16 %v314
      %v350 = vunpack.c.l.b16 %v315
      %v351 = vunpack.c.h.b16 %v315
      %v352 = vpack.c.b16 %v338, %v336
      %v353 = vpack.c.b16 %v339, %v337
      %v354 = vpack.c.b16 %v342, %v340
      %v355 = vpack.c.b16 %v343, %v341
      %v356 = vpack.c.b16 %v346, %v344
      %v357 = vpack.c.b16 %v347, %v345
      %v358 = vpack.c.b16 %v350, %v348
      %v359 = vpack.c.b16 %v351, %v349
      %v369 = vsel %vm278, %v307, 0
      %371 = vmatprep.subr.bf16.mxu0 %v353
      %372 = vmatpush1.bf16.msra.mxu0 %v352
      %373 = vmatprep.subr.bf16.mxu0 %v355
      %374 = vmatpush1.bf16.msra.mxu0 %v354
      %375 = vmatprep.subr.bf16.mxu0 %v357
      %376 = vmatpush1.bf16.msra.mxu0 %v356
      %377 = vmatprep.subr.bf16.mxu0 %v359
      %378 = vmatpush1.bf16.msra.mxu0 %v358
      %379 = vmatprep.subr.bf16.mxu0 0
      %380 = vmatpush1.bf16.msra.mxu0 0
      %381 = vmatprep.subr.bf16.mxu0 0
      %382 = vmatpush1.bf16.msra.mxu0 0
      %383 = vmatprep.subr.bf16.mxu0 0
      %384 = vmatpush1.bf16.msra.mxu0 0
      %385 = vmatprep.subr.bf16.mxu0 0
      %386 = vmatpush1.bf16.msra.mxu0 0
      %387 = vmatprep.subr.bf16.mxu0 0
      %388 = vmatpush1.bf16.msra.mxu0 0
      %389 = vmatprep.subr.bf16.mxu0 0
      %390 = vmatpush1.bf16.msra.mxu0 0
      %391 = vmatprep.subr.bf16.mxu0 0
      %392 = vmatpush1.bf16.msra.mxu0 0
      %393 = vmatprep.subr.bf16.mxu0 0
      %394 = vmatpush1.bf16.msra.mxu0 0
      %395 = vmatprep.subr.bf16.mxu0 0
      %396 = vmatpush1.bf16.msra.mxu0 0
      %397 = vmatprep.subr.bf16.mxu0 0
      %398 = vmatpush1.bf16.msra.mxu0 0
      %399 = vmatprep.subr.bf16.mxu0 0
      %400 = vmatpush1.bf16.msra.mxu0 0
      %401 = vmatprep.subr.bf16.mxu0 0
      %402 = vmatpush1.bf16.msra.mxu0 0
      %403 = vmatprep.mubr.bf16.mxu0 0
      %404 = vmatmul.mubr.bf16.gmra.mrb[0].mxu0 %v369
      %v405 = vpop.f32.mrb[0].mxu0
      %v406 = vadd.f32 %v321, %v405
      %v407 = vpop.f32.mrb[0].mxu0
      %v408 = vadd.f32 %v325, %v407
      %v409 = vpop.f32.mrb[0].mxu0
      %v410 = vpop.f32.mrb[0].mxu0
      %411 = vdwg.mxu0
      %v412 = vlaneseq
      %v413 = vand.u32 %v412, 127
      %vm414 = vcmp.lt.s32.totalorder %v413, 5
      %v415 = vld [vmem:[%s6] sm:$0x1]
      %v417 = vlaneseq
      %v418 = vshrl.u32 %v417, 7
      %v419 = vsub.s32 0, %v418
      %v420 = vrot.slane %v415, %v419
      %v422 = vadd.f32 %v275, %v420
      %v423 = vpack.c.bf16 %v406, %v406
      %v424 = vpack.c.bf16 %v408, %v408
      %426 = vrot.lane.b32.xlu0 %v423, 64
      %v427 = vpop.permute.xlu0 %426
      %vm428 = vcmask 130048
      %v430 = vsel %vm428, %v423, 0
      %v433 = vsel %vm428, %v427, 0
      %435 = vmatprep.subr.bf16.mxu0 0
      %436 = vmatpush1.bf16.xpose.msra.mxu0 %v433
      %437 = vmatprep.subr.bf16.mxu0 0
      %438 = vmatpush1.bf16.xpose.msra.mxu0 0
      %439 = vmatprep.subr.bf16.mxu0 0
      %440 = vmatpush1.bf16.xpose.msra.mxu0 0
      %441 = vmatprep.subr.bf16.mxu0 0
      %442 = vmatpush1.bf16.xpose.msra.mxu0 0
      %443 = vmatprep.subr.bf16.mxu0 0
      %444 = vmatpush1.bf16.xpose.msra.mxu0 0
      %445 = vmatprep.subr.bf16.mxu0 0
      %446 = vmatpush1.bf16.xpose.msra.mxu0 0
      %447 = vmatprep.subr.bf16.mxu0 0
      %448 = vmatpush1.bf16.xpose.msra.mxu0 0
      %449 = vmatprep.subr.bf16.mxu0 0
      %450 = vmatpush1.bf16.xpose.msra.mxu0 0
      %451 = vmatprep.subr.bf16.mxu0 0
      %452 = vmatpush1.bf16.xpose.msra.mxu0 0
      %453 = vmatprep.subr.bf16.mxu0 0
      %454 = vmatpush1.bf16.xpose.msra.mxu0 0
      %455 = vmatprep.subr.bf16.mxu0 0
      %456 = vmatpush1.bf16.xpose.msra.mxu0 0
      %457 = vmatprep.subr.bf16.mxu0 0
      %458 = vmatpush1.bf16.xpose.msra.mxu0 0
      %459 = vmatprep.subr.bf16.mxu0 0
      %460 = vmatpush1.bf16.xpose.msra.mxu0 0
      %461 = vmatprep.subr.bf16.mxu0 0
      %462 = vmatpush1.bf16.xpose.msra.mxu0 0
      %463 = vmatprep.subr.bf16.mxu0 0
      %464 = vmatpush1.bf16.xpose.msra.mxu0 0
      %465 = vmatprep.subr.bf16.mxu0 0
      %466 = vmatpush1.bf16.xpose.msra.mxu0 0
      %467 = vmatprep.mubr.bf16.mxu0 0
      %468 = vmatmul.mubr.bf16.gmra.mrb[0].mxu0 %v430
      %v469 = vpop.f32.mrb[0].mxu0
      %v470 = vadd.f32 0.0, %v469
      %v471 = vpop.f32.mrb[0].mxu0
      %v472 = vpop.f32.mrb[0].mxu0
      %v473 = vpop.f32.mrb[0].mxu0
      %474 = vdwg.mxu0
      %v475 = vmul.f32 %v470, 0.25
      %v476 = vsel %vm414, %v475, -1e+30
      %vm477 = vcmask 64512
      %v478 = vsel %vm477, %v476, -inf
      %479 = vmax.xlane.f32.xlu0 %v478
      %v480 = vpop.xlane.xlu0 %479
      %v481 = vsub.f32 %v476, %v480
      %v482 = vmul.f32 %v481, 1.442695
      %v483 = vpow.pop %v482
      %v484 = vsel %vm477, %v483, 0.0
      %485 = vadd.xlane.f32.xlu0 %v484
      %v486 = vpop.xlane.xlu0 %485
      %v487 = vrcp.pop %v486
      %v488 = vmul.f32 %v483, %v487
      %v489 = vpack.c.bf16 %v488, %v488
      %v491 = vsel %vm477, %v489, 0
      %vm493 = vcmask 1043456
      %v495 = vsel %vm493, %v424, 0
      %497 = vmatprep.subr.bf16.mxu0 0
      %498 = vmatpush1.bf16.msra.mxu0 %v495
      %499 = vmatprep.subr.bf16.mxu0 0
      %500 = vmatpush1.bf16.msra.mxu0 0
      %501 = vmatprep.subr.bf16.mxu0 0
      %502 = vmatpush1.bf16.msra.mxu0 0
      %503 = vmatprep.subr.bf16.mxu0 0
      %504 = vmatpush1.bf16.msra.mxu0 0
      %505 = vmatprep.subr.bf16.mxu0 0
      %506 = vmatpush1.bf16.msra.mxu0 0
      %507 = vmatprep.subr.bf16.mxu0 0
      %508 = vmatpush1.bf16.msra.mxu0 0
      %509 = vmatprep.subr.bf16.mxu0 0
      %510 = vmatpush1.bf16.msra.mxu0 0
      %511 = vmatprep.subr.bf16.mxu0 0
      %512 = vmatpush1.bf16.msra.mxu0 0
      %513 = vmatprep.subr.bf16.mxu0 0
      %514 = vmatpush1.bf16.msra.mxu0 0
      %515 = vmatprep.subr.bf16.mxu0 0
      %516 = vmatpush1.bf16.msra.mxu0 0
      %517 = vmatprep.subr.bf16.mxu0 0
      %518 = vmatpush1.bf16.msra.mxu0 0
      %519 = vmatprep.subr.bf16.mxu0 0
      %520 = vmatpush1.bf16.msra.mxu0 0
      %521 = vmatprep.subr.bf16.mxu0 0
      %522 = vmatpush1.bf16.msra.mxu0 0
      %523 = vmatprep.subr.bf16.mxu0 0
      %524 = vmatpush1.bf16.msra.mxu0 0
      %525 = vmatprep.subr.bf16.mxu0 0
      %526 = vmatpush1.bf16.msra.mxu0 0
      %527 = vmatprep.subr.bf16.mxu0 0
      %528 = vmatpush1.bf16.msra.mxu0 0
      %529 = vmatprep.mubr.bf16.mxu0 0
      %530 = vmatmul.mubr.bf16.gmra.mrb[0].mxu0 %v491
      %v531 = vpop.f32.mrb[0].mxu0
      %v532 = vadd.f32 0.0, %v531
      %v533 = vpop.f32.mrb[0].mxu0
      %v534 = vpop.f32.mrb[0].mxu0
      %v535 = vpop.f32.mrb[0].mxu0
      %536 = vdwg.mxu0
      %v537 = vpack.c.bf16 %v532, %v532
      %v538 = vld [vmem:[%s5] sm:$0xf]
      %v539 = vld [vmem:[%s5 + $0x4] sm:$0xf]
      %v542 = vunpack.c.l.b16 %v538
      %v543 = vunpack.c.l.b16 %v539
      %v544 = vpack.c.b16 %v543, %v542
      %v547 = vsel %vm428, %v537, 0
      %549 = vmatprep.subr.bf16.mxu0 0
      %550 = vmatpush1.bf16.msra.mxu0 %v544
      %551 = vmatprep.subr.bf16.mxu0 0
      %552 = vmatpush1.bf16.msra.mxu0 0
      %553 = vmatprep.subr.bf16.mxu0 0
      %554 = vmatpush1.bf16.msra.mxu0 0
      %555 = vmatprep.subr.bf16.mxu0 0
      %556 = vmatpush1.bf16.msra.mxu0 0
      %557 = vmatprep.subr.bf16.mxu0 0
      %558 = vmatpush1.bf16.msra.mxu0 0
      %559 = vmatprep.subr.bf16.mxu0 0
      %560 = vmatpush1.bf16.msra.mxu0 0
      %561 = vmatprep.subr.bf16.mxu0 0
      %562 = vmatpush1.bf16.msra.mxu0 0
      %563 = vmatprep.subr.bf16.mxu0 0
      %564 = vmatpush1.bf16.msra.mxu0 0
      %565 = vmatprep.subr.bf16.mxu0 0
      %566 = vmatpush1.bf16.msra.mxu0 0
      %567 = vmatprep.subr.bf16.mxu0 0
      %568 = vmatpush1.bf16.msra.mxu0 0
      %569 = vmatprep.subr.bf16.mxu0 0
      %570 = vmatpush1.bf16.msra.mxu0 0
      %571 = vmatprep.subr.bf16.mxu0 0
      %572 = vmatpush1.bf16.msra.mxu0 0
      %573 = vmatprep.subr.bf16.mxu0 0
      %574 = vmatpush1.bf16.msra.mxu0 0
      %575 = vmatprep.subr.bf16.mxu0 0
      %576 = vmatpush1.bf16.msra.mxu0 0
      %577 = vmatprep.subr.bf16.mxu0 0
      %578 = vmatpush1.bf16.msra.mxu0 0
      %579 = vmatprep.subr.bf16.mxu0 0
      %580 = vmatpush1.bf16.msra.mxu0 0
      %581 = vmatprep.mubr.bf16.mxu0 0
      %582 = vmatmul.mubr.bf16.gmra.mrb[0].mxu0 %v547
      %v583 = vpop.f32.mrb[0].mxu0
      %v584 = vadd.f32 0.0, %v583
      %v585 = vpop.f32.mrb[0].mxu0
      %v586 = vpop.f32.mrb[0].mxu0
      %v587 = vpop.f32.mrb[0].mxu0
      %588 = vdwg.mxu0
      %v589 = vadd.f32 %v422, %v584
      %590 = vrot.lane.b32.xlu0 %v423, 112
      %v591 = vpop.permute.xlu0 %590
      %592 = vrot.lane.b32.xlu0 %v423, 48
      %v593 = vpop.permute.xlu0 %592
      %v595 = vsel %vm428, %v591, 0
      %v598 = vsel %vm428, %v593, 0
      %600 = vmatprep.subr.bf16.mxu0 0
      %601 = vmatpush1.bf16.xpose.msra.mxu0 %v598
      %602 = vmatprep.subr.bf16.mxu0 0
      %603 = vmatpush1.bf16.xpose.msra.mxu0 0
      %604 = vmatprep.subr.bf16.mxu0 0
      %605 = vmatpush1.bf16.xpose.msra.mxu0 0
      %606 = vmatprep.subr.bf16.mxu0 0
      %607 = vmatpush1.bf16.xpose.msra.mxu0 0
      %608 = vmatprep.subr.bf16.mxu0 0
      %609 = vmatpush1.bf16.xpose.msra.mxu0 0
      %610 = vmatprep.subr.bf16.mxu0 0
      %611 = vmatpush1.bf16.xpose.msra.mxu0 0
      %612 = vmatprep.subr.bf16.mxu0 0
      %613 = vmatpush1.bf16.xpose.msra.mxu0 0
      %614 = vmatprep.subr.bf16.mxu0 0
      %615 = vmatpush1.bf16.xpose.msra.mxu0 0
      %616 = vmatprep.subr.bf16.mxu0 0
      %617 = vmatpush1.bf16.xpose.msra.mxu0 0
      %618 = vmatprep.subr.bf16.mxu0 0
      %619 = vmatpush1.bf16.xpose.msra.mxu0 0
      %620 = vmatprep.subr.bf16.mxu0 0
      %621 = vmatpush1.bf16.xpose.msra.mxu0 0
      %622 = vmatprep.subr.bf16.mxu0 0
      %623 = vmatpush1.bf16.xpose.msra.mxu0 0
      %624 = vmatprep.subr.bf16.mxu0 0
      %625 = vmatpush1.bf16.xpose.msra.mxu0 0
      %626 = vmatprep.subr.bf16.mxu0 0
      %627 = vmatpush1.bf16.xpose.msra.mxu0 0
      %628 = vmatprep.subr.bf16.mxu0 0
      %629 = vmatpush1.bf16.xpose.msra.mxu0 0
      %630 = vmatprep.subr.bf16.mxu0 0
      %631 = vmatpush1.bf16.xpose.msra.mxu0 0
      %632 = vmatprep.mubr.bf16.mxu0 0
      %633 = vmatmul.mubr.bf16.gmra.mrb[0].mxu0 %v595
      %v634 = vpop.f32.mrb[0].mxu0
      %v635 = vadd.f32 0.0, %v634
      %v636 = vpop.f32.mrb[0].mxu0
      %v637 = vpop.f32.mrb[0].mxu0
      %v638 = vpop.f32.mrb[0].mxu0
      %639 = vdwg.mxu0
      %v640 = vmul.f32 %v635, 0.25
      %v641 = vsel %vm414, %v640, -1e+30
      %v642 = vsel %vm477, %v641, -inf
      %643 = vmax.xlane.f32.xlu0 %v642
      %v644 = vpop.xlane.xlu0 %643
      %v645 = vsub.f32 %v641, %v644
      %v646 = vmul.f32 %v645, 1.442695
      %v647 = vpow.pop %v646
      %v648 = vsel %vm477, %v647, 0.0
      %649 = vadd.xlane.f32.xlu0 %v648
      %v650 = vpop.xlane.xlu0 %649
      %v651 = vrcp.pop %v650
      %v652 = vmul.f32 %v647, %v651
      %v653 = vpack.c.bf16 %v652, %v652
      %655 = vrot.lane.b32.xlu0 %v424, 112
      %v656 = vpop.permute.xlu0 %655
      %v658 = vsel %vm477, %v653, 0
      %v661 = vsel %vm493, %v656, 0
      %663 = vmatprep.subr.bf16.mxu0 0
      %664 = vmatpush1.bf16.msra.mxu0 %v661
      %665 = vmatprep.subr.bf16.mxu0 0
      %666 = vmatpush1.bf16.msra.mxu0 0
      %667 = vmatprep.subr.bf16.mxu0 0
      %668 = vmatpush1.bf16.msra.mxu0 0
      %669 = vmatprep.subr.bf16.mxu0 0
      %670 = vmatpush1.bf16.msra.mxu0 0
      %671 = vmatprep.subr.bf16.mxu0 0
      %672 = vmatpush1.bf16.msra.mxu0 0
      %673 = vmatprep.subr.bf16.mxu0 0
      %674 = vmatpush1.bf16.msra.mxu0 0
      %675 = vmatprep.subr.bf16.mxu0 0
      %676 = vmatpush1.bf16.msra.mxu0 0
      %677 = vmatprep.subr.bf16.mxu0 0
      %678 = vmatpush1.bf16.msra.mxu0 0
      %679 = vmatprep.subr.bf16.mxu0 0
      %680 = vmatpush1.bf16.msra.mxu0 0
      %681 = vmatprep.subr.bf16.mxu0 0
      %682 = vmatpush1.bf16.msra.mxu0 0
      %683 = vmatprep.subr.bf16.mxu0 0
      %684 = vmatpush1.bf16.msra.mxu0 0
      %685 = vmatprep.subr.bf16.mxu0 0
      %686 = vmatpush1.bf16.msra.mxu0 0
      %687 = vmatprep.subr.bf16.mxu0 0
      %688 = vmatpush1.bf16.msra.mxu0 0
      %689 = vmatprep.subr.bf16.mxu0 0
      %690 = vmatpush1.bf16.msra.mxu0 0
      %691 = vmatprep.subr.bf16.mxu0 0
      %692 = vmatpush1.bf16.msra.mxu0 0
      %693 = vmatprep.subr.bf16.mxu0 0
      %694 = vmatpush1.bf16.msra.mxu0 0
      %695 = vmatprep.mubr.bf16.mxu0 0
      %696 = vmatmul.mubr.bf16.gmra.mrb[0].mxu0 %v658
      %v697 = vpop.f32.mrb[0].mxu0
      %v698 = vadd.f32 0.0, %v697
      %v699 = vpop.f32.mrb[0].mxu0
      %v700 = vpop.f32.mrb[0].mxu0
      %v701 = vpop.f32.mrb[0].mxu0
      %702 = vdwg.mxu0
      %v703 = vpack.c.bf16 %v698, %v698
      %v704 = vld [vmem:[%s5 + $0x8] sm:$0xf]
      %v705 = vld [vmem:[%s5 + $0xc] sm:$0xf]
      %v708 = vunpack.c.l.b16 %v704
      %v709 = vunpack.c.l.b16 %v705
      %v710 = vpack.c.b16 %v709, %v708
      %v713 = vsel %vm428, %v703, 0
      %715 = vmatprep.subr.bf16.mxu0 0
      %716 = vmatpush1.bf16.msra.mxu0 %v710
      %717 = vmatprep.subr.bf16.mxu0 0
      %718 = vmatpush1.bf16.msra.mxu0 0
      %719 = vmatprep.subr.bf16.mxu0 0
      %720 = vmatpush1.bf16.msra.mxu0 0
      %721 = vmatprep.subr.bf16.mxu0 0
      %722 = vmatpush1.bf16.msra.mxu0 0
      %723 = vmatprep.subr.bf16.mxu0 0
      %724 = vmatpush1.bf16.msra.mxu0 0
      %725 = vmatprep.subr.bf16.mxu0 0
      %726 = vmatpush1.bf16.msra.mxu0 0
      %727 = vmatprep.subr.bf16.mxu0 0
      %728 = vmatpush1.bf16.msra.mxu0 0
      %729 = vmatprep.subr.bf16.mxu0 0
      %730 = vmatpush1.bf16.msra.mxu0 0
      %731 = vmatprep.subr.bf16.mxu0 0
      %732 = vmatpush1.bf16.msra.mxu0 0
      %733 = vmatprep.subr.bf16.mxu0 0
      %734 = vmatpush1.bf16.msra.mxu0 0
      %735 = vmatprep.subr.bf16.mxu0 0
      %736 = vmatpush1.bf16.msra.mxu0 0
      %737 = vmatprep.subr.bf16.mxu0 0
      %738 = vmatpush1.bf16.msra.mxu0 0
      %739 = vmatprep.subr.bf16.mxu0 0
      %740 = vmatpush1.bf16.msra.mxu0 0
      %741 = vmatprep.subr.bf16.mxu0 0
      %742 = vmatpush1.bf16.msra.mxu0 0
      %743 = vmatprep.subr.bf16.mxu0 0
      %744 = vmatpush1.bf16.msra.mxu0 0
      %745 = vmatprep.subr.bf16.mxu0 0
      %746 = vmatpush1.bf16.msra.mxu0 0
      %747 = vmatprep.mubr.bf16.mxu0 0
      %748 = vmatmul.mubr.bf16.gmra.mrb[0].mxu0 %v713
      %v749 = vpop.f32.mrb[0].mxu0
      %v750 = vadd.f32 0.0, %v749
      %v751 = vpop.f32.mrb[0].mxu0
      %v752 = vpop.f32.mrb[0].mxu0
      %v753 = vpop.f32.mrb[0].mxu0
      %754 = vdwg.mxu0
      %v755 = vadd.f32 %v589, %v750
      %756 = vrot.lane.b32.xlu0 %v423, 96
      %v757 = vpop.permute.xlu0 %756
      %758 = vrot.lane.b32.xlu0 %v423, 32
      %v759 = vpop.permute.xlu0 %758
      %v761 = vsel %vm428, %v757, 0
      %v764 = vsel %vm428, %v759, 0
      %766 = vmatprep.subr.bf16.mxu0 0
      %767 = vmatpush1.bf16.xpose.msra.mxu0 %v764
      %768 = vmatprep.subr.bf16.mxu0 0
      %769 = vmatpush1.bf16.xpose.msra.mxu0 0
      %770 = vmatprep.subr.bf16.mxu0 0
      %771 = vmatpush1.bf16.xpose.msra.mxu0 0
      %772 = vmatprep.subr.bf16.mxu0 0
      %773 = vmatpush1.bf16.xpose.msra.mxu0 0
      %774 = vmatprep.subr.bf16.mxu0 0
      %775 = vmatpush1.bf16.xpose.msra.mxu0 0
      %776 = vmatprep.subr.bf16.mxu0 0
      %777 = vmatpush1.bf16.xpose.msra.mxu0 0
      %778 = vmatprep.subr.bf16.mxu0 0
      %779 = vmatpush1.bf16.xpose.msra.mxu0 0
      %780 = vmatprep.subr.bf16.mxu0 0
      %781 = vmatpush1.bf16.xpose.msra.mxu0 0
      %782 = vmatprep.subr.bf16.mxu0 0
      %783 = vmatpush1.bf16.xpose.msra.mxu0 0
      %784 = vmatprep.subr.bf16.mxu0 0
      %785 = vmatpush1.bf16.xpose.msra.mxu0 0
      %786 = vmatprep.subr.bf16.mxu0 0
      %787 = vmatpush1.bf16.xpose.msra.mxu0 0
      %788 = vmatprep.subr.bf16.mxu0 0
      %789 = vmatpush1.bf16.xpose.msra.mxu0 0
      %790 = vmatprep.subr.bf16.mxu0 0
      %791 = vmatpush1.bf16.xpose.msra.mxu0 0
      %792 = vmatprep.subr.bf16.mxu0 0
      %793 = vmatpush1.bf16.xpose.msra.mxu0 0
      %794 = vmatprep.subr.bf16.mxu0 0
      %795 = vmatpush1.bf16.xpose.msra.mxu0 0
      %796 = vmatprep.subr.bf16.mxu0 0
      %797 = vmatpush1.bf16.xpose.msra.mxu0 0
      %798 = vmatprep.mubr.bf16.mxu0 0
      %799 = vmatmul.mubr.bf16.gmra.mrb[0].mxu0 %v761
      %v800 = vpop.f32.mrb[0].mxu0
      %v801 = vadd.f32 0.0, %v800
      %v802 = vpop.f32.mrb[0].mxu0
      %v803 = vpop.f32.mrb[0].mxu0
      %v804 = vpop.f32.mrb[0].mxu0
      %805 = vdwg.mxu0
      %v806 = vmul.f32 %v801, 0.25
      %v807 = vsel %vm414, %v806, -1e+30
      %v808 = vsel %vm477, %v807, -inf
      %809 = vmax.xlane.f32.xlu0 %v808
      %v810 = vpop.xlane.xlu0 %809
      %v811 = vsub.f32 %v807, %v810
      %v812 = vmul.f32 %v811, 1.442695
      %v813 = vpow.pop %v812
      %v814 = vsel %vm477, %v813, 0.0
      %815 = vadd.xlane.f32.xlu0 %v814
      %v816 = vpop.xlane.xlu0 %815
      %v817 = vrcp.pop %v816
      %v818 = vmul.f32 %v813, %v817
      %v819 = vpack.c.bf16 %v818, %v818
      %820 = vrot.lane.b32.xlu0 %v424, 96
      %v821 = vpop.permute.xlu0 %820
      %v823 = vsel %vm477, %v819, 0
      %v826 = vsel %vm493, %v821, 0
      %828 = vmatprep.subr.bf16.mxu0 0
      %829 = vmatpush1.bf16.msra.mxu0 %v826
      %830 = vmatprep.subr.bf16.mxu0 0
      %831 = vmatpush1.bf16.msra.mxu0 0
      %832 = vmatprep.subr.bf16.mxu0 0
      %833 = vmatpush1.bf16.msra.mxu0 0
      %834 = vmatprep.subr.bf16.mxu0 0
      %835 = vmatpush1.bf16.msra.mxu0 0
      %836 = vmatprep.subr.bf16.mxu0 0
      %837 = vmatpush1.bf16.msra.mxu0 0
      %838 = vmatprep.subr.bf16.mxu0 0
      %839 = vmatpush1.bf16.msra.mxu0 0
      %840 = vmatprep.subr.bf16.mxu0 0
      %841 = vmatpush1.bf16.msra.mxu0 0
      %842 = vmatprep.subr.bf16.mxu0 0
      %843 = vmatpush1.bf16.msra.mxu0 0
      %844 = vmatprep.subr.bf16.mxu0 0
      %845 = vmatpush1.bf16.msra.mxu0 0
      %846 = vmatprep.subr.bf16.mxu0 0
      %847 = vmatpush1.bf16.msra.mxu0 0
      %848 = vmatprep.subr.bf16.mxu0 0
      %849 = vmatpush1.bf16.msra.mxu0 0
      %850 = vmatprep.subr.bf16.mxu0 0
      %851 = vmatpush1.bf16.msra.mxu0 0
      %852 = vmatprep.subr.bf16.mxu0 0
      %853 = vmatpush1.bf16.msra.mxu0 0
      %854 = vmatprep.subr.bf16.mxu0 0
      %855 = vmatpush1.bf16.msra.mxu0 0
      %856 = vmatprep.subr.bf16.mxu0 0
      %857 = vmatpush1.bf16.msra.mxu0 0
      %858 = vmatprep.subr.bf16.mxu0 0
      %859 = vmatpush1.bf16.msra.mxu0 0
      %860 = vmatprep.mubr.bf16.mxu0 0
      %861 = vmatmul.mubr.bf16.gmra.mrb[0].mxu0 %v823
      %v862 = vpop.f32.mrb[0].mxu0
      %v863 = vadd.f32 0.0, %v862
      %v864 = vpop.f32.mrb[0].mxu0
      %v865 = vpop.f32.mrb[0].mxu0
      %v866 = vpop.f32.mrb[0].mxu0
      %867 = vdwg.mxu0
      %v868 = vpack.c.bf16 %v863, %v863
      %v869 = vld [vmem:[%s5 + $0x10] sm:$0xf]
      %v870 = vld [vmem:[%s5 + $0x14] sm:$0xf]
      %v873 = vunpack.c.l.b16 %v869
      %v874 = vunpack.c.l.b16 %v870
      %v875 = vpack.c.b16 %v874, %v873
      %v878 = vsel %vm428, %v868, 0
      %880 = vmatprep.subr.bf16.mxu0 0
      %881 = vmatpush1.bf16.msra.mxu0 %v875
      %882 = vmatprep.subr.bf16.mxu0 0
      %883 = vmatpush1.bf16.msra.mxu0 0
      %884 = vmatprep.subr.bf16.mxu0 0
      %885 = vmatpush1.bf16.msra.mxu0 0
      %886 = vmatprep.subr.bf16.mxu0 0
      %887 = vmatpush1.bf16.msra.mxu0 0
      %888 = vmatprep.subr.bf16.mxu0 0
      %889 = vmatpush1.bf16.msra.mxu0 0
      %890 = vmatprep.subr.bf16.mxu0 0
      %891 = vmatpush1.bf16.msra.mxu0 0
      %892 = vmatprep.subr.bf16.mxu0 0
      %893 = vmatpush1.bf16.msra.mxu0 0
      %894 = vmatprep.subr.bf16.mxu0 0
      %895 = vmatpush1.bf16.msra.mxu0 0
      %896 = vmatprep.subr.bf16.mxu0 0
      %897 = vmatpush1.bf16.msra.mxu0 0
      %898 = vmatprep.subr.bf16.mxu0 0
      %899 = vmatpush1.bf16.msra.mxu0 0
      %900 = vmatprep.subr.bf16.mxu0 0
      %901 = vmatpush1.bf16.msra.mxu0 0
      %902 = vmatprep.subr.bf16.mxu0 0
      %903 = vmatpush1.bf16.msra.mxu0 0
      %904 = vmatprep.subr.bf16.mxu0 0
      %905 = vmatpush1.bf16.msra.mxu0 0
      %906 = vmatprep.subr.bf16.mxu0 0
      %907 = vmatpush1.bf16.msra.mxu0 0
      %908 = vmatprep.subr.bf16.mxu0 0
      %909 = vmatpush1.bf16.msra.mxu0 0
      %910 = vmatprep.subr.bf16.mxu0 0
      %911 = vmatpush1.bf16.msra.mxu0 0
      %912 = vmatprep.mubr.bf16.mxu0 0
      %913 = vmatmul.mubr.bf16.gmra.mrb[0].mxu0 %v878
      %v914 = vpop.f32.mrb[0].mxu0
      %v915 = vadd.f32 0.0, %v914
      %v916 = vpop.f32.mrb[0].mxu0
      %v917 = vpop.f32.mrb[0].mxu0
      %v918 = vpop.f32.mrb[0].mxu0
      %919 = vdwg.mxu0
      %v920 = vadd.f32 %v755, %v915
      %921 = vrot.lane.b32.xlu0 %v423, 80
      %v922 = vpop.permute.xlu0 %921
      %923 = vrot.lane.b32.xlu0 %v423, 16
      %v924 = vpop.permute.xlu0 %923
      %v926 = vsel %vm428, %v922, 0
      %v929 = vsel %vm428, %v924, 0
      %931 = vmatprep.subr.bf16.mxu0 0
      %932 = vmatpush1.bf16.xpose.msra.mxu0 %v929
      %933 = vmatprep.subr.bf16.mxu0 0
      %934 = vmatpush1.bf16.xpose.msra.mxu0 0
      %935 = vmatprep.subr.bf16.mxu0 0
      %936 = vmatpush1.bf16.xpose.msra.mxu0 0
      %937 = vmatprep.subr.bf16.mxu0 0
      %938 = vmatpush1.bf16.xpose.msra.mxu0 0
      %939 = vmatprep.subr.bf16.mxu0 0
      %940 = vmatpush1.bf16.xpose.msra.mxu0 0
      %941 = vmatprep.subr.bf16.mxu0 0
      %942 = vmatpush1.bf16.xpose.msra.mxu0 0
      %943 = vmatprep.subr.bf16.mxu0 0
      %944 = vmatpush1.bf16.xpose.msra.mxu0 0
      %945 = vmatprep.subr.bf16.mxu0 0
      %946 = vmatpush1.bf16.xpose.msra.mxu0 0
      %947 = vmatprep.subr.bf16.mxu0 0
      %948 = vmatpush1.bf16.xpose.msra.mxu0 0
      %949 = vmatprep.subr.bf16.mxu0 0
      %950 = vmatpush1.bf16.xpose.msra.mxu0 0
      %951 = vmatprep.subr.bf16.mxu0 0
      %952 = vmatpush1.bf16.xpose.msra.mxu0 0
      %953 = vmatprep.subr.bf16.mxu0 0
      %954 = vmatpush1.bf16.xpose.msra.mxu0 0
      %955 = vmatprep.subr.bf16.mxu0 0
      %956 = vmatpush1.bf16.xpose.msra.mxu0 0
      %957 = vmatprep.subr.bf16.mxu0 0
      %958 = vmatpush1.bf16.xpose.msra.mxu0 0
      %959 = vmatprep.subr.bf16.mxu0 0
      %960 = vmatpush1.bf16.xpose.msra.mxu0 0
      %961 = vmatprep.subr.bf16.mxu0 0
      %962 = vmatpush1.bf16.xpose.msra.mxu0 0
      %963 = vmatprep.mubr.bf16.mxu0 0
      %964 = vmatmul.mubr.bf16.gmra.mrb[0].mxu0 %v926
      %v965 = vpop.f32.mrb[0].mxu0
      %v966 = vadd.f32 0.0, %v965
      %v967 = vpop.f32.mrb[0].mxu0
      %v968 = vpop.f32.mrb[0].mxu0
      %v969 = vpop.f32.mrb[0].mxu0
      %970 = vdwg.mxu0
      %v971 = vmul.f32 %v966, 0.25
      %v972 = vsel %vm414, %v971, -1e+30
      %v973 = vsel %vm477, %v972, -inf
      %974 = vmax.xlane.f32.xlu0 %v973
      %v975 = vpop.xlane.xlu0 %974
      %v976 = vsub.f32 %v972, %v975
      %v977 = vmul.f32 %v976, 1.442695
      %v978 = vpow.pop %v977
      %v979 = vsel %vm477, %v978, 0.0
      %980 = vadd.xlane.f32.xlu0 %v979
      %v981 = vpop.xlane.xlu0 %980
      %v982 = vrcp.pop %v981
      %v983 = vmul.f32 %v978, %v982
      %v984 = vpack.c.bf16 %v983, %v983
      %985 = vrot.lane.b32.xlu0 %v424, 80
      %v986 = vpop.permute.xlu0 %985
      %v988 = vsel %vm477, %v984, 0
      %v991 = vsel %vm493, %v986, 0
      %993 = vmatprep.subr.bf16.mxu0 0
      %994 = vmatpush1.bf16.msra.mxu0 %v991
      %995 = vmatprep.subr.bf16.mxu0 0
      %996 = vmatpush1.bf16.msra.mxu0 0
      %997 = vmatprep.subr.bf16.mxu0 0
      %998 = vmatpush1.bf16.msra.mxu0 0
      %999 = vmatprep.subr.bf16.mxu0 0
      %1000 = vmatpush1.bf16.msra.mxu0 0
      %1001 = vmatprep.subr.bf16.mxu0 0
      %1002 = vmatpush1.bf16.msra.mxu0 0
      %1003 = vmatprep.subr.bf16.mxu0 0
      %1004 = vmatpush1.bf16.msra.mxu0 0
      %1005 = vmatprep.subr.bf16.mxu0 0
      %1006 = vmatpush1.bf16.msra.mxu0 0
      %1007 = vmatprep.subr.bf16.mxu0 0
      %1008 = vmatpush1.bf16.msra.mxu0 0
      %1009 = vmatprep.subr.bf16.mxu0 0
      %1010 = vmatpush1.bf16.msra.mxu0 0
      %1011 = vmatprep.subr.bf16.mxu0 0
      %1012 = vmatpush1.bf16.msra.mxu0 0
      %1013 = vmatprep.subr.bf16.mxu0 0
      %1014 = vmatpush1.bf16.msra.mxu0 0
      %1015 = vmatprep.subr.bf16.mxu0 0
      %1016 = vmatpush1.bf16.msra.mxu0 0
      %1017 = vmatprep.subr.bf16.mxu0 0
      %1018 = vmatpush1.bf16.msra.mxu0 0
      %1019 = vmatprep.subr.bf16.mxu0 0
      %1020 = vmatpush1.bf16.msra.mxu0 0
      %1021 = vmatprep.subr.bf16.mxu0 0
      %1022 = vmatpush1.bf16.msra.mxu0 0
      %1023 = vmatprep.subr.bf16.mxu0 0
      %1024 = vmatpush1.bf16.msra.mxu0 0
      %1025 = vmatprep.mubr.bf16.mxu0 0
      %1026 = vmatmul.mubr.bf16.gmra.mrb[0].mxu0 %v988
      %v1027 = vpop.f32.mrb[0].mxu0
      %v1028 = vadd.f32 0.0, %v1027
      %v1029 = vpop.f32.mrb[0].mxu0
      %v1030 = vpop.f32.mrb[0].mxu0
      %v1031 = vpop.f32.mrb[0].mxu0
      %1032 = vdwg.mxu0
      %v1033 = vpack.c.bf16 %v1028, %v1028
      %v1034 = vld [vmem:[%s5 + $0x18] sm:$0xf]
      %v1035 = vld [vmem:[%s5 + $0x1c] sm:$0xf]
      %v1038 = vunpack.c.l.b16 %v1034
      %v1039 = vunpack.c.l.b16 %v1035
      %v1040 = vpack.c.b16 %v1039, %v1038
      %v1043 = vsel %vm428, %v1033, 0
      %1045 = vmatprep.subr.bf16.mxu0 0
      %1046 = vmatpush1.bf16.msra.mxu0 %v1040
      %1047 = vmatprep.subr.bf16.mxu0 0
      %1048 = vmatpush1.bf16.msra.mxu0 0
      %1049 = vmatprep.subr.bf16.mxu0 0
      %1050 = vmatpush1.bf16.msra.mxu0 0
      %1051 = vmatprep.subr.bf16.mxu0 0
      %1052 = vmatpush1.bf16.msra.mxu0 0
      %1053 = vmatprep.subr.bf16.mxu0 0
      %1054 = vmatpush1.bf16.msra.mxu0 0
      %1055 = vmatprep.subr.bf16.mxu0 0
      %1056 = vmatpush1.bf16.msra.mxu0 0
      %1057 = vmatprep.subr.bf16.mxu0 0
      %1058 = vmatpush1.bf16.msra.mxu0 0
      %1059 = vmatprep.subr.bf16.mxu0 0
      %1060 = vmatpush1.bf16.msra.mxu0 0
      %1061 = vmatprep.subr.bf16.mxu0 0
      %1062 = vmatpush1.bf16.msra.mxu0 0
      %1063 = vmatprep.subr.bf16.mxu0 0
      %1064 = vmatpush1.bf16.msra.mxu0 0
      %1065 = vmatprep.subr.bf16.mxu0 0
      %1066 = vmatpush1.bf16.msra.mxu0 0
      %1067 = vmatprep.subr.bf16.mxu0 0
      %1068 = vmatpush1.bf16.msra.mxu0 0
      %1069 = vmatprep.subr.bf16.mxu0 0
      %1070 = vmatpush1.bf16.msra.mxu0 0
      %1071 = vmatprep.subr.bf16.mxu0 0
      %1072 = vmatpush1.bf16.msra.mxu0 0
      %1073 = vmatprep.subr.bf16.mxu0 0
      %1074 = vmatpush1.bf16.msra.mxu0 0
      %1075 = vmatprep.subr.bf16.mxu0 0
      %1076 = vmatpush1.bf16.msra.mxu0 0
      %1077 = vmatprep.mubr.bf16.mxu0 0
      %1078 = vmatmul.mubr.bf16.gmra.mrb[0].mxu0 %v1043
      %v1079 = vpop.f32.mrb[0].mxu0
      %v1080 = vadd.f32 0.0, %v1079
      %v1081 = vpop.f32.mrb[0].mxu0
      %v1082 = vpop.f32.mrb[0].mxu0
      %v1083 = vpop.f32.mrb[0].mxu0
      %1084 = vdwg.mxu0
      %v1085 = vadd.f32 %v920, %v1080
      %1086 = vst.msk [vmem:[%s273] sm:$0xff] %vm278, %v1085
      %p1087 = scmp.lt.s32.totalorder %s18, 1
      %s1088 = scalar_select %p1087, %s18, 1
      %s1089 = smul.addr %s1088, 8
      %s1090 = scalar_lea.vmem %s7, %s1089
      // Predicated region
      $region49: #{_lambda_.7} parent=47 // pred_check
        %p1091 = pneg %p188
      $region50: #{_lambda_.7} parent=47 // pred_check_branch
        %1093 = sbr.rel (%p1091) target = $region52
      $region51: #{_lambda_.7} parent=47 // pred_region
        _
      $region52: #{_lambda_.7} parent=47 // pred_fallthru
        _
    $region48: #{_lambda_.7} parent=5 // pred_fallthru
      _
    %p1094 = scmp.le.s32.totalorder 2, %s13
    // Predicated region
    $region53: #{_lambda_.7} parent=5 // pred_check
      %p1095 = pneg %p1094
    $region54: #{_lambda_.7} parent=5 // pred_check_branch
      %1097 = sbr.rel (%p1095) target = $region56
    $region55: #{_lambda_.7} parent=5 // pred_region
      %s1098 = ssub.s32 %s13, 2
      // Predicated region
      $region57: #{_lambda_.7} parent=55 // pred_check
        %p1099 = pneg %p194
      $region58: #{_lambda_.7} parent=55 // pred_check_branch
        %1101 = sbr.rel (%p1099) target = $region60
      $region59: #{_lambda_.7} parent=55 // pred_region
        %p1102 = scmp.lt.s32.totalorder %s19, 1
        %s1103 = scalar_select %p1102, %s19, 1
        %s1104 = smul.addr %s1103, 8
        %s1105 = scalar_lea.vmem %s7, %s1104
      $region60: #{_lambda_.7} parent=55 // pred_fallthru
        _
    $region56: #{_lambda_.7} parent=5 // pred_fallthru
      _
  $region6: #{_lambda_.7} parent=0 // loop_footer
    %s17 = sadd.s32 1, %s13
  $region7: #{_lambda_.7} parent=0 // loop_footer_branch
    %12 = sbr.rel target = $region3
  $region8: #{_lambda_.7} parent=0 // loop_exit
    _

// kernel: _lambda_.6
$region0: #{_lambda_.6}
  #allocation0 [shape = 'u32[]', space=smem, size = 0x4, offset = 0x4, fixed_abs, tag = 'smem constant byte address 0x4 - core index']
  #allocation1 [shape = 'u32[144,128]{1,0:T(1,128)}', space=vmem, size = 0x12000, scoped, tag = 'internal scratch']
  %s0 = inlined_call_operand.vmem [shape: bf16[2,8,768], index: 0, kind: input, shape index: {}]
  %s1 = inlined_call_operand.vmem [shape: bf16[768,64], index: 1, kind: input, shape index: {}]
  %s2 = inlined_call_operand.vmem [shape: f32[8,64], index: 2, kind: input, shape index: {}]
  %s3 = inlined_call_operand.vmem [shape: f32[2,8,64], index: 3, kind: output, shape index: {}]
  %s4 = sld [smem:[#allocation0]]
  $region45: #{_lambda_.6} parent=0
    _
  %s6 = ssub.s32 1, %s4
  %s7 = scalar_select 0, %s6, %s4
  loop: start=0, step=1, limit=4
  $region2: #{_lambda_.6} parent=0 // loop_pre_header
    _
  $region3: #{_lambda_.6} parent=0 // loop_header
    %s9 = sphi 0, %s13
    %p10 = scmp.ge.s32.totalorder %s9, 4
    %s19 = sphi 0, %s21
    %s22 = sphi 0, %s19
    %s23 = sphi 0, %s22
    %s39 = sphi 0, %s23
    %s43 = sphi 0, %s43
    %s45 = sphi 0, %s43
    %s46 = sphi 0, %s45
    %s60 = sphi 0, %s46
    %s64 = sphi 0, %s64
    %s66 = sphi 0, %s64
    %s67 = sphi 0, %s66
    %s81 = sphi 0, %s67
    %s87 = sphi 0, %s89
    %s90 = sphi 0, %s87
    %s91 = sphi 0, %s90
    %s107 = sphi 0, %s91
  $region4: #{_lambda_.6} parent=0 // loop_header_branch
    %12 = sbr.rel (%p10) target = $region8
  $region5: #{_lambda_.6} parent=0 // loop_body
    %s14 = ssub.s32 %s9, 1
    %s15 = ssub.s32 %s9, 2
    %s16 = sadd.s32 %s9, 1
    %s17 = ssub.s32 %s9, %s16
    %p18 = scmp.eq.s32.totalorder %s17, 0
    %s20 = sadd.s32 %s19, 1
    %s21 = scalar_select %p18, %s19, %s20
    %p24 = pneg %p18
    %p25 = scmp.eq.s32.totalorder %s9, 1
    %p26 = por %p24, %p25
    %p27 = scmp.ne.s32.totalorder %s19, %s22
    %p28 = scmp.eq.s32.totalorder %s9, 0
    %p29 = por %p27, %p28
    %p30 = scmp.ne.s32.totalorder %s19, %s22
    %p31 = scmp.eq.s32.totalorder %s14, 1
    %p32 = por %p30, %p31
    %p33 = scmp.ne.s32.totalorder %s22, %s23
    %p34 = scmp.eq.s32.totalorder %s14, 0
    %p35 = por %p33, %p34
    %p36 = scmp.ne.s32.totalorder %s22, %s23
    %p37 = scmp.eq.s32.totalorder %s15, 1
    %p38 = por %p36, %p37
    %p40 = scmp.ne.s32.totalorder %s23, %s39
    %p41 = scmp.eq.s32.totalorder %s15, 0
    %p42 = por %p40, %p41
    %s44 = sadd.s32 %s43, 1
    %p47 = scmp.eq.s32.totalorder %s9, 1
    %p48 = scmp.ne.s32.totalorder %s43, %s45
    %p49 = scmp.eq.s32.totalorder %s9, 0
    %p50 = por %p48, %p49
    %p51 = scmp.ne.s32.totalorder %s43, %s45
    %p52 = scmp.eq.s32.totalorder %s14, 1
    %p53 = por %p51, %p52
    %p54 = scmp.ne.s32.totalorder %s45, %s46
    %p55 = scmp.eq.s32.totalorder %s14, 0
    %p56 = por %p54, %p55
    %p57 = scmp.ne.s32.totalorder %s45, %s46
    %p58 = scmp.eq.s32.totalorder %s15, 1
    %p59 = por %p57, %p58
    %p61 = scmp.ne.s32.totalorder %s46, %s60
    %p62 = scmp.eq.s32.totalorder %s15, 0
    %p63 = por %p61, %p62
    %s65 = sadd.s32 %s64, 1
    %p68 = scmp.eq.s32.totalorder %s9, 1
    %p69 = scmp.ne.s32.totalorder %s64, %s66
    %p70 = scmp.eq.s32.totalorder %s9, 0
    %p71 = por %p69, %p70
    %p72 = scmp.ne.s32.totalorder %s64, %s66
    %p73 = scmp.eq.s32.totalorder %s14, 1
    %p74 = por %p72, %p73
    %p75 = scmp.ne.s32.totalorder %s66, %s67
    %p76 = scmp.eq.s32.totalorder %s14, 0
    %p77 = por %p75, %p76
    %p78 = scmp.ne.s32.totalorder %s66, %s67
    %p79 = scmp.eq.s32.totalorder %s15, 1
    %p80 = por %p78, %p79
    %p82 = scmp.ne.s32.totalorder %s67, %s81
    %p83 = scmp.eq.s32.totalorder %s15, 0
    %p84 = por %p82, %p83
    %s85 = ssub.s32 %s9, %s16
    %p86 = scmp.eq.s32.totalorder %s85, 0
    %s88 = sadd.s32 %s87, 1
    %s89 = scalar_select %p86, %s87, %s88
    %p92 = pneg %p86
    %p93 = scmp.eq.s32.totalorder %s9, 1
    %p94 = por %p92, %p93
    %p95 = scmp.ne.s32.totalorder %s87, %s90
    %p96 = scmp.eq.s32.totalorder %s9, 0
    %p97 = por %p95, %p96
    %p98 = scmp.ne.s32.totalorder %s87, %s90
    %p99 = scmp.eq.s32.totalorder %s14, 1
    %p100 = por %p98, %p99
    %p101 = scmp.ne.s32.totalorder %s90, %s91
    %p102 = scmp.eq.s32.totalorder %s14, 0
    %p103 = por %p101, %p102
    %p104 = scmp.ne.s32.totalorder %s90, %s91
    %p105 = scmp.eq.s32.totalorder %s15, 1
    %p106 = por %p104, %p105
    %p108 = scmp.ne.s32.totalorder %s91, %s107
    %p109 = scmp.eq.s32.totalorder %s15, 0
    %p110 = por %p108, %p109
    %p111 = scmp.le.s32.totalorder 1, %s9
    %p112 = scmp.lt.s32.totalorder %s9, 3
    %p113 = pnand %p111, %p112
    %p114 = pneg %p113
    // Predicated region
    $region9: #{_lambda_.6} parent=5 // pred_check
      _
    $region10: #{_lambda_.6} parent=5 // pred_check_branch
      %116 = sbr.rel (%p113) target = $region12
    $region11: #{_lambda_.6} parent=5 // pred_region
      %s117 = ssub.s32 %s9, 1
      // Predicated region
      $region13: #{_lambda_.6} parent=11 // pred_check
        %p118 = pneg %p56
      $region14: #{_lambda_.6} parent=11 // pred_check_branch
        %120 = sbr.rel (%p118) target = $region16
      $region15: #{_lambda_.6} parent=11 // pred_region
        _
      $region16: #{_lambda_.6} parent=11 // pred_fallthru
        _
      // Predicated region
      $region17: #{_lambda_.6} parent=11 // pred_check
        %p121 = pneg %p77
      $region18: #{_lambda_.6} parent=11 // pred_check_branch
        %123 = sbr.rel (%p121) target = $region20
      $region19: #{_lambda_.6} parent=11 // pred_region
        _
      $region20: #{_lambda_.6} parent=11 // pred_fallthru
        _
    $region12: #{_lambda_.6} parent=5 // pred_fallthru
      _
    %p124 = scmp.lt.s32.totalorder %s9, 2
    // Predicated region
    $region21: #{_lambda_.6} parent=5 // pred_check
      %p125 = pneg %p124
    $region22: #{_lambda_.6} parent=5 // pred_check_branch
      %127 = sbr.rel (%p125) target = $region24
    $region23: #{_lambda_.6} parent=5 // pred_region
      // Predicated region
      $region25: #{_lambda_.6} parent=23 // pred_check
        %p128 = pneg %p29
      $region26: #{_lambda_.6} parent=23 // pred_check_branch
        %130 = sbr.rel (%p128) target = $region28
      $region27: #{_lambda_.6} parent=23 // pred_region
        %p131 = scmp.lt.s32.totalorder %s9, 1
        %s132 = scalar_select %p131, %s9, 1
        %s133 = smul.addr %s132, 6
        %s134 = smul.addr %s133, 4
        %s135 = scalar_lea.vmem %s0, %s134
      $region28: #{_lambda_.6} parent=23 // pred_fallthru
        _
    $region24: #{_lambda_.6} parent=5 // pred_fallthru
      _
    %p136 = scmp.le.s32.totalorder 1, %s9
    %p137 = scmp.lt.s32.totalorder %s9, 3
    %p138 = pnand %p136, %p137
    %p139 = pneg %p138
    // Predicated region
    $region29: #{_lambda_.6} parent=5 // pred_check
      _
    $region30: #{_lambda_.6} parent=5 // pred_check_branch
      %141 = sbr.rel (%p138) target = $region32
    $region31: #{_lambda_.6} parent=5 // pred_region
      %s142 = ssub.s32 %s9, 1
      %p143 = scmp.lt.s32.totalorder %s14, 1
      %s144 = scalar_select %p143, %s14, 1
      %s145 = smul.addr %s144, 6
      %s146 = smul.addr %s145, 4
      %s147 = scalar_lea.vmem %s0, %s146
      %p148 = pneg %p35
      %p149 = pneg %p32
      %p150 = pneg %p56
      %p151 = pneg %p53
      %p152 = pneg %p77
      %p153 = pneg %p74
      %p154 = pneg %p103
      %p155 = pneg %p100
      %p156 = scmp.lt.s32.totalorder %s14, 1
      %s157 = scalar_select %p156, %s14, 1
      %s158 = smul.addr %s157, 8
      %s159 = scalar_lea.vmem %s3, %s158
      %p160 = scmp.lt.s32.totalorder %s14, 1
      %s161 = scalar_select %p160, %s14, 1
      %s162 = smul.addr %s161, 6
      %s163 = smul.addr %s162, 4
      %s164 = scalar_lea.vmem %s0, %s163
      %p165 = scmp.lt.s32.totalorder %s14, 1
      %s166 = scalar_select %p165, %s14, 1
      %s167 = smul.addr %s166, 8
      %s168 = scalar_lea.vmem %s3, %s167
      %v170 = vld [vmem:[%s164] sm:$0xff]
      %v171 = vld [vmem:[%s164 + $0x8] sm:$0xff]
      %v172 = vld [vmem:[%s164 + $0x10] sm:$0xff]
      %v173 = vld [vmem:[%s1] sm:$0xf]
      %v174 = vld [vmem:[%s1 + $0x4] sm:$0xf]
      %v175 = vld [vmem:[%s1 + $0x8] sm:$0xf]
      %v176 = vld [vmem:[%s1 + $0xc] sm:$0xf]
      %v177 = vld [vmem:[%s1 + $0x10] sm:$0xf]
      %v178 = vld [vmem:[%s1 + $0x14] sm:$0xf]
      %v179 = vld [vmem:[%s1 + $0x18] sm:$0xf]
      %v180 = vld [vmem:[%s1 + $0x1c] sm:$0xf]
      %v181 = vld [vmem:[%s1 + $0x20] sm:$0xf]
      %v182 = vld [vmem:[%s1 + $0x24] sm:$0xf]
      %v183 = vld [vmem:[%s1 + $0x28] sm:$0xf]
      %v184 = vld [vmem:[%s1 + $0x2c] sm:$0xf]
      %v185 = vld [vmem:[%s1 + $0x30] sm:$0xf]
      %v186 = vld [vmem:[%s1 + $0x34] sm:$0xf]
      %v187 = vld [vmem:[%s1 + $0x38] sm:$0xf]
      %v188 = vld [vmem:[%s1 + $0x3c] sm:$0xf]
      %v189 = vld [vmem:[%s1 + $0x40] sm:$0xf]
      %v190 = vld [vmem:[%s1 + $0x44] sm:$0xf]
      %v191 = vld [vmem:[%s1 + $0x48] sm:$0xf]
      %v192 = vld [vmem:[%s1 + $0x4c] sm:$0xf]
      %v193 = vld [vmem:[%s1 + $0x50] sm:$0xf]
      %v194 = vld [vmem:[%s1 + $0x54] sm:$0xf]
      %v195 = vld [vmem:[%s1 + $0x58] sm:$0xf]
      %v196 = vld [vmem:[%s1 + $0x5c] sm:$0xf]
      %v197 = vld [vmem:[%s1 + $0x60] sm:$0xf]
      %v198 = vld [vmem:[%s1 + $0x64] sm:$0xf]
      %v199 = vld [vmem:[%s1 + $0x68] sm:$0xf]
      %v200 = vld [vmem:[%s1 + $0x6c] sm:$0xf]
      %v201 = vld [vmem:[%s1 + $0x70] sm:$0xf]
      %v202 = vld [vmem:[%s1 + $0x74] sm:$0xf]
      %v203 = vld [vmem:[%s1 + $0x78] sm:$0xf]
      %v204 = vld [vmem:[%s1 + $0x7c] sm:$0xf]
      %v205 = vld [vmem:[%s1 + $0x80] sm:$0xf]
      %v206 = vld [vmem:[%s1 + $0x84] sm:$0xf]
      %v207 = vld [vmem:[%s1 + $0x88] sm:$0xf]
      %v208 = vld [vmem:[%s1 + $0x8c] sm:$0xf]
      %v209 = vld [vmem:[%s1 + $0x90] sm:$0xf]
      %v210 = vld [vmem:[%s1 + $0x94] sm:$0xf]
      %v211 = vld [vmem:[%s1 + $0x98] sm:$0xf]
      %v212 = vld [vmem:[%s1 + $0x9c] sm:$0xf]
      %v213 = vld [vmem:[%s1 + $0xa0] sm:$0xf]
      %v214 = vld [vmem:[%s1 + $0xa4] sm:$0xf]
      %v215 = vld [vmem:[%s1 + $0xa8] sm:$0xf]
      %v216 = vld [vmem:[%s1 + $0xac] sm:$0xf]
      %v217 = vld [vmem:[%s1 + $0xb0] sm:$0xf]
      %v218 = vld [vmem:[%s1 + $0xb4] sm:$0xf]
      %v219 = vld [vmem:[%s1 + $0xb8] sm:$0xf]
      %v220 = vld [vmem:[%s1 + $0xbc] sm:$0xf]
      %v221 = vld [vmem:[%s1 + $0xc0] sm:$0xf]
      %v222 = vld [vmem:[%s1 + $0xc4] sm:$0xf]
      %v223 = vld [vmem:[%s1 + $0xc8] sm:$0xf]
      %v224 = vld [vmem:[%s1 + $0xcc] sm:$0xf]
      %v225 = vld [vmem:[%s1 + $0xd0] sm:$0xf]
      %v226 = vld [vmem:[%s1 + $0xd4] sm:$0xf]
      %v227 = vld [vmem:[%s1 + $0xd8] sm:$0xf]
      %v228 = vld [vmem:[%s1 + $0xdc] sm:$0xf]
      %v229 = vld [vmem:[%s1 + $0xe0] sm:$0xf]
      %v230 = vld [vmem:[%s1 + $0xe4] sm:$0xf]
      %v231 = vld [vmem:[%s1 + $0xe8] sm:$0xf]
      %v232 = vld [vmem:[%s1 + $0xec] sm:$0xf]
      %v233 = vld [vmem:[%s1 + $0xf0] sm:$0xf]
      %v234 = vld [vmem:[%s1 + $0xf4] sm:$0xf]
      %v235 = vld [vmem:[%s1 + $0xf8] sm:$0xf]
      %v236 = vld [vmem:[%s1 + $0xfc] sm:$0xf]
      %v237 = vld [vmem:[%s1 + $0x100] sm:$0xf]
      %v238 = vld [vmem:[%s1 + $0x104] sm:$0xf]
      %v239 = vld [vmem:[%s1 + $0x108] sm:$0xf]
      %v240 = vld [vmem:[%s1 + $0x10c] sm:$0xf]
      %v241 = vld [vmem:[%s1 + $0x110] sm:$0xf]
      %v242 = vld [vmem:[%s1 + $0x114] sm:$0xf]
      %v243 = vld [vmem:[%s1 + $0x118] sm:$0xf]
      %v244 = vld [vmem:[%s1 + $0x11c] sm:$0xf]
      %v245 = vld [vmem:[%s1 + $0x120] sm:$0xf]
      %v246 = vld [vmem:[%s1 + $0x124] sm:$0xf]
      %v247 = vld [vmem:[%s1 + $0x128] sm:$0xf]
      %v248 = vld [vmem:[%s1 + $0x12c] sm:$0xf]
      %v249 = vld [vmem:[%s1 + $0x130] sm:$0xf]
      %v250 = vld [vmem:[%s1 + $0x134] sm:$0xf]
      %v251 = vld [vmem:[%s1 + $0x138] sm:$0xf]
      %v252 = vld [vmem:[%s1 + $0x13c] sm:$0xf]
      %v253 = vld [vmem:[%s1 + $0x140] sm:$0xf]
      %v254 = vld [vmem:[%s1 + $0x144] sm:$0xf]
      %v255 = vld [vmem:[%s1 + $0x148] sm:$0xf]
      %v256 = vld [vmem:[%s1 + $0x14c] sm:$0xf]
      %v257 = vld [vmem:[%s1 + $0x150] sm:$0xf]
      %v258 = vld [vmem:[%s1 + $0x154] sm:$0xf]
      %v259 = vld [vmem:[%s1 + $0x158] sm:$0xf]
      %v260 = vld [vmem:[%s1 + $0x15c] sm:$0xf]
      %v261 = vld [vmem:[%s1 + $0x160] sm:$0xf]
      %v262 = vld [vmem:[%s1 + $0x164] sm:$0xf]
      %v263 = vld [vmem:[%s1 + $0x168] sm:$0xf]
      %v264 = vld [vmem:[%s1 + $0x16c] sm:$0xf]
      %v265 = vld [vmem:[%s1 + $0x170] sm:$0xf]
      %v266 = vld [vmem:[%s1 + $0x174] sm:$0xf]
      %v267 = vld [vmem:[%s1 + $0x178] sm:$0xf]
      %v268 = vld [vmem:[%s1 + $0x17c] sm:$0xf]
      %v269 = vld [vmem:[%s2] sm:$0xff]
      %v273 = vunpack.c.l.b16 %v170
      %v274 = vunpack.c.h.b16 %v170
      %v275 = vunpack.c.l.b16 %v171
      %v276 = vunpack.c.h.b16 %v171
      %v277 = vunpack.c.l.b16 %v172
      %v278 = vunpack.c.h.b16 %v172
      %v279 = vpack.c.b16 %v273, %v273
      %v280 = vpack.c.b16 %v274, %v274
      %v281 = vpack.c.b16 %v275, %v275
      %v282 = vpack.c.b16 %v276, %v276
      %v283 = vpack.c.b16 %v277, %v277
      %v284 = vpack.c.b16 %v278, %v278
      %v387 = vunpack.c.l.b16 %v173
      %v388 = vunpack.c.l.b16 %v174
      %v389 = vunpack.c.l.b16 %v175
      %v390 = vunpack.c.l.b16 %v176
      %v391 = vunpack.c.l.b16 %v177
      %v392 = vunpack.c.l.b16 %v178
      %v393 = vunpack.c.l.b16 %v179
      %v394 = vunpack.c.l.b16 %v180
      %v395 = vunpack.c.l.b16 %v181
      %v396 = vunpack.c.l.b16 %v182
      %v397 = vunpack.c.l.b16 %v183
      %v398 = vunpack.c.l.b16 %v184
      %v399 = vunpack.c.l.b16 %v185
      %v400 = vunpack.c.l.b16 %v186
      %v401 = vunpack.c.l.b16 %v187
      %v402 = vunpack.c.l.b16 %v188
      %v403 = vunpack.c.l.b16 %v189
      %v404 = vunpack.c.l.b16 %v190
      %v405 = vunpack.c.l.b16 %v191
      %v406 = vunpack.c.l.b16 %v192
      %v407 = vunpack.c.l.b16 %v193
      %v408 = vunpack.c.l.b16 %v194
      %v409 = vunpack.c.l.b16 %v195
      %v410 = vunpack.c.l.b16 %v196
      %v411 = vunpack.c.l.b16 %v197
      %v412 = vunpack.c.l.b16 %v198
      %v413 = vunpack.c.l.b16 %v199
      %v414 = vunpack.c.l.b16 %v200
      %v415 = vunpack.c.l.b16 %v201
      %v416 = vunpack.c.l.b16 %v202
      %v417 = vunpack.c.l.b16 %v203
      %v418 = vunpack.c.l.b16 %v204
      %v419 = vunpack.c.l.b16 %v205
      %v420 = vunpack.c.l.b16 %v206
      %v421 = vunpack.c.l.b16 %v207
      %v422 = vunpack.c.l.b16 %v208
      %v423 = vunpack.c.l.b16 %v209
      %v424 = vunpack.c.l.b16 %v210
      %v425 = vunpack.c.l.b16 %v211
      %v426 = vunpack.c.l.b16 %v212
      %v427 = vunpack.c.l.b16 %v213
      %v428 = vunpack.c.l.b16 %v214
      %v429 = vunpack.c.l.b16 %v215
      %v430 = vunpack.c.l.b16 %v216
      %v431 = vunpack.c.l.b16 %v217
      %v432 = vunpack.c.l.b16 %v218
      %v433 = vunpack.c.l.b16 %v219
      %v434 = vunpack.c.l.b16 %v220
      %v435 = vunpack.c.l.b16 %v221
      %v436 = vunpack.c.l.b16 %v222
      %v437 = vunpack.c.l.b16 %v223
      %v438 = vunpack.c.l.b16 %v224
      %v439 = vunpack.c.l.b16 %v225
      %v440 = vunpack.c.l.b16 %v226
      %v441 = vunpack.c.l.b16 %v227
      %v442 = vunpack.c.l.b16 %v228
      %v443 = vunpack.c.l.b16 %v229
      %v444 = vunpack.c.l.b16 %v230
      %v445 = vunpack.c.l.b16 %v231
      %v446 = vunpack.c.l.b16 %v232
      %v447 = vunpack.c.l.b16 %v233
      %v448 = vunpack.c.l.b16 %v234
      %v449 = vunpack.c.l.b16 %v235
      %v450 = vunpack.c.l.b16 %v236
      %v451 = vunpack.c.l.b16 %v237
      %v452 = vunpack.c.l.b16 %v238
      %v453 = vunpack.c.l.b16 %v239
      %v454 = vunpack.c.l.b16 %v240
      %v455 = vunpack.c.l.b16 %v241
      %v456 = vunpack.c.l.b16 %v242
      %v457 = vunpack.c.l.b16 %v243
      %v458 = vunpack.c.l.b16 %v244
      %v459 = vunpack.c.l.b16 %v245
      %v460 = vunpack.c.l.b16 %v246
      %v461 = vunpack.c.l.b16 %v247
      %v462 = vunpack.c.l.b16 %v248
      %v463 = vunpack.c.l.b16 %v249
      %v464 = vunpack.c.l.b16 %v250
      %v465 = vunpack.c.l.b16 %v251
      %v466 = vunpack.c.l.b16 %v252
      %v467 = vunpack.c.l.b16 %v253
      %v468 = vunpack.c.l.b16 %v254
      %v469 = vunpack.c.l.b16 %v255
      %v470 = vunpack.c.l.b16 %v256
      %v471 = vunpack.c.l.b16 %v257
      %v472 = vunpack.c.l.b16 %v258
      %v473 = vunpack.c.l.b16 %v259
      %v474 = vunpack.c.l.b16 %v260
      %v475 = vunpack.c.l.b16 %v261
      %v476 = vunpack.c.l.b16 %v262
      %v477 = vunpack.c.l.b16 %v263
      %v478 = vunpack.c.l.b16 %v264
      %v479 = vunpack.c.l.b16 %v265
      %v480 = vunpack.c.l.b16 %v266
      %v481 = vunpack.c.l.b16 %v267
      %v482 = vunpack.c.l.b16 %v268
      %v483 = vpack.c.b16 %v388, %v387
      %v484 = vpack.c.b16 %v390, %v389
      %v485 = vpack.c.b16 %v392, %v391
      %v486 = vpack.c.b16 %v394, %v393
      %v487 = vpack.c.b16 %v396, %v395
      %v488 = vpack.c.b16 %v398, %v397
      %v489 = vpack.c.b16 %v400, %v399
      %v490 = vpack.c.b16 %v402, %v401
      %v491 = vpack.c.b16 %v404, %v403
      %v492 = vpack.c.b16 %v406, %v405
      %v493 = vpack.c.b16 %v408, %v407
      %v494 = vpack.c.b16 %v410, %v409
      %v495 = vpack.c.b16 %v412, %v411
      %v496 = vpack.c.b16 %v414, %v413
      %v497 = vpack.c.b16 %v416, %v415
      %v498 = vpack.c.b16 %v418, %v417
      %v499 = vpack.c.b16 %v420, %v419
      %v500 = vpack.c.b16 %v422, %v421
      %v501 = vpack.c.b16 %v424, %v423
      %v502 = vpack.c.b16 %v426, %v425
      %v503 = vpack.c.b16 %v428, %v427
      %v504 = vpack.c.b16 %v430, %v429
      %v505 = vpack.c.b16 %v432, %v431
      %v506 = vpack.c.b16 %v434, %v433
      %v507 = vpack.c.b16 %v436, %v435
      %v508 = vpack.c.b16 %v438, %v437
      %v509 = vpack.c.b16 %v440, %v439
      %v510 = vpack.c.b16 %v442, %v441
      %v511 = vpack.c.b16 %v444, %v443
      %v512 = vpack.c.b16 %v446, %v445
      %v513 = vpack.c.b16 %v448, %v447
      %v514 = vpack.c.b16 %v450, %v449
      %v515 = vpack.c.b16 %v452, %v451
      %v516 = vpack.c.b16 %v454, %v453
      %v517 = vpack.c.b16 %v456, %v455
      %v518 = vpack.c.b16 %v458, %v457
      %v519 = vpack.c.b16 %v460, %v459
      %v520 = vpack.c.b16 %v462, %v461
      %v521 = vpack.c.b16 %v464, %v463
      %v522 = vpack.c.b16 %v466, %v465
      %v523 = vpack.c.b16 %v468, %v467
      %v524 = vpack.c.b16 %v470, %v469
      %v525 = vpack.c.b16 %v472, %v471
      %v526 = vpack.c.b16 %v474, %v473
      %v527 = vpack.c.b16 %v476, %v475
      %v528 = vpack.c.b16 %v478, %v477
      %v529 = vpack.c.b16 %v480, %v479
      %v530 = vpack.c.b16 %v482, %v481
      %579 = vmatprep.subr.bf16.mxu0 0
      %580 = vmatpush1.bf16.msra.mxu0 %v483
      %581 = vmatprep.subr.bf16.mxu0 0
      %582 = vmatpush1.bf16.msra.mxu0 %v484
      %583 = vmatprep.subr.bf16.mxu0 0
      %584 = vmatpush1.bf16.msra.mxu0 %v485
      %585 = vmatprep.subr.bf16.mxu0 0
      %586 = vmatpush1.bf16.msra.mxu0 %v486
      %587 = vmatprep.subr.bf16.mxu0 0
      %588 = vmatpush1.bf16.msra.mxu0 %v487
      %589 = vmatprep.subr.bf16.mxu0 0
      %590 = vmatpush1.bf16.msra.mxu0 %v488
      %591 = vmatprep.subr.bf16.mxu0 0
      %592 = vmatpush1.bf16.msra.mxu0 %v489
      %593 = vmatprep.subr.bf16.mxu0 0
      %594 = vmatpush1.bf16.msra.mxu0 %v490
      %595 = vmatprep.subr.bf16.mxu0 0
      %596 = vmatpush1.bf16.msra.mxu0 %v491
      %597 = vmatprep.subr.bf16.mxu0 0
      %598 = vmatpush1.bf16.msra.mxu0 %v492
      %599 = vmatprep.subr.bf16.mxu0 0
      %600 = vmatpush1.bf16.msra.mxu0 %v493
      %601 = vmatprep.subr.bf16.mxu0 0
      %602 = vmatpush1.bf16.msra.mxu0 %v494
      %603 = vmatprep.subr.bf16.mxu0 0
      %604 = vmatpush1.bf16.msra.mxu0 %v495
      %605 = vmatprep.subr.bf16.mxu0 0
      %606 = vmatpush1.bf16.msra.mxu0 %v496
      %607 = vmatprep.subr.bf16.mxu0 0
      %608 = vmatpush1.bf16.msra.mxu0 %v497
      %609 = vmatprep.subr.bf16.mxu0 0
      %610 = vmatpush1.bf16.msra.mxu0 %v498
      %611 = vmatprep.mubr.bf16.mxu0 %v280
      %612 = vmatmul.mubr.bf16.gmra.mrb[0].mxu0 %v279
      %v613 = vpop.f32.mrb[0].mxu0
      %v614 = vadd.f32 %v269, %v613
      %v615 = vpop.f32.mrb[0].mxu0
      %v616 = vpop.f32.mrb[0].mxu0
      %v617 = vpop.f32.mrb[0].mxu0
      %618 = vdwg.mxu0
      %619 = vmatprep.subr.bf16.mxu0 0
      %620 = vmatpush1.bf16.msra.mxu0 %v499
      %621 = vmatprep.subr.bf16.mxu0 0
      %622 = vmatpush1.bf16.msra.mxu0 %v500
      %623 = vmatprep.subr.bf16.mxu0 0
      %624 = vmatpush1.bf16.msra.mxu0 %v501
      %625 = vmatprep.subr.bf16.mxu0 0
      %626 = vmatpush1.bf16.msra.mxu0 %v502
      %627 = vmatprep.subr.bf16.mxu0 0
      %628 = vmatpush1.bf16.msra.mxu0 %v503
      %629 = vmatprep.subr.bf16.mxu0 0
      %630 = vmatpush1.bf16.msra.mxu0 %v504
      %631 = vmatprep.subr.bf16.mxu0 0
      %632 = vmatpush1.bf16.msra.mxu0 %v505
      %633 = vmatprep.subr.bf16.mxu0 0
      %634 = vmatpush1.bf16.msra.mxu0 %v506
      %635 = vmatprep.subr.bf16.mxu0 0
      %636 = vmatpush1.bf16.msra.mxu0 %v507
      %637 = vmatprep.subr.bf16.mxu0 0
      %638 = vmatpush1.bf16.msra.mxu0 %v508
      %639 = vmatprep.subr.bf16.mxu0 0
      %640 = vmatpush1.bf16.msra.mxu0 %v509
      %641 = vmatprep.subr.bf16.mxu0 0
      %642 = vmatpush1.bf16.msra.mxu0 %v510
      %643 = vmatprep.subr.bf16.mxu0 0
      %644 = vmatpush1.bf16.msra.mxu0 %v511
      %645 = vmatprep.subr.bf16.mxu0 0
      %646 = vmatpush1.bf16.msra.mxu0 %v512
      %647 = vmatprep.subr.bf16.mxu0 0
      %648 = vmatpush1.bf16.msra.mxu0 %v513
      %649 = vmatprep.subr.bf16.mxu0 0
      %650 = vmatpush1.bf16.msra.mxu0 %v514
      %651 = vmatprep.mubr.bf16.mxu0 %v282
      %652 = vmatmul.mubr.bf16.gmra.mrb[0].mxu0 %v281
      %v653 = vpop.f32.mrb[0].mxu0
      %v654 = vadd.f32 %v614, %v653
      %v655 = vpop.f32.mrb[0].mxu0
      %v656 = vpop.f32.mrb[0].mxu0
      %v657 = vpop.f32.mrb[0].mxu0
      %658 = vdwg.mxu0
      %659 = vmatprep.subr.bf16.mxu0 0
      %660 = vmatpush1.bf16.msra.mxu0 %v515
      %661 = vmatprep.subr.bf16.mxu0 0
      %662 = vmatpush1.bf16.msra.mxu0 %v516
      %663 = vmatprep.subr.bf16.mxu0 0
      %664 = vmatpush1.bf16.msra.mxu0 %v517
      %665 = vmatprep.subr.bf16.mxu0 0
      %666 = vmatpush1.bf16.msra.mxu0 %v518
      %667 = vmatprep.subr.bf16.mxu0 0
      %668 = vmatpush1.bf16.msra.mxu0 %v519
      %669 = vmatprep.subr.bf16.mxu0 0
      %670 = vmatpush1.bf16.msra.mxu0 %v520
      %671 = vmatprep.subr.bf16.mxu0 0
      %672 = vmatpush1.bf16.msra.mxu0 %v521
      %673 = vmatprep.subr.bf16.mxu0 0
      %674 = vmatpush1.bf16.msra.mxu0 %v522
      %675 = vmatprep.subr.bf16.mxu0 0
      %676 = vmatpush1.bf16.msra.mxu0 %v523
      %677 = vmatprep.subr.bf16.mxu0 0
      %678 = vmatpush1.bf16.msra.mxu0 %v524
      %679 = vmatprep.subr.bf16.mxu0 0
      %680 = vmatpush1.bf16.msra.mxu0 %v525
      %681 = vmatprep.subr.bf16.mxu0 0
      %682 = vmatpush1.bf16.msra.mxu0 %v526
      %683 = vmatprep.subr.bf16.mxu0 0
      %684 = vmatpush1.bf16.msra.mxu0 %v527
      %685 = vmatprep.subr.bf16.mxu0 0
      %686 = vmatpush1.bf16.msra.mxu0 %v528
      %687 = vmatprep.subr.bf16.mxu0 0
      %688 = vmatpush1.bf16.msra.mxu0 %v529
      %689 = vmatprep.subr.bf16.mxu0 0
      %690 = vmatpush1.bf16.msra.mxu0 %v530
      %691 = vmatprep.mubr.bf16.mxu0 %v284
      %692 = vmatmul.mubr.bf16.gmra.mrb[0].mxu0 %v283
      %v693 = vpop.f32.mrb[0].mxu0
      %v694 = vadd.f32 %v654, %v693
      %v695 = vpop.f32.mrb[0].mxu0
      %v696 = vpop.f32.mrb[0].mxu0
      %v697 = vpop.f32.mrb[0].mxu0
      %698 = vdwg.mxu0
      %vm699 = vcmask 523264
      %700 = vst.msk [vmem:[%s168] sm:$0xff] %vm699, %v694
      %p701 = scmp.lt.s32.totalorder %s14, 1
      %s702 = scalar_select %p701, %s14, 1
      %s703 = smul.addr %s702, 8
      %s704 = scalar_lea.vmem %s3, %s703
      // Predicated region
      $region33: #{_lambda_.6} parent=31 // pred_check
        %p705 = pneg %p100
      $region34: #{_lambda_.6} parent=31 // pred_check_branch
        %707 = sbr.rel (%p705) target = $region36
      $region35: #{_lambda_.6} parent=31 // pred_region
        _
      $region36: #{_lambda_.6} parent=31 // pred_fallthru
        _
    $region32: #{_lambda_.6} parent=5 // pred_fallthru
      _
    %p708 = scmp.le.s32.totalorder 2, %s9
    // Predicated region
    $region37: #{_lambda_.6} parent=5 // pred_check
      %p709 = pneg %p708
    $region38: #{_lambda_.6} parent=5 // pred_check_branch
      %711 = sbr.rel (%p709) target = $region40
    $region39: #{_lambda_.6} parent=5 // pred_region
      %s712 = ssub.s32 %s9, 2
      // Predicated region
      $region41: #{_lambda_.6} parent=39 // pred_check
        %p713 = pneg %p106
      $region42: #{_lambda_.6} parent=39 // pred_check_branch
        %715 = sbr.rel (%p713) target = $region44
      $region43: #{_lambda_.6} parent=39 // pred_region
        %p716 = scmp.lt.s32.totalorder %s15, 1
        %s717 = scalar_select %p716, %s15, 1
        %s718 = smul.addr %s717, 8
        %s719 = scalar_lea.vmem %s3, %s718
      $region44: #{_lambda_.6} parent=39 // pred_fallthru
        _
    $region40: #{_lambda_.6} parent=5 // pred_fallthru
      _
  $region6: #{_lambda_.6} parent=0 // loop_footer
    %s13 = sadd.s32 1, %s9
  $region7: #{_lambda_.6} parent=0 // loop_footer_branch
    %8 = sbr.rel target = $region3
  $region8: #{_lambda_.6} parent=0 // loop_exit
    _

// kernel: _lambda_.8
$region0: #{_lambda_.8}
  #allocation0 [shape = 'u32[]', space=smem, size = 0x4, offset = 0x4, fixed_abs, tag = 'smem constant byte address 0x4 - core index']
  #allocation1 [shape = 'u32[144,128]{1,0:T(1,128)}', space=vmem, size = 0x12000, scoped, tag = 'internal scratch']
  %s0 = inlined_call_operand.vmem [shape: f32[2,8,64], index: 0, kind: input, shape index: {}, may-alias: {0,7}]
  %s1 = inlined_call_operand.vmem [shape: f32[1,64], index: 1, kind: input, shape index: {}]
  %s2 = inlined_call_operand.vmem [shape: f32[1,64], index: 2, kind: input, shape index: {}]
  %s3 = inlined_call_operand.vmem [shape: bf16[64,256], index: 3, kind: input, shape index: {}]
  %s4 = inlined_call_operand.vmem [shape: f32[1,256], index: 4, kind: input, shape index: {}]
  %s5 = inlined_call_operand.vmem [shape: bf16[256,64], index: 5, kind: input, shape index: {}]
  %s6 = inlined_call_operand.vmem [shape: f32[1,64], index: 6, kind: input, shape index: {}]
  %s7 = inlined_call_operand.vmem [shape: f32[2,8,64], index: 7, kind: output, shape index: {}, may-alias: {0,7}]
  %s8 = sld [smem:[#allocation0]]
  $region61: #{_lambda_.8} parent=0
    _
  %s10 = ssub.s32 1, %s8
  %s11 = scalar_select 0, %s10, %s8
  loop: start=0, step=1, limit=4
  $region2: #{_lambda_.8} parent=0 // loop_pre_header
    _
  $region3: #{_lambda_.8} parent=0 // loop_header
    %s13 = sphi 0, %s17
    %p14 = scmp.ge.s32.totalorder %s13, 4
    %s23 = sphi 0, %s25
    %s26 = sphi 0, %s23
    %s27 = sphi 0, %s26
    %s43 = sphi 0, %s27
    %s47 = sphi 0, %s47
    %s49 = sphi 0, %s47
    %s50 = sphi 0, %s49
    %s64 = sphi 0, %s50
    %s68 = sphi 0, %s68
    %s70 = sphi 0, %s68
    %s71 = sphi 0, %s70
    %s85 = sphi 0, %s71
    %s89 = sphi 0, %s89
    %s91 = sphi 0, %s89
    %s92 = sphi 0, %s91
    %s106 = sphi 0, %s92
    %s110 = sphi 0, %s110
    %s112 = sphi 0, %s110
    %s113 = sphi 0, %s112
    %s127 = sphi 0, %s113
    %s131 = sphi 0, %s131
    %s133 = sphi 0, %s131
    %s134 = sphi 0, %s133
    %s148 = sphi 0, %s134
    %s152 = sphi 0, %s152
    %s154 = sphi 0, %s152
    %s155 = sphi 0, %s154
    %s169 = sphi 0, %s155
    %s175 = sphi 0, %s177
    %s178 = sphi 0, %s175
    %s179 = sphi 0, %s178
    %s195 = sphi 0, %s179
  $region4: #{_lambda_.8} parent=0 // loop_header_branch
    %16 = sbr.rel (%p14) target = $region8
  $region5: #{_lambda_.8} parent=0 // loop_body
    %s18 = ssub.s32 %s13, 1
    %s19 = ssub.s32 %s13, 2
    %s20 = sadd.s32 %s13, 1
    %s21 = ssub.s32 %s13, %s20
    %p22 = scmp.eq.s32.totalorder %s21, 0
    %s24 = sadd.s32 %s23, 1
    %s25 = scalar_select %p22, %s23, %s24
    %p28 = pneg %p22
    %p29 = scmp.eq.s32.totalorder %s13, 1
    %p30 = por %p28, %p29
    %p31 = scmp.ne.s32.totalorder %s23, %s26
    %p32 = scmp.eq.s32.totalorder %s13, 0
    %p33 = por %p31, %p32
    %p34 = scmp.ne.s32.totalorder %s23, %s26
    %p35 = scmp.eq.s32.totalorder %s18, 1
    %p36 = por %p34, %p35
    %p37 = scmp.ne.s32.totalorder %s26, %s27
    %p38 = scmp.eq.s32.totalorder %s18, 0
    %p39 = por %p37, %p38
    %p40 = scmp.ne.s32.totalorder %s26, %s27
    %p41 = scmp.eq.s32.totalorder %s19, 1
    %p42 = por %p40, %p41
    %p44 = scmp.ne.s32.totalorder %s27, %s43
    %p45 = scmp.eq.s32.totalorder %s19, 0
    %p46 = por %p44, %p45
    %s48 = sadd.s32 %s47, 1
    %p51 = scmp.eq.s32.totalorder %s13, 1
    %p52 = scmp.ne.s32.totalorder %s47, %s49
    %p53 = scmp.eq.s32.totalorder %s13, 0
    %p54 = por %p52, %p53
    %p55 = scmp.ne.s32.totalorder %s47, %s49
    %p56 = scmp.eq.s32.totalorder %s18, 1
    %p57 = por %p55, %p56
    %p58 = scmp.ne.s32.totalorder %s49, %s50
    %p59 = scmp.eq.s32.totalorder %s18, 0
    %p60 = por %p58, %p59
    %p61 = scmp.ne.s32.totalorder %s49, %s50
    %p62 = scmp.eq.s32.totalorder %s19, 1
    %p63 = por %p61, %p62
    %p65 = scmp.ne.s32.totalorder %s50, %s64
    %p66 = scmp.eq.s32.totalorder %s19, 0
    %p67 = por %p65, %p66
    %s69 = sadd.s32 %s68, 1
    %p72 = scmp.eq.s32.totalorder %s13, 1
    %p73 = scmp.ne.s32.totalorder %s68, %s70
    %p74 = scmp.eq.s32.totalorder %s13, 0
    %p75 = por %p73, %p74
    %p76 = scmp.ne.s32.totalorder %s68, %s70
    %p77 = scmp.eq.s32.totalorder %s18, 1
    %p78 = por %p76, %p77
    %p79 = scmp.ne.s32.totalorder %s70, %s71
    %p80 = scmp.eq.s32.totalorder %s18, 0
    %p81 = por %p79, %p80
    %p82 = scmp.ne.s32.totalorder %s70, %s71
    %p83 = scmp.eq.s32.totalorder %s19, 1
    %p84 = por %p82, %p83
    %p86 = scmp.ne.s32.totalorder %s71, %s85
    %p87 = scmp.eq.s32.totalorder %s19, 0
    %p88 = por %p86, %p87
    %s90 = sadd.s32 %s89, 1
    %p93 = scmp.eq.s32.totalorder %s13, 1
    %p94 = scmp.ne.s32.totalorder %s89, %s91
    %p95 = scmp.eq.s32.totalorder %s13, 0
    %p96 = por %p94, %p95
    %p97 = scmp.ne.s32.totalorder %s89, %s91
    %p98 = scmp.eq.s32.totalorder %s18, 1
    %p99 = por %p97, %p98
    %p100 = scmp.ne.s32.totalorder %s91, %s92
    %p101 = scmp.eq.s32.totalorder %s18, 0
    %p102 = por %p100, %p101
    %p103 = scmp.ne.s32.totalorder %s91, %s92
    %p104 = scmp.eq.s32.totalorder %s19, 1
    %p105 = por %p103, %p104
    %p107 = scmp.ne.s32.totalorder %s92, %s106
    %p108 = scmp.eq.s32.totalorder %s19, 0
    %p109 = por %p107, %p108
    %s111 = sadd.s32 %s110, 1
    %p114 = scmp.eq.s32.totalorder %s13, 1
    %p115 = scmp.ne.s32.totalorder %s110, %s112
    %p116 = scmp.eq.s32.totalorder %s13, 0
    %p117 = por %p115, %p116
    %p118 = scmp.ne.s32.totalorder %s110, %s112
    %p119 = scmp.eq.s32.totalorder %s18, 1
    %p120 = por %p118, %p119
    %p121 = scmp.ne.s32.totalorder %s112, %s113
    %p122 = scmp.eq.s32.totalorder %s18, 0
    %p123 = por %p121, %p122
    %p124 = scmp.ne.s32.totalorder %s112, %s113
    %p125 = scmp.eq.s32.totalorder %s19, 1
    %p126 = por %p124, %p125
    %p128 = scmp.ne.s32.totalorder %s113, %s127
    %p129 = scmp.eq.s32.totalorder %s19, 0
    %p130 = por %p128, %p129
    %s132 = sadd.s32 %s131, 1
    %p135 = scmp.eq.s32.totalorder %s13, 1
    %p136 = scmp.ne.s32.totalorder %s131, %s133
    %p137 = scmp.eq.s32.totalorder %s13, 0
    %p138 = por %p136, %p137
    %p139 = scmp.ne.s32.totalorder %s131, %s133
    %p140 = scmp.eq.s32.totalorder %s18, 1
    %p141 = por %p139, %p140
    %p142 = scmp.ne.s32.totalorder %s133, %s134
    %p143 = scmp.eq.s32.totalorder %s18, 0
    %p144 = por %p142, %p143
    %p145 = scmp.ne.s32.totalorder %s133, %s134
    %p146 = scmp.eq.s32.totalorder %s19, 1
    %p147 = por %p145, %p146
    %p149 = scmp.ne.s32.totalorder %s134, %s148
    %p150 = scmp.eq.s32.totalorder %s19, 0
    %p151 = por %p149, %p150
    %s153 = sadd.s32 %s152, 1
    %p156 = scmp.eq.s32.totalorder %s13, 1
    %p157 = scmp.ne.s32.totalorder %s152, %s154
    %p158 = scmp.eq.s32.totalorder %s13, 0
    %p159 = por %p157, %p158
    %p160 = scmp.ne.s32.totalorder %s152, %s154
    %p161 = scmp.eq.s32.totalorder %s18, 1
    %p162 = por %p160, %p161
    %p163 = scmp.ne.s32.totalorder %s154, %s155
    %p164 = scmp.eq.s32.totalorder %s18, 0
    %p165 = por %p163, %p164
    %p166 = scmp.ne.s32.totalorder %s154, %s155
    %p167 = scmp.eq.s32.totalorder %s19, 1
    %p168 = por %p166, %p167
    %p170 = scmp.ne.s32.totalorder %s155, %s169
    %p171 = scmp.eq.s32.totalorder %s19, 0
    %p172 = por %p170, %p171
    %s173 = ssub.s32 %s13, %s20
    %p174 = scmp.eq.s32.totalorder %s173, 0
    %s176 = sadd.s32 %s175, 1
    %s177 = scalar_select %p174, %s175, %s176
    %p180 = pneg %p174
    %p181 = scmp.eq.s32.totalorder %s13, 1
    %p182 = por %p180, %p181
    %p183 = scmp.ne.s32.totalorder %s175, %s178
    %p184 = scmp.eq.s32.totalorder %s13, 0
    %p185 = por %p183, %p184
    %p186 = scmp.ne.s32.totalorder %s175, %s178
    %p187 = scmp.eq.s32.totalorder %s18, 1
    %p188 = por %p186, %p187
    %p189 = scmp.ne.s32.totalorder %s178, %s179
    %p190 = scmp.eq.s32.totalorder %s18, 0
    %p191 = por %p189, %p190
    %p192 = scmp.ne.s32.totalorder %s178, %s179
    %p193 = scmp.eq.s32.totalorder %s19, 1
    %p194 = por %p192, %p193
    %p196 = scmp.ne.s32.totalorder %s179, %s195
    %p197 = scmp.eq.s32.totalorder %s19, 0
    %p198 = por %p196, %p197
    %p199 = scmp.le.s32.totalorder 1, %s13
    %p200 = scmp.lt.s32.totalorder %s13, 3
    %p201 = pnand %p199, %p200
    %p202 = pneg %p201
    // Predicated region
    $region9: #{_lambda_.8} parent=5 // pred_check
      _
    $region10: #{_lambda_.8} parent=5 // pred_check_branch
      %204 = sbr.rel (%p201) target = $region12
    $region11: #{_lambda_.8} parent=5 // pred_region
      %s205 = ssub.s32 %s13, 1
      // Predicated region
      $region13: #{_lambda_.8} parent=11 // pred_check
        %p206 = pneg %p60
      $region14: #{_lambda_.8} parent=11 // pred_check_branch
        %208 = sbr.rel (%p206) target = $region16
      $region15: #{_lambda_.8} parent=11 // pred_region
        _
      $region16: #{_lambda_.8} parent=11 // pred_fallthru
        _
      // Predicated region
      $region17: #{_lambda_.8} parent=11 // pred_check
        %p209 = pneg %p81
      $region18: #{_lambda_.8} parent=11 // pred_check_branch
        %211 = sbr.rel (%p209) target = $region20
      $region19: #{_lambda_.8} parent=11 // pred_region
        _
      $region20: #{_lambda_.8} parent=11 // pred_fallthru
        _
      // Predicated region
      $region21: #{_lambda_.8} parent=11 // pred_check
        %p212 = pneg %p102
      $region22: #{_lambda_.8} parent=11 // pred_check_branch
        %214 = sbr.rel (%p212) target = $region24
      $region23: #{_lambda_.8} parent=11 // pred_region
        _
      $region24: #{_lambda_.8} parent=11 // pred_fallthru
        _
      // Predicated region
      $region25: #{_lambda_.8} parent=11 // pred_check
        %p215 = pneg %p123
      $region26: #{_lambda_.8} parent=11 // pred_check_branch
        %217 = sbr.rel (%p215) target = $region28
      $region27: #{_lambda_.8} parent=11 // pred_region
        _
      $region28: #{_lambda_.8} parent=11 // pred_fallthru
        _
      // Predicated region
      $region29: #{_lambda_.8} parent=11 // pred_check
        %p218 = pneg %p144
      $region30: #{_lambda_.8} parent=11 // pred_check_branch
        %220 = sbr.rel (%p218) target = $region32
      $region31: #{_lambda_.8} parent=11 // pred_region
        _
      $region32: #{_lambda_.8} parent=11 // pred_fallthru
        _
      // Predicated region
      $region33: #{_lambda_.8} parent=11 // pred_check
        %p221 = pneg %p165
      $region34: #{_lambda_.8} parent=11 // pred_check_branch
        %223 = sbr.rel (%p221) target = $region36
      $region35: #{_lambda_.8} parent=11 // pred_region
        _
      $region36: #{_lambda_.8} parent=11 // pred_fallthru
        _
    $region12: #{_lambda_.8} parent=5 // pred_fallthru
      _
    %p224 = scmp.lt.s32.totalorder %s13, 2
    // Predicated region
    $region37: #{_lambda_.8} parent=5 // pred_check
      %p225 = pneg %p224
    $region38: #{_lambda_.8} parent=5 // pred_check_branch
      %227 = sbr.rel (%p225) target = $region40
    $region39: #{_lambda_.8} parent=5 // pred_region
      // Predicated region
      $region41: #{_lambda_.8} parent=39 // pred_check
        %p228 = pneg %p33
      $region42: #{_lambda_.8} parent=39 // pred_check_branch
        %230 = sbr.rel (%p228) target = $region44
      $region43: #{_lambda_.8} parent=39 // pred_region
        %p231 = scmp.lt.s32.totalorder %s13, 1
        %s232 = scalar_select %p231, %s13, 1
        %s233 = smul.addr %s232, 8
        %s234 = scalar_lea.vmem %s0, %s233
      $region44: #{_lambda_.8} parent=39 // pred_fallthru
        _
    $region40: #{_lambda_.8} parent=5 // pred_fallthru
      _
    %p235 = scmp.le.s32.totalorder 1, %s13
    %p236 = scmp.lt.s32.totalorder %s13, 3
    %p237 = pnand %p235, %p236
    %p238 = pneg %p237
    // Predicated region
    $region45: #{_lambda_.8} parent=5 // pred_check
      _
    $region46: #{_lambda_.8} parent=5 // pred_check_branch
      %240 = sbr.rel (%p237) target = $region48
    $region47: #{_lambda_.8} parent=5 // pred_region
      %s241 = ssub.s32 %s13, 1
      %p242 = scmp.lt.s32.totalorder %s18, 1
      %s243 = scalar_select %p242, %s18, 1
      %s244 = smul.addr %s243, 8
      %s245 = scalar_lea.vmem %s0, %s244
      %p246 = pneg %p39
      %p247 = pneg %p36
      %p248 = pneg %p60
      %p249 = pneg %p57
      %p250 = pneg %p81
      %p251 = pneg %p78
      %p252 = pneg %p102
      %p253 = pneg %p99
      %p254 = pneg %p123
      %p255 = pneg %p120
      %p256 = pneg %p144
      %p257 = pneg %p141
      %p258 = pneg %p165
      %p259 = pneg %p162
      %p260 = pneg %p191
      %p261 = pneg %p188
      %p262 = scmp.lt.s32.totalorder %s18, 1
      %s263 = scalar_select %p262, %s18, 1
      %s264 = smul.addr %s263, 8
      %s265 = scalar_lea.vmem %s7, %s264
      %p266 = scmp.lt.s32.totalorder %s18, 1
      %s267 = scalar_select %p266, %s18, 1
      %s268 = smul.addr %s267, 8
      %s269 = scalar_lea.vmem %s0, %s268
      %p270 = scmp.lt.s32.totalorder %s18, 1
      %s271 = scalar_select %p270, %s18, 1
      %s272 = smul.addr %s271, 8
      %s273 = scalar_lea.vmem %s7, %s272
      %v275 = vld [vmem:[%s269] sm:$0xff]
      %v276 = vld [vmem:[%s1] sm:$0x1]
      %v277 = vld [vmem:[%s2] sm:$0x1]
      %vm278 = vcmask 523264
      %v279 = vsel %vm278, %v275, 0.0
      %280 = vadd.xlane.f32.xlu0 %v279
      %v281 = vpop.xlane.xlu0 %280
      %v282 = vrcp.pop 64.0
      %v283 = vmul.f32 %v281, %v282
      %v284 = vsub.f32 %v275, %v283
      %v285 = vmul.f32 %v284, %v284
      %v286 = vsel %vm278, %v285, 0.0
      %287 = vadd.xlane.f32.xlu0 %v286
      %v288 = vpop.xlane.xlu0 %287
      %v289 = vmul.f32 %v288, %v282
      %v290 = vadd.f32 %v289, 1e-06
      %v291 = vrsqrt.pop %v290
      %v292 = vmul.f32 %v284, %v291
      %v294 = vlaneseq
      %v295 = vshrl.u32 %v294, 7
      %v296 = vsub.s32 0, %v295
      %v297 = vrot.slane %v276, %v296
      %v299 = vmul.f32 %v292, %v297
      %v301 = vlaneseq
      %v302 = vshrl.u32 %v301, 7
      %v303 = vsub.s32 0, %v302
      %v304 = vrot.slane %v277, %v303
      %v306 = vadd.f32 %v299, %v304
      %v307 = vpack.c.bf16 %v306, %v306
      %v308 = vld [vmem:[%s3] sm:$0xff]
      %v309 = vld [vmem:[%s3 + $0x8] sm:$0xff]
      %v310 = vld [vmem:[%s3 + $0x10] sm:$0xff]
      %v311 = vld [vmem:[%s3 + $0x18] sm:$0xff]
      %v312 = vld [vmem:[%s3 + $0x20] sm:$0xff]
      %v313 = vld [vmem:[%s3 + $0x28] sm:$0xff]
      %v314 = vld [vmem:[%s3 + $0x30] sm:$0xff]
      %v315 = vld [vmem:[%s3 + $0x38] sm:$0xff]
      %v316 = vld [vmem:[%s4] sm:$0x3]
      %v318 = vlaneseq
      %v319 = vshrl.u32 %v318, 7
      %v320 = vsub.s32 0, %v319
      %v321 = vrot.slane %v316, %v320
      %v322 = vlaneseq
      %v323 = vshrl.u32 %v322, 7
      %v324 = vsub.s32 1, %v323
      %v325 = vrot.slane %v316, %v324
      %v336 = vunpack.c.l.b16 %v308
      %v337 = vunpack.c.h.b16 %v308
      %v338 = vunpack.c.l.b16 %v309
      %v339 = vunpack.c.h.b16 %v309
      %v340 = vunpack.c.l.b16 %v310
      %v341 = vunpack.c.h.b16 %v310
      %v342 = vunpack.c.l.b16 %v311
      %v343 = vunpack.c.h.b16 %v311
      %v344 = vunpack.c.l.b16 %v312
      %v345 = vunpack.c.h.b16 %v312
      %v346 = vunpack.c.l.b16 %v313
      %v347 = vunpack.c.h.b16 %v313
      %v348 = vunpack.c.l.b16 %v314
      %v349 = vunpack.c.h.b16 %v314
      %v350 = vunpack.c.l.b16 %v315
      %v351 = vunpack.c.h.b16 %v315
      %v352 = vpack.c.b16 %v338, %v336
      %v353 = vpack.c.b16 %v339, %v337
      %v354 = vpack.c.b16 %v342, %v340
      %v355 = vpack.c.b16 %v343, %v341
      %v356 = vpack.c.b16 %v346, %v344
      %v357 = vpack.c.b16 %v347, %v345
      %v358 = vpack.c.b16 %v350, %v348
      %v359 = vpack.c.b16 %v351, %v349
      %v369 = vsel %vm278, %v307, 0
      %371 = vmatprep.subr.bf16.mxu0 %v353
      %372 = vmatpush1.bf16.msra.mxu0 %v352
      %373 = vmatprep.subr.bf16.mxu0 %v355
      %374 = vmatpush1.bf16.msra.mxu0 %v354
      %375 = vmatprep.subr.bf16.mxu0 %v357
      %376 = vmatpush1.bf16.msra.mxu0 %v356
      %377 = vmatprep.subr.bf16.mxu0 %v359
      %378 = vmatpush1.bf16.msra.mxu0 %v358
      %379 = vmatprep.subr.bf16.mxu0 0
      %380 = vmatpush1.bf16.msra.mxu0 0
      %381 = vmatprep.subr.bf16.mxu0 0
      %382 = vmatpush1.bf16.msra.mxu0 0
      %383 = vmatprep.subr.bf16.mxu0 0
      %384 = vmatpush1.bf16.msra.mxu0 0
      %385 = vmatprep.subr.bf16.mxu0 0
      %386 = vmatpush1.bf16.msra.mxu0 0
      %387 = vmatprep.subr.bf16.mxu0 0
      %388 = vmatpush1.bf16.msra.mxu0 0
      %389 = vmatprep.subr.bf16.mxu0 0
      %390 = vmatpush1.bf16.msra.mxu0 0
      %391 = vmatprep.subr.bf16.mxu0 0
      %392 = vmatpush1.bf16.msra.mxu0 0
      %393 = vmatprep.subr.bf16.mxu0 0
      %394 = vmatpush1.bf16.msra.mxu0 0
      %395 = vmatprep.subr.bf16.mxu0 0
      %396 = vmatpush1.bf16.msra.mxu0 0
      %397 = vmatprep.subr.bf16.mxu0 0
      %398 = vmatpush1.bf16.msra.mxu0 0
      %399 = vmatprep.subr.bf16.mxu0 0
      %400 = vmatpush1.bf16.msra.mxu0 0
      %401 = vmatprep.subr.bf16.mxu0 0
      %402 = vmatpush1.bf16.msra.mxu0 0
      %403 = vmatprep.mubr.bf16.mxu0 0
      %404 = vmatmul.mubr.bf16.gmra.mrb[0].mxu0 %v369
      %v405 = vpop.f32.mrb[0].mxu0
      %v406 = vadd.f32 %v321, %v405
      %v407 = vpop.f32.mrb[0].mxu0
      %v408 = vadd.f32 %v325, %v407
      %v409 = vpop.f32.mrb[0].mxu0
      %v410 = vpop.f32.mrb[0].mxu0
      %411 = vdwg.mxu0
      %v412 = vmul.f32 %v406, 0.5
      %v413 = vmul.f32 %v408, 0.5
      %v414 = vmul.f32 %v406, 0.70710677
      %v415 = vmul.f32 %v408, 0.70710677
      %v416 = verf.f32.pop %v414
      %v417 = verf.f32.pop %v415
      %v418 = vadd.f32 %v416, 1.0
      %v419 = vadd.f32 %v417, 1.0
      %v420 = vmul.f32 %v412, %v418
      %v421 = vmul.f32 %v413, %v419
      %v422 = vpack.c.bf16 %v420, %v420
      %v423 = vpack.c.bf16 %v421, %v421
      %v424 = vld [vmem:[%s5] sm:$0xf]
      %v425 = vld [vmem:[%s5 + $0x4] sm:$0xf]
      %v426 = vld [vmem:[%s5 + $0x8] sm:$0xf]
      %v427 = vld [vmem:[%s5 + $0xc] sm:$0xf]
      %v428 = vld [vmem:[%s5 + $0x10] sm:$0xf]
      %v429 = vld [vmem:[%s5 + $0x14] sm:$0xf]
      %v430 = vld [vmem:[%s5 + $0x18] sm:$0xf]
      %v431 = vld [vmem:[%s5 + $0x1c] sm:$0xf]
      %v432 = vld [vmem:[%s5 + $0x20] sm:$0xf]
      %v433 = vld [vmem:[%s5 + $0x24] sm:$0xf]
      %v434 = vld [vmem:[%s5 + $0x28] sm:$0xf]
      %v435 = vld [vmem:[%s5 + $0x2c] sm:$0xf]
      %v436 = vld [vmem:[%s5 + $0x30] sm:$0xf]
      %v437 = vld [vmem:[%s5 + $0x34] sm:$0xf]
      %v438 = vld [vmem:[%s5 + $0x38] sm:$0xf]
      %v439 = vld [vmem:[%s5 + $0x3c] sm:$0xf]
      %v440 = vld [vmem:[%s5 + $0x40] sm:$0xf]
      %v441 = vld [vmem:[%s5 + $0x44] sm:$0xf]
      %v442 = vld [vmem:[%s5 + $0x48] sm:$0xf]
      %v443 = vld [vmem:[%s5 + $0x4c] sm:$0xf]
      %v444 = vld [vmem:[%s5 + $0x50] sm:$0xf]
      %v445 = vld [vmem:[%s5 + $0x54] sm:$0xf]
      %v446 = vld [vmem:[%s5 + $0x58] sm:$0xf]
      %v447 = vld [vmem:[%s5 + $0x5c] sm:$0xf]
      %v448 = vld [vmem:[%s5 + $0x60] sm:$0xf]
      %v449 = vld [vmem:[%s5 + $0x64] sm:$0xf]
      %v450 = vld [vmem:[%s5 + $0x68] sm:$0xf]
      %v451 = vld [vmem:[%s5 + $0x6c] sm:$0xf]
      %v452 = vld [vmem:[%s5 + $0x70] sm:$0xf]
      %v453 = vld [vmem:[%s5 + $0x74] sm:$0xf]
      %v454 = vld [vmem:[%s5 + $0x78] sm:$0xf]
      %v455 = vld [vmem:[%s5 + $0x7c] sm:$0xf]
      %v456 = vld [vmem:[%s6] sm:$0x1]
      %v458 = vlaneseq
      %v459 = vshrl.u32 %v458, 7
      %v460 = vsub.s32 0, %v459
      %v461 = vrot.slane %v456, %v460
      %v495 = vunpack.c.l.b16 %v424
      %v496 = vunpack.c.l.b16 %v425
      %v497 = vunpack.c.l.b16 %v426
      %v498 = vunpack.c.l.b16 %v427
      %v499 = vunpack.c.l.b16 %v428
      %v500 = vunpack.c.l.b16 %v429
      %v501 = vunpack.c.l.b16 %v430
      %v502 = vunpack.c.l.b16 %v431
      %v503 = vunpack.c.l.b16 %v432
      %v504 = vunpack.c.l.b16 %v433
      %v505 = vunpack.c.l.b16 %v434
      %v506 = vunpack.c.l.b16 %v435
      %v507 = vunpack.c.l.b16 %v436
      %v508 = vunpack.c.l.b16 %v437
      %v509 = vunpack.c.l.b16 %v438
      %v510 = vunpack.c.l.b16 %v439
      %v511 = vunpack.c.l.b16 %v440
      %v512 = vunpack.c.l.b16 %v441
      %v513 = vunpack.c.l.b16 %v442
      %v514 = vunpack.c.l.b16 %v443
      %v515 = vunpack.c.l.b16 %v444
      %v516 = vunpack.c.l.b16 %v445
      %v517 = vunpack.c.l.b16 %v446
      %v518 = vunpack.c.l.b16 %v447
      %v519 = vunpack.c.l.b16 %v448
      %v520 = vunpack.c.l.b16 %v449
      %v521 = vunpack.c.l.b16 %v450
      %v522 = vunpack.c.l.b16 %v451
      %v523 = vunpack.c.l.b16 %v452
      %v524 = vunpack.c.l.b16 %v453
      %v525 = vunpack.c.l.b16 %v454
      %v526 = vunpack.c.l.b16 %v455
      %v527 = vpack.c.b16 %v496, %v495
      %v528 = vpack.c.b16 %v498, %v497
      %v529 = vpack.c.b16 %v500, %v499
      %v530 = vpack.c.b16 %v502, %v501
      %v531 = vpack.c.b16 %v504, %v503
      %v532 = vpack.c.b16 %v506, %v505
      %v533 = vpack.c.b16 %v508, %v507
      %v534 = vpack.c.b16 %v510, %v509
      %v535 = vpack.c.b16 %v512, %v511
      %v536 = vpack.c.b16 %v514, %v513
      %v537 = vpack.c.b16 %v516, %v515
      %v538 = vpack.c.b16 %v518, %v517
      %v539 = vpack.c.b16 %v520, %v519
      %v540 = vpack.c.b16 %v522, %v521
      %v541 = vpack.c.b16 %v524, %v523
      %v542 = vpack.c.b16 %v526, %v525
      %559 = vmatprep.subr.bf16.mxu0 0
      %560 = vmatpush1.bf16.msra.mxu0 %v527
      %561 = vmatprep.subr.bf16.mxu0 0
      %562 = vmatpush1.bf16.msra.mxu0 %v528
      %563 = vmatprep.subr.bf16.mxu0 0
      %564 = vmatpush1.bf16.msra.mxu0 %v529
      %565 = vmatprep.subr.bf16.mxu0 0
      %566 = vmatpush1.bf16.msra.mxu0 %v530
      %567 = vmatprep.subr.bf16.mxu0 0
      %568 = vmatpush1.bf16.msra.mxu0 %v531
      %569 = vmatprep.subr.bf16.mxu0 0
      %570 = vmatpush1.bf16.msra.mxu0 %v532
      %571 = vmatprep.subr.bf16.mxu0 0
      %572 = vmatpush1.bf16.msra.mxu0 %v533
      %573 = vmatprep.subr.bf16.mxu0 0
      %574 = vmatpush1.bf16.msra.mxu0 %v534
      %575 = vmatprep.subr.bf16.mxu0 0
      %576 = vmatpush1.bf16.msra.mxu0 %v535
      %577 = vmatprep.subr.bf16.mxu0 0
      %578 = vmatpush1.bf16.msra.mxu0 %v536
      %579 = vmatprep.subr.bf16.mxu0 0
      %580 = vmatpush1.bf16.msra.mxu0 %v537
      %581 = vmatprep.subr.bf16.mxu0 0
      %582 = vmatpush1.bf16.msra.mxu0 %v538
      %583 = vmatprep.subr.bf16.mxu0 0
      %584 = vmatpush1.bf16.msra.mxu0 %v539
      %585 = vmatprep.subr.bf16.mxu0 0
      %586 = vmatpush1.bf16.msra.mxu0 %v540
      %587 = vmatprep.subr.bf16.mxu0 0
      %588 = vmatpush1.bf16.msra.mxu0 %v541
      %589 = vmatprep.subr.bf16.mxu0 0
      %590 = vmatpush1.bf16.msra.mxu0 %v542
      %591 = vmatprep.mubr.bf16.mxu0 %v423
      %592 = vmatmul.mubr.bf16.gmra.mrb[0].mxu0 %v422
      %v593 = vpop.f32.mrb[0].mxu0
      %v594 = vadd.f32 %v461, %v593
      %v595 = vpop.f32.mrb[0].mxu0
      %v596 = vpop.f32.mrb[0].mxu0
      %v597 = vpop.f32.mrb[0].mxu0
      %598 = vdwg.mxu0
      %v599 = vadd.f32 %v275, %v594
      %600 = vst.msk [vmem:[%s273] sm:$0xff] %vm278, %v599
      %p601 = scmp.lt.s32.totalorder %s18, 1
      %s602 = scalar_select %p601, %s18, 1
      %s603 = smul.addr %s602, 8
      %s604 = scalar_lea.vmem %s7, %s603
      // Predicated region
      $region49: #{_lambda_.8} parent=47 // pred_check
        %p605 = pneg %p188
      $region50: #{_lambda_.8} parent=47 // pred_check_branch
        %607 = sbr.rel (%p605) target = $region52
      $region51: #{_lambda_.8} parent=47 // pred_region
        _
      $region52: #{_lambda_.8} parent=47 // pred_fallthru
        _
    $region48: #{_lambda_.8} parent=5 // pred_fallthru
      _
    %p608 = scmp.le.s32.totalorder 2, %s13
    // Predicated region
    $region53: #{_lambda_.8} parent=5 // pred_check
      %p609 = pneg %p608
    $region54: #{_lambda_.8} parent=5 // pred_check_branch
      %611 = sbr.rel (%p609) target = $region56
    $region55: #{_lambda_.8} parent=5 // pred_region
      %s612 = ssub.s32 %s13, 2
      // Predicated region
      $region57: #{_lambda_.8} parent=55 // pred_check
        %p613 = pneg %p194
      $region58: #{_lambda_.8} parent=55 // pred_check_branch
        %615 = sbr.rel (%p613) target = $region60
      $region59: #{_lambda_.8} parent=55 // pred_region
        %p616 = scmp.lt.s32.totalorder %s19, 1
        %s617 = scalar_select %p616, %s19, 1
        %s618 = smul.addr %s617, 8
        %s619 = scalar_lea.vmem %s7, %s618
      $region60: #{_lambda_.8} parent=55 // pred_fallthru
        _
    $region56: #{_lambda_.8} parent=5 // pred_fallthru
      _
  $region6: #{_lambda_.8} parent=0 // loop_footer
    %s17 = sadd.s32 1, %s13
  $region7: #{_lambda_.8} parent=0 // loop_footer_branch
    %12 = sbr.rel target = $region3
  $region8: #{_lambda_.8} parent=0 // loop_exit
    _

// kernel: _lambda_.11
$region0: #{_lambda_.11}
  #allocation0 [shape = 'u32[]', space=smem, size = 0x4, offset = 0x4, fixed_abs, tag = 'smem constant byte address 0x4 - core index']
  #allocation1 [shape = 'u32[144,128]{1,0:T(1,128)}', space=vmem, size = 0x12000, scoped, tag = 'internal scratch']
  %s0 = inlined_call_operand.vmem [shape: f32[2,8,64], index: 0, kind: input, shape index: {}]
  %s1 = inlined_call_operand.vmem [shape: f32[1,64], index: 1, kind: input, shape index: {}]
  %s2 = inlined_call_operand.vmem [shape: f32[1,64], index: 2, kind: input, shape index: {}]
  %s3 = inlined_call_operand.vmem [shape: bf16[64,16], index: 3, kind: input, shape index: {}]
  %s4 = inlined_call_operand.vmem [shape: f32[1,16], index: 4, kind: input, shape index: {}]
  %s5 = inlined_call_operand.hbm [shape: f32[2,1,16], index: 5, kind: output, shape index: {}]
  %s6 = sld [smem:[#allocation0]]
  $region53: #{_lambda_.11} parent=0
    _
  %s8 = ssub.s32 1, %s6
  %s9 = scalar_select 0, %s8, %s6
  $region1: #{_lambda_.11} parent=0
    #allocation2 [shape = 'u8[1024]{0}', space=vmem, size = 0x400, scoped, tag = 'output window, operand 0']
    #allocation3 [shape = 's32[2]{0}', space=sflag, size = 0x8, scoped, tag = 'scoped memory for _lambda_.11']
    %10 = vsyncpa [#allocation3], 0
    %s11 = scalar_lea.sflag [#allocation3], 1
    %12 = vsyncpa %s11, 0
    loop: start=0, step=1, limit=4
    $region2: #{_lambda_.11} parent=1 // loop_pre_header
      _
    $region3: #{_lambda_.11} parent=1 // loop_header
      %s14 = sphi 0, %s18
      %p15 = scmp.ge.s32.totalorder %s14, 4
      %s24 = sphi 0, %s26
      %s27 = sphi 0, %s24
      %s28 = sphi 0, %s27
      %s44 = sphi 0, %s28
      %s48 = sphi 0, %s48
      %s50 = sphi 0, %s48
      %s51 = sphi 0, %s50
      %s65 = sphi 0, %s51
      %s69 = sphi 0, %s69
      %s71 = sphi 0, %s69
      %s72 = sphi 0, %s71
      %s86 = sphi 0, %s72
      %s90 = sphi 0, %s90
      %s92 = sphi 0, %s90
      %s93 = sphi 0, %s92
      %s107 = sphi 0, %s93
      %s111 = sphi 0, %s111
      %s113 = sphi 0, %s111
      %s114 = sphi 0, %s113
      %s128 = sphi 0, %s114
      %s134 = sphi 0, %s136
      %s137 = sphi 0, %s134
      %s138 = sphi 0, %s137
      %s154 = sphi 0, %s138
    $region4: #{_lambda_.11} parent=1 // loop_header_branch
      %17 = sbr.rel (%p15) target = $region8
    $region5: #{_lambda_.11} parent=1 // loop_body
      %s19 = ssub.s32 %s14, 1
      %s20 = ssub.s32 %s14, 2
      %s21 = sadd.s32 %s14, 1
      %s22 = ssub.s32 %s14, %s21
      %p23 = scmp.eq.s32.totalorder %s22, 0
      %s25 = sadd.s32 %s24, 1
      %s26 = scalar_select %p23, %s24, %s25
      %p29 = pneg %p23
      %p30 = scmp.eq.s32.totalorder %s14, 1
      %p31 = por %p29, %p30
      %p32 = scmp.ne.s32.totalorder %s24, %s27
      %p33 = scmp.eq.s32.totalorder %s14, 0
      %p34 = por %p32, %p33
      %p35 = scmp.ne.s32.totalorder %s24, %s27
      %p36 = scmp.eq.s32.totalorder %s19, 1
      %p37 = por %p35, %p36
      %p38 = scmp.ne.s32.totalorder %s27, %s28
      %p39 = scmp.eq.s32.totalorder %s19, 0
      %p40 = por %p38, %p39
      %p41 = scmp.ne.s32.totalorder %s27, %s28
      %p42 = scmp.eq.s32.totalorder %s20, 1
      %p43 = por %p41, %p42
      %p45 = scmp.ne.s32.totalorder %s28, %s44
      %p46 = scmp.eq.s32.totalorder %s20, 0
      %p47 = por %p45, %p46
      %s49 = sadd.s32 %s48, 1
      %p52 = scmp.eq.s32.totalorder %s14, 1
      %p53 = scmp.ne.s32.totalorder %s48, %s50
      %p54 = scmp.eq.s32.totalorder %s14, 0
      %p55 = por %p53, %p54
      %p56 = scmp.ne.s32.totalorder %s48, %s50
      %p57 = scmp.eq.s32.totalorder %s19, 1
      %p58 = por %p56, %p57
      %p59 = scmp.ne.s32.totalorder %s50, %s51
      %p60 = scmp.eq.s32.totalorder %s19, 0
      %p61 = por %p59, %p60
      %p62 = scmp.ne.s32.totalorder %s50, %s51
      %p63 = scmp.eq.s32.totalorder %s20, 1
      %p64 = por %p62, %p63
      %p66 = scmp.ne.s32.totalorder %s51, %s65
      %p67 = scmp.eq.s32.totalorder %s20, 0
      %p68 = por %p66, %p67
      %s70 = sadd.s32 %s69, 1
      %p73 = scmp.eq.s32.totalorder %s14, 1
      %p74 = scmp.ne.s32.totalorder %s69, %s71
      %p75 = scmp.eq.s32.totalorder %s14, 0
      %p76 = por %p74, %p75
      %p77 = scmp.ne.s32.totalorder %s69, %s71
      %p78 = scmp.eq.s32.totalorder %s19, 1
      %p79 = por %p77, %p78
      %p80 = scmp.ne.s32.totalorder %s71, %s72
      %p81 = scmp.eq.s32.totalorder %s19, 0
      %p82 = por %p80, %p81
      %p83 = scmp.ne.s32.totalorder %s71, %s72
      %p84 = scmp.eq.s32.totalorder %s20, 1
      %p85 = por %p83, %p84
      %p87 = scmp.ne.s32.totalorder %s72, %s86
      %p88 = scmp.eq.s32.totalorder %s20, 0
      %p89 = por %p87, %p88
      %s91 = sadd.s32 %s90, 1
      %p94 = scmp.eq.s32.totalorder %s14, 1
      %p95 = scmp.ne.s32.totalorder %s90, %s92
      %p96 = scmp.eq.s32.totalorder %s14, 0
      %p97 = por %p95, %p96
      %p98 = scmp.ne.s32.totalorder %s90, %s92
      %p99 = scmp.eq.s32.totalorder %s19, 1
      %p100 = por %p98, %p99
      %p101 = scmp.ne.s32.totalorder %s92, %s93
      %p102 = scmp.eq.s32.totalorder %s19, 0
      %p103 = por %p101, %p102
      %p104 = scmp.ne.s32.totalorder %s92, %s93
      %p105 = scmp.eq.s32.totalorder %s20, 1
      %p106 = por %p104, %p105
      %p108 = scmp.ne.s32.totalorder %s93, %s107
      %p109 = scmp.eq.s32.totalorder %s20, 0
      %p110 = por %p108, %p109
      %s112 = sadd.s32 %s111, 1
      %p115 = scmp.eq.s32.totalorder %s14, 1
      %p116 = scmp.ne.s32.totalorder %s111, %s113
      %p117 = scmp.eq.s32.totalorder %s14, 0
      %p118 = por %p116, %p117
      %p119 = scmp.ne.s32.totalorder %s111, %s113
      %p120 = scmp.eq.s32.totalorder %s19, 1
      %p121 = por %p119, %p120
      %p122 = scmp.ne.s32.totalorder %s113, %s114
      %p123 = scmp.eq.s32.totalorder %s19, 0
      %p124 = por %p122, %p123
      %p125 = scmp.ne.s32.totalorder %s113, %s114
      %p126 = scmp.eq.s32.totalorder %s20, 1
      %p127 = por %p125, %p126
      %p129 = scmp.ne.s32.totalorder %s114, %s128
      %p130 = scmp.eq.s32.totalorder %s20, 0
      %p131 = por %p129, %p130
      %s132 = ssub.s32 %s14, %s21
      %p133 = scmp.eq.s32.totalorder %s132, 0
      %s135 = sadd.s32 %s134, 1
      %s136 = scalar_select %p133, %s134, %s135
      %p139 = pneg %p133
      %p140 = scmp.eq.s32.totalorder %s14, 1
      %p141 = por %p139, %p140
      %p142 = scmp.ne.s32.totalorder %s134, %s137
      %p143 = scmp.eq.s32.totalorder %s14, 0
      %p144 = por %p142, %p143
      %p145 = scmp.ne.s32.totalorder %s134, %s137
      %p146 = scmp.eq.s32.totalorder %s19, 1
      %p147 = por %p145, %p146
      %p148 = scmp.ne.s32.totalorder %s137, %s138
      %p149 = scmp.eq.s32.totalorder %s19, 0
      %p150 = por %p148, %p149
      %p151 = scmp.ne.s32.totalorder %s137, %s138
      %p152 = scmp.eq.s32.totalorder %s20, 1
      %p153 = por %p151, %p152
      %p155 = scmp.ne.s32.totalorder %s138, %s154
      %p156 = scmp.eq.s32.totalorder %s20, 0
      %p157 = por %p155, %p156
      %p158 = scmp.le.s32.totalorder 1, %s14
      %p159 = scmp.lt.s32.totalorder %s14, 3
      %p160 = pnand %p158, %p159
      %p161 = pneg %p160
      // Predicated region
      $region9: #{_lambda_.11} parent=5 // pred_check
        _
      $region10: #{_lambda_.11} parent=5 // pred_check_branch
        %163 = sbr.rel (%p160) target = $region12
      $region11: #{_lambda_.11} parent=5 // pred_region
        %s164 = ssub.s32 %s14, 1
        // Predicated region
        $region13: #{_lambda_.11} parent=11 // pred_check
          %p165 = pneg %p61
        $region14: #{_lambda_.11} parent=11 // pred_check_branch
          %167 = sbr.rel (%p165) target = $region16
        $region15: #{_lambda_.11} parent=11 // pred_region
          _
        $region16: #{_lambda_.11} parent=11 // pred_fallthru
          _
        // Predicated region
        $region17: #{_lambda_.11} parent=11 // pred_check
          %p168 = pneg %p82
        $region18: #{_lambda_.11} parent=11 // pred_check_branch
          %170 = sbr.rel (%p168) target = $region20
        $region19: #{_lambda_.11} parent=11 // pred_region
          _
        $region20: #{_lambda_.11} parent=11 // pred_fallthru
          _
        // Predicated region
        $region21: #{_lambda_.11} parent=11 // pred_check
          %p171 = pneg %p103
        $region22: #{_lambda_.11} parent=11 // pred_check_branch
          %173 = sbr.rel (%p171) target = $region24
        $region23: #{_lambda_.11} parent=11 // pred_region
          _
        $region24: #{_lambda_.11} parent=11 // pred_fallthru
          _
        // Predicated region
        $region25: #{_lambda_.11} parent=11 // pred_check
          %p174 = pneg %p124
        $region26: #{_lambda_.11} parent=11 // pred_check_branch
          %176 = sbr.rel (%p174) target = $region28
        $region27: #{_lambda_.11} parent=11 // pred_region
          _
        $region28: #{_lambda_.11} parent=11 // pred_fallthru
          _
      $region12: #{_lambda_.11} parent=5 // pred_fallthru
        _
      %p177 = scmp.lt.s32.totalorder %s14, 2
      // Predicated region
      $region29: #{_lambda_.11} parent=5 // pred_check
        %p178 = pneg %p177
      $region30: #{_lambda_.11} parent=5 // pred_check_branch
        %180 = sbr.rel (%p178) target = $region32
      $region31: #{_lambda_.11} parent=5 // pred_region
        // Predicated region
        $region33: #{_lambda_.11} parent=31 // pred_check
          %p181 = pneg %p34
        $region34: #{_lambda_.11} parent=31 // pred_check_branch
          %183 = sbr.rel (%p181) target = $region36
        $region35: #{_lambda_.11} parent=31 // pred_region
          %p184 = scmp.lt.s32.totalorder %s14, 1
          %s185 = scalar_select %p184, %s14, 1
          %s186 = smul.addr %s185, 8
          %s187 = scalar_lea.vmem %s0, %s186
        $region36: #{_lambda_.11} parent=31 // pred_fallthru
          _
      $region32: #{_lambda_.11} parent=5 // pred_fallthru
        _
      %p188 = scmp.le.s32.totalorder 1, %s14
      %p189 = scmp.lt.s32.totalorder %s14, 3
      %p190 = pnand %p188, %p189
      %p191 = pneg %p190
      // Predicated region
      $region37: #{_lambda_.11} parent=5 // pred_check
        _
      $region38: #{_lambda_.11} parent=5 // pred_check_branch
        %193 = sbr.rel (%p190) target = $region40
      $region39: #{_lambda_.11} parent=5 // pred_region
        %s194 = ssub.s32 %s14, 1
        %p195 = scmp.lt.s32.totalorder %s19, 1
        %s196 = scalar_select %p195, %s19, 1
        %s197 = smul.addr %s196, 8
        %s198 = scalar_lea.vmem %s0, %s197
        %p199 = pneg %p40
        %p200 = pneg %p37
        %p201 = pneg %p61
        %p202 = pneg %p58
        %p203 = pneg %p82
        %p204 = pneg %p79
        %p205 = pneg %p103
        %p206 = pneg %p100
        %p207 = pneg %p124
        %p208 = pneg %p121
        %p209 = pneg %p150
        %p210 = pneg %p147
        %s211 = sand.u32 %s137, 1
        %s212 = scalar_lea.sflag [#allocation3], %s211
        %s213 = sand.u32 %s137, 1
        %s214 = scalar_lea.vmem [#allocation2], %s213
        %p215 = scmp.lt.s32.totalorder %s19, 1
        %s216 = scalar_select %p215, %s19, 1
        %s217 = smul.addr %s216, 8
        %s218 = scalar_lea.vmem %s0, %s217
        %v220 = vld [vmem:[%s218] sm:$0x1]
        %v221 = vld [vmem:[%s1] sm:$0x1]
        %v222 = vld [vmem:[%s2] sm:$0x1]
        %vm223 = vcmask 516096
        %v224 = vsel %vm223, %v220, 0.0
        %225 = vadd.xlane.f32.xlu0 %v224
        %v226 = vpop.xlane.xlu0 %225
        %v227 = vrcp.pop 64.0
        %v228 = vmul.f32 %v226, %v227
        %v229 = vsub.f32 %v220, %v228
        %v230 = vmul.f32 %v229, %v229
        %v231 = vsel %vm223, %v230, 0.0
        %232 = vadd.xlane.f32.xlu0 %v231
        %v233 = vpop.xlane.xlu0 %232
        %v234 = vmul.f32 %v233, %v227
        %v235 = vadd.f32 %v234, 1e-06
        %v236 = vrsqrt.pop %v235
        %v237 = vmul.f32 %v229, %v236
        %v238 = vmul.f32 %v237, %v221
        %v239 = vadd.f32 %v238, %v222
        %v240 = vpack.c.bf16 %v239, %v239
        %v241 = vld [vmem:[%s3] sm:$0xf]
        %v242 = vld [vmem:[%s3 + $0x4] sm:$0xf]
        %v243 = vld [vmem:[%s3 + $0x8] sm:$0xf]
        %v244 = vld [vmem:[%s3 + $0xc] sm:$0xf]
        %v245 = vld [vmem:[%s3 + $0x10] sm:$0xf]
        %v246 = vld [vmem:[%s3 + $0x14] sm:$0xf]
        %v247 = vld [vmem:[%s3 + $0x18] sm:$0xf]
        %v248 = vld [vmem:[%s3 + $0x1c] sm:$0xf]
        %v249 = vld [vmem:[%s4] sm:$0x1]
        %v258 = vunpack.c.l.b16 %v241
        %v259 = vunpack.c.l.b16 %v242
        %v260 = vunpack.c.l.b16 %v243
        %v261 = vunpack.c.l.b16 %v244
        %v262 = vunpack.c.l.b16 %v245
        %v263 = vunpack.c.l.b16 %v246
        %v264 = vunpack.c.l.b16 %v247
        %v265 = vunpack.c.l.b16 %v248
        %v266 = vpack.c.b16 %v259, %v258
        %v267 = vpack.c.b16 %v261, %v260
        %v268 = vpack.c.b16 %v263, %v262
        %v269 = vpack.c.b16 %v265, %v264
        %vm274 = vcmask 523264
        %v276 = vsel %vm274, %v240, 0
        %278 = vmatprep.subr.bf16.mxu0 0
        %279 = vmatpush1.bf16.msra.mxu0 %v266
        %280 = vmatprep.subr.bf16.mxu0 0
        %281 = vmatpush1.bf16.msra.mxu0 %v267
        %282 = vmatprep.subr.bf16.mxu0 0
        %283 = vmatpush1.bf16.msra.mxu0 %v268
        %284 = vmatprep.subr.bf16.mxu0 0
        %285 = vmatpush1.bf16.msra.mxu0 %v269
        %286 = vmatprep.subr.bf16.mxu0 0
        %287 = vmatpush1.bf16.msra.mxu0 0
        %288 = vmatprep.subr.bf16.mxu0 0
        %289 = vmatpush1.bf16.msra.mxu0 0
        %290 = vmatprep.subr.bf16.mxu0 0
        %291 = vmatpush1.bf16.msra.mxu0 0
        %292 = vmatprep.subr.bf16.mxu0 0
        %293 = vmatpush1.bf16.msra.mxu0 0
        %294 = vmatprep.subr.bf16.mxu0 0
        %295 = vmatpush1.bf16.msra.mxu0 0
        %296 = vmatprep.subr.bf16.mxu0 0
        %297 = vmatpush1.bf16.msra.mxu0 0
        %298 = vmatprep.subr.bf16.mxu0 0
        %299 = vmatpush1.bf16.msra.mxu0 0
        %300 = vmatprep.subr.bf16.mxu0 0
        %301 = vmatpush1.bf16.msra.mxu0 0
        %302 = vmatprep.subr.bf16.mxu0 0
        %303 = vmatpush1.bf16.msra.mxu0 0
        %304 = vmatprep.subr.bf16.mxu0 0
        %305 = vmatpush1.bf16.msra.mxu0 0
        %306 = vmatprep.subr.bf16.mxu0 0
        %307 = vmatpush1.bf16.msra.mxu0 0
        %308 = vmatprep.subr.bf16.mxu0 0
        %309 = vmatpush1.bf16.msra.mxu0 0
        %310 = vmatprep.mubr.bf16.mxu0 0
        %311 = vmatmul.mubr.bf16.gmra.mrb[0].mxu0 %v276
        %v312 = vpop.f32.mrb[0].mxu0
        %v313 = vadd.f32 %v249, %v312
        %v314 = vpop.f32.mrb[0].mxu0
        %v315 = vpop.f32.mrb[0].mxu0
        %v316 = vpop.f32.mrb[0].mxu0
        %317 = vdwg.mxu0
        %vm318 = vcmask 122880
        %319 = vst.msk [vmem:[%s214] sm:$0x1] %vm318, %v313
        %s320 = sand.u32 %s137, 1
        %s321 = scalar_lea.sflag [#allocation3], %s320
        %s322 = sand.u32 %s137, 1
        %s323 = scalar_lea.vmem [#allocation2], %s322
        // Predicated region
        $region41: #{_lambda_.11} parent=39 // pred_check
          %p324 = pneg %p147
        $region42: #{_lambda_.11} parent=39 // pred_check_branch
          %326 = sbr.rel (%p324) target = $region44
        $region43: #{_lambda_.11} parent=39 // pred_region
          %s328 = ssub.s32 16, 16
          %329 = vsyncadd %s321, %s328
          %s330 = smul.addr %s19, 16
          %s331 = scalar_lea.hbm %s5, %s330
          %s333 = sshll.u32 %s323, 4
          %s334 = int_to_ptr.vmem [resolvable:$true] %s333
          %336 = dma.vmem_to_hbm [thread:$0]  %s334, 16, %s331, %s321
        $region44: #{_lambda_.11} parent=39 // pred_fallthru
          _
      $region40: #{_lambda_.11} parent=5 // pred_fallthru
        _
      %p337 = scmp.le.s32.totalorder 2, %s14
      // Predicated region
      $region45: #{_lambda_.11} parent=5 // pred_check
        %p338 = pneg %p337
      $region46: #{_lambda_.11} parent=5 // pred_check_branch
        %340 = sbr.rel (%p338) target = $region48
      $region47: #{_lambda_.11} parent=5 // pred_region
        %s341 = ssub.s32 %s14, 2
        // Predicated region
        $region49: #{_lambda_.11} parent=47 // pred_check
          %p342 = pneg %p153
        $region50: #{_lambda_.11} parent=47 // pred_check_branch
          %344 = sbr.rel (%p342) target = $region52
        $region51: #{_lambda_.11} parent=47 // pred_region
          %s345 = sand.u32 %s138, 1
          %s346 = scalar_lea.sflag [#allocation3], %s345
          %s347 = sand.u32 %s138, 1
          %s348 = scalar_lea.vmem [#allocation2], %s347
          %349 = dma.done %s346, 16
        $region52: #{_lambda_.11} parent=47 // pred_fallthru
          _
      $region48: #{_lambda_.11} parent=5 // pred_fallthru
        _
    $region6: #{_lambda_.11} parent=1 // loop_footer
      %s18 = sadd.s32 1, %s14
    $region7: #{_lambda_.11} parent=1 // loop_footer_branch
      %13 = sbr.rel target = $region3
    $region8: #{_lambda_.11} parent=1 // loop_exit
      _
    %350 = vsyncpa [#allocation3], 1
    %s351 = scalar_lea.sflag [#allocation3], 1
    %352 = vsyncpa %s351, 1

</llo_original>
